<compile_context>
chip_gen: v7x
topology: tpu7x:2x2x1
jax: 0.10.0
libtpu: 0.0.40
codegen_flags: <defaults>
</compile_context>

<pallas_src>
import numpy as np

import jax
import jax.numpy as jnp
from jax import lax
from jax.experimental import pallas as pl
from jax.experimental.pallas import tpu as pltpu


# -----------------------------------------------------------------------------
# Offline parameter preparation (BN fold + lowered-conv / pooling matrices)
# -----------------------------------------------------------------------------
def _build_layer_mats(w, bias, scale, shift, H, W, Cin, Cout):
    """Per-layer matrices for the fused kernel.

    Activation layout inside the kernel: 2D slab (G*H, W*C) with lane = w*C + c.
      B_cat : (3*W*Cin, W*Cout) lowered 3x3 conv (BN scale folded), K-concatenated
              over the three vertical taps ky = 0,1,2.
      T_even: (W*Cout, W/2*Cout) 0/1 lane compaction (keep even column blocks).
      brow  : (1, W/2*Cout) folded conv bias + BN shift, tiled along pooled W.
      Pm    : (H, H) 0/1 row permutation [even rows ; odd rows] (fallback only).
    """
    wf = w * scale.reshape(1, 1, 1, Cout)                       # fold BN scale
    bf = bias.reshape(Cout) * scale + shift                     # fold bias + BN shift

    Win, Wmid, Wout = W * Cin, W * Cout, (W // 2) * Cout
    B = np.zeros((3, Win, Wmid), np.float32)
    for ky in range(3):
        for kx in range(3):
            for wc in range(W):
                wi = wc + kx - 1
                if 0 <= wi < W:
                    B[ky, wi * Cin:(wi + 1) * Cin, wc * Cout:(wc + 1) * Cout] = wf[ky, kx]
    B_cat = B.reshape(3 * Win, Wmid)

    T_even = np.zeros((Wmid, Wout), np.float32)
    for w2 in range(W // 2):
        for co in range(Cout):
            T_even[(2 * w2) * Cout + co, w2 * Cout + co] = 1.0

    brow = np.tile(bf.astype(np.float32), W // 2).reshape(1, Wout)

    H2 = H // 2
    Pm = np.zeros((H, H), np.float32)
    for j in range(H2):
        Pm[j, 2 * j] = 1.0
        Pm[H2 + j, 2 * j + 1] = 1.0
    return B_cat, T_even, brow, Pm


def prepare_params(raw, ndf, nz):
    """Fold BN into weights and build all kernel operands (done once, offline)."""
    eps = 1e-5
    cfgs, arrays = [], []
    H = W = 64
    cin = 1
    for lp, cout in zip(raw["convs"], (ndf, ndf * 2, ndf * 4, ndf * 8)):
        scale = np.asarray(lp["gamma"]) / np.sqrt(np.asarray(lp["var"]) + eps)
        shift = np.asarray(lp["beta"]) - np.asarray(lp["mean"]) * scale
        B_cat, T_even, brow, Pm = _build_layer_mats(
            np.asarray(lp["w"]), np.asarray(lp["b"]), scale, shift, H, W, cin, cout)
        cfgs.append((H, W, cin, cout))
        arrays += [jnp.asarray(B_cat, jnp.bfloat16),     # bf16 MXU operand
                   jnp.asarray(T_even, jnp.bfloat16),    # exact 0/1 in bf16
                   jnp.asarray(brow, jnp.float32),
                   jnp.asarray(Pm, jnp.float32)]
        H //= 2
        W //= 2
        cin = cout

    # Permute FC1 rows from torch (C,H,W) flatten order to the kernel's
    # (h, w*C + c) flatten order -> single (512, 5*nz) matrix.
    C4, H1 = ndf * 8, nz * 5
    D = C4 * 16
    perm = np.zeros((D,), np.int64)
    for h in range(4):
        for wq in range(4):
            for c in range(C4):
                perm[h * 4 * C4 + wq * C4 + c] = c * 16 + h * 4 + wq
    w1p = np.asarray(raw["w1"])[perm, :]
    arrays += [jnp.asarray(w1p, jnp.float32),
               jnp.asarray(np.asarray(raw["b1"]).reshape(1, H1), jnp.float32),
               jnp.asarray(np.asarray(raw["w2"]), jnp.float32),
               jnp.asarray(np.asarray(raw["b2"]).reshape(1, nz), jnp.float32)]
    return dict(cfgs=cfgs, arrays=arrays, nz=nz, ndf=ndf)


# -----------------------------------------------------------------------------
# Strided-read capability probe (decides primary vs. fallback pooling path)
# -----------------------------------------------------------------------------
_STRIDED_OK = None


def _strided_reads_supported():
    global _STRIDED_OK
    if _STRIDED_OK is not None:
        return _STRIDED_OK

    def probe(x_ref, o1_ref, o2_ref, scr):
        scr[...] = x_ref[...]
        o1_ref[...] = jnp.concatenate(
            [scr[pl.ds(0, 8, 2), :], scr[pl.ds(1, 8, 2), :]], axis=0)
        o2_ref[...] = scr[pl.ds(3, 4, 4), pl.ds(0, 128)]

    try:
        x = jnp.arange(16 * 256, dtype=jnp.float32).reshape(16, 256)
        o1, o2 = pl.pallas_call(
            probe,
            out_shape=(jax.ShapeDtypeStruct((16, 256), jnp.float32),
                       jax.ShapeDtypeStruct((4, 128), jnp.float32)),
            scratch_shapes=[pltpu.VMEM((16, 256), jnp.float32)],
        )(x)
        xn = np.arange(16 * 256, dtype=np.float32).reshape(16, 256)
        ok = (np.array_equal(np.asarray(o1),
                             np.concatenate([xn[0::2], xn[1::2]], axis=0))
              and np.array_equal(np.asarray(o2), xn[3::4, :128]))
        _STRIDED_OK = bool(ok)
    except Exception:
        _STRIDED_OK = False
    return _STRIDED_OK


def _pick_group(n, cap=32):
    """Images per grid step: largest divisor of n <= cap, preferring >=2 steps."""
    divs = [g for g in range(1, min(n, cap) + 1) if n % g == 0]
    two_step = [g for g in divs if n // g >= 2 and g >= 8]
    return max(two_step) if two_step else max(divs)


# -----------------------------------------------------------------------------
# Fused kernel: 4 x (conv3x3+BN+maxpool2x2+relu) + Linear + Linear + log_softmax
# -----------------------------------------------------------------------------
def _make_kernel(cfgs, G, fc_lanes, use_strided):
    def kernel(*refs):
        x_ref = refs[0]
        o_ref = refs[-2]
        vscr = refs[-1]
        widx = 1

        X = x_ref[0]                                            # (G*64, 64) f32
        for (H, W, Cin, Cout) in cfgs:
            B_ref, T_ref, b_ref, Pm_ref = refs[widx:widx + 4]
            widx += 4
            H2 = H // 2
            GH, GH2 = G * H, G * H2
            WCout = W * Cout

            # --- 3x3 conv (+BN scale) as ONE K-concatenated bf16 matmul -------
            row = lax.broadcasted_iota(jnp.int32, (GH, 1), 0) & (H - 1)
            x_dn = jnp.where(row != 0, jnp.roll(X, 1, axis=0), 0.0)      # X[h-1]
            x_up = jnp.where(row != H - 1, jnp.roll(X, -1, axis=0), 0.0)  # X[h+1]
            x_cat = jnp.concatenate([x_dn, X, x_up], axis=1).astype(jnp.bfloat16)
            Y = jnp.dot(x_cat, B_ref[...],
                        preferred_element_type=jnp.float32)     # (GH, W*Cout) f32

            # --- vertical 2x2 max-pool: even/odd conv-row split + max ---------
            if use_strided:
                vscr[pl.ds(0, GH), :] = Y
                Ye = vscr[pl.ds(0, GH2, 2), :]
                Yo = vscr[pl.ds(1, GH2, 2), :]
            else:
                Pm = Pm_ref[...]                                # (H, H) 0/1 permute
                pe, po = [], []
                for g in range(G):
                    Yp = jnp.dot(Pm, Y[g * H:(g + 1) * H, :],
                                 preferred_element_type=jnp.float32)
                    pe.append(Yp[:H2, :])
                    po.append(Yp[H2:, :])
                Ye = jnp.concatenate(pe, axis=0)
                Yo = jnp.concatenate(po, axis=0)
            V = jnp.maximum(Ye, Yo)                             # (GH2, W*Cout)

            # --- horizontal 2x2 max-pool: lane roll + max + 0/1 compaction ----
            Vm = jnp.maximum(V, jnp.roll(V, -Cout, axis=1))
            P = jnp.dot(Vm.astype(jnp.bfloat16), T_ref[...],
                        preferred_element_type=jnp.float32)     # (GH2, W/2*Cout)
            X = jnp.maximum(P + b_ref[...], 0.0)                # bias/BN shift + ReLU

        w1_ref, b1_ref, w2_ref, b2_ref = refs[widx:widx + 4]

        # --- gather each image's (4, fc_lanes) rows into a (G, 4*fc_lanes) flatten
        if use_strided:
            vscr[pl.ds(0, 4 * G), pl.ds(0, fc_lanes)] = X
            parts = [vscr[pl.ds(h, G, 4), pl.ds(0, fc_lanes)] for h in range(4)]
        else:
            gi = lax.broadcasted_iota(jnp.int32, (G, 4 * G), 0)
            ri = lax.broadcasted_iota(jnp.int32, (G, 4 * G), 1)
            parts = [jnp.dot((ri == 4 * gi + h).astype(jnp.float32), X,
                             preferred_element_type=jnp.float32) for h in range(4)]
        Xfc = jnp.concatenate(parts, axis=1)                    # (G, 4*fc_lanes)

        hid = jnp.dot(Xfc, w1_ref[...],
                      preferred_element_type=jnp.float32) + b1_ref[...]
        # TODO(synk): nn.Dropout(0.5) is identity in eval mode; training-mode
        # stochastic masking is not implemented.
        logits = jnp.dot(hid, w2_ref[...],
                         preferred_element_type=jnp.float32) + b2_ref[...]

        m = jnp.max(logits, axis=1, keepdims=True)
        s = logits - m
        lse = jnp.log(jnp.sum(jnp.exp(s), axis=1, keepdims=True))
        o_ref[0] = (s - lse).astype(o_ref.dtype)                # log_softmax
    return kernel


def classifier_forward(x, params, release=False, group_cap=32):
    nz = params["nz"]
    ndf = params["ndf"]
    cfgs = params["cfgs"]
    arrays = params["arrays"]

    x2 = x.reshape(-1, 64, 64).astype(jnp.float32)              # matches x.view(-1,1,64,64)
    N = x2.shape[0]
    G = _pick_group(N, group_cap)
    xg = x2.reshape(N // G, G * 64, 64)

    fc_lanes = 32 * ndf
    use_strided = _strided_reads_supported()

    in_specs = [pl.BlockSpec((1, G * 64, 64), lambda n: (n, 0, 0))]
    for a in arrays:                                            # full-array operands
        in_specs.append(pl.BlockSpec(a.shape, lambda n, _nd=a.ndim: (0,) * _nd))

    out = pl.pallas_call(
        _make_kernel(cfgs, G, fc_lanes, use_strided),
        out_shape=jax.ShapeDtypeStruct((N // G, G, nz), jnp.float32),
        grid=(N // G,),
        in_specs=in_specs,
        out_specs=pl.BlockSpec((1, G, nz), lambda n: (n, 0, 0)),
        scratch_shapes=[pltpu.VMEM((G * 64, 64 * ndf), jnp.float32)],
        compiler_params=pltpu.CompilerParams(dimension_semantics=("parallel",)),
    )(xg, *arrays)

    logp = out.reshape(N, nz)
    return jnp.exp(logp) if release else logp


# -----------------------------------------------------------------------------
# Synthetic "torch-like" parameters + pure-JAX reference (for verification)
# -----------------------------------------------------------------------------
def init_raw_params(key, ndf, nz):
    convs = []
    cin = 1
    k = key
    for cout in (ndf, ndf * 2, ndf * 4, ndf * 8):
        k, kw, kb, kg, kbe, km, kv = jax.random.split(k, 7)
        convs.append(dict(
            w=jax.random.normal(kw, (3, 3, cin, cout), jnp.float32) / np.sqrt(9.0 * cin),
            b=jax.random.normal(kb, (cout,), jnp.float32) * 0.05,
            gamma=jax.random.uniform(kg, (cout,), jnp.float32, 0.5, 1.5),
            beta=jax.random.normal(kbe, (cout,), jnp.float32) * 0.05,
            mean=jax.random.normal(km, (cout,), jnp.float32) * 0.05,
            var=jax.random.uniform(kv, (cout,), jnp.float32, 0.5, 1.5)))
        cin = cout
    D, H1 = ndf * 8 * 4 * 4, nz * 5
    k, k1, k2, k3, k4 = jax.random.split(k, 5)
    return dict(convs=convs,
                w1=jax.random.normal(k1, (D, H1), jnp.float32) / np.sqrt(float(D)),
                b1=jax.random.normal(k2, (H1,), jnp.float32) * 0.05,
                w2=jax.random.normal(k3, (H1, nz), jnp.float32) / np.sqrt(float(H1)),
                b2=jax.random.normal(k4, (nz,), jnp.float32) * 0.05)


def reference_forward(x, raw, release=False):
    P = lax.Precision.HIGHEST
    h = x.reshape(-1, 1, 64, 64).astype(jnp.float32)
    for lp in raw["convs"]:
        h = lax.conv_general_dilated(h, lp["w"], (1, 1), ((1, 1), (1, 1)),
                                     dimension_numbers=("NCHW", "HWIO", "NCHW"),
                                     precision=P)
        h = h + lp["b"].reshape(1, -1, 1, 1)
        scale = lp["gamma"] / jnp.sqrt(lp["var"] + 1e-5)
        shift = lp["beta"] - lp["mean"] * scale
        h = h * scale.reshape(1, -1, 1, 1) + shift.reshape(1, -1, 1, 1)
        h = lax.reduce_window(h, -jnp.inf, lax.max, (1, 1, 2, 2), (1, 1, 2, 2), "VALID")
        h = jnp.maximum(h, 0.0)
    N = h.shape[0]
    z = jnp.dot(h.reshape(N, -1), raw["w1"], precision=P) + raw["b1"]
    z = jnp.dot(z, raw["w2"], precision=P) + raw["b2"]
    return jax.nn.softmax(z, axis=1) if release else jax.nn.log_softmax(z, axis=1)


if __name__ == "__main__":
    ndf, nz = 4, 8
    key = jax.random.PRNGKey(0)
    kx, kp = jax.random.split(key)
    x = jax.random.normal(kx, (2, 1, 64, 64), jnp.float32)   # forward implies 1x64x64
    raw = init_raw_params(kp, ndf, nz)
    params = prepare_params(raw, ndf, nz)

    out = classifier_forward(x, params, release=False)       # log-probabilities
    out = jax.block_until_ready(out)

    assert out.shape == (2, nz), out.shape
    assert bool(jnp.all(jnp.isfinite(out)))
    probs = jnp.exp(out)
    assert bool(jnp.all(jnp.abs(jnp.sum(probs, axis=1) - 1.0) < 1e-3))

    ref = reference_forward(x, raw, release=False)
    max_err = float(jnp.max(jnp.abs(out - ref)))
    assert max_err < 5e-2, max_err

    print("KERNEL_OK")
</pallas_src>

<mosaic_0001>
module attributes {stable_mosaic.version = 11 : i64} {
  func.func @probe(%arg0: memref<16x256xf32, #tpu.memory_space<vmem>>, %arg1: memref<16x256xf32, #tpu.memory_space<vmem>>, %arg2: memref<4x128xf32, #tpu.memory_space<vmem>>, %arg3: memref<16x256xf32, #tpu.memory_space<vmem>>) attributes {dimension_semantics = [], scalar_prefetch = 0 : i64, scratch_operands = 1 : i64, tpu.core_type = #tpu.core_type<tc>} {
    %c0 = arith.constant 0 : index
    %c0_0 = arith.constant 0 : index
    %0 = vector.load %arg0[%c0, %c0_0] : memref<16x256xf32, #tpu.memory_space<vmem>>, vector<16x256xf32>
    %c0_1 = arith.constant 0 : index
    %c0_2 = arith.constant 0 : index
    %1 = vector.load %arg3[%c0_1, %c0_2] : memref<16x256xf32, #tpu.memory_space<vmem>>, vector<16x256xf32>
    tpu.vector_store %arg3[%c0_1, %c0_2], %0 {strides = array<i32>} : memref<16x256xf32, #tpu.memory_space<vmem>>, vector<16x256xf32>,
    %c0_3 = arith.constant 0 : index
    %c0_4 = arith.constant 0 : index
    %2 = tpu.strided_load %arg3[%c0_3, %c0_4] {strides = array<i32: 2, 1>} : memref<16x256xf32, #tpu.memory_space<vmem>>, vector<8x256xf32>
    %c1 = arith.constant 1 : index
    %c0_5 = arith.constant 0 : index
    %3 = tpu.strided_load %arg3[%c1, %c0_5] {strides = array<i32: 2, 1>} : memref<16x256xf32, #tpu.memory_space<vmem>>, vector<8x256xf32>
    %4 = tpu.concatenate %2, %3 in 0 : vector<8x256xf32>, vector<8x256xf32> -> vector<16x256xf32>
    %c0_6 = arith.constant 0 : index
    %c0_7 = arith.constant 0 : index
    %5 = vector.load %arg1[%c0_6, %c0_7] : memref<16x256xf32, #tpu.memory_space<vmem>>, vector<16x256xf32>
    tpu.vector_store %arg1[%c0_6, %c0_7], %4 {strides = array<i32>} : memref<16x256xf32, #tpu.memory_space<vmem>>, vector<16x256xf32>,
    %c3 = arith.constant 3 : index
    %c0_8 = arith.constant 0 : index
    %6 = tpu.strided_load %arg3[%c3, %c0_8] {strides = array<i32: 4, 1>} : memref<16x256xf32, #tpu.memory_space<vmem>>, vector<4x128xf32>
    %c0_9 = arith.constant 0 : index
    %c0_10 = arith.constant 0 : index
    %7 = vector.load %arg2[%c0_9, %c0_10] : memref<4x128xf32, #tpu.memory_space<vmem>>, vector<4x128xf32>
    tpu.vector_store %arg2[%c0_9, %c0_10], %6 {strides = array<i32>} : memref<4x128xf32, #tpu.memory_space<vmem>>, vector<4x128xf32>,
    return
  }
}

module attributes {stable_mosaic.version = 11 : i64} {
  func.func @kernel(%arg0: i32, %arg1: memref<1x128x64xf32, #tpu.memory_space<vmem>>, %arg2: memref<192x256xbf16, #tpu.memory_space<vmem>>, %arg3: memref<256x128xbf16, #tpu.memory_space<vmem>>, %arg4: memref<1x128xf32, #tpu.memory_space<vmem>>, %arg5: memref<64x64xf32, #tpu.memory_space<vmem>>, %arg6: memref<384x256xbf16, #tpu.memory_space<vmem>>, %arg7: memref<256x128xbf16, #tpu.memory_space<vmem>>, %arg8: memref<1x128xf32, #tpu.memory_space<vmem>>, %arg9: memref<32x32xf32, #tpu.memory_space<vmem>>, %arg10: memref<384x256xbf16, #tpu.memory_space<vmem>>, %arg11: memref<256x128xbf16, #tpu.memory_space<vmem>>, %arg12: memref<1x128xf32, #tpu.memory_space<vmem>>, %arg13: memref<16x16xf32, #tpu.memory_space<vmem>>, %arg14: memref<384x256xbf16, #tpu.memory_space<vmem>>, %arg15: memref<256x128xbf16, #tpu.memory_space<vmem>>, %arg16: memref<1x128xf32, #tpu.memory_space<vmem>>, %arg17: memref<8x8xf32, #tpu.memory_space<vmem>>, %arg18: memref<512x40xf32, #tpu.memory_space<vmem>>, %arg19: memref<1x40xf32, #tpu.memory_space<vmem>>, %arg20: memref<40x8xf32, #tpu.memory_space<vmem>>, %arg21: memref<1x8xf32, #tpu.memory_space<vmem>>, %arg22: memref<1x2x8xf32, #tpu.memory_space<vmem>>, %arg23: memref<128x256xf32, #tpu.memory_space<vmem>>) attributes {dimension_semantics = [#tpu.dimension_semantics<parallel>], iteration_bounds = array<i64: 1>, scalar_prefetch = 0 : i64, scratch_operands = 1 : i64, tpu.core_type = #tpu.core_type<tc>, window_params = [{transform_indices = @transform_0, window_bounds = array<i64: 1, 128, 64>}, {pipeline_mode = #tpu.pipeline_mode<synchronous>, transform_indices = @transform_1, window_bounds = array<i64: 192, 256>}, {pipeline_mode = #tpu.pipeline_mode<synchronous>, transform_indices = @transform_2, window_bounds = array<i64: 256, 128>}, {pipeline_mode = #tpu.pipeline_mode<synchronous>, transform_indices = @transform_3, window_bounds = array<i64: 1, 128>}, {pipeline_mode = #tpu.pipeline_mode<synchronous>, transform_indices = @transform_4, window_bounds = array<i64: 64, 64>}, {pipeline_mode = #tpu.pipeline_mode<synchronous>, transform_indices = @transform_5, window_bounds = array<i64: 384, 256>}, {pipeline_mode = #tpu.pipeline_mode<synchronous>, transform_indices = @transform_6, window_bounds = array<i64: 256, 128>}, {pipeline_mode = #tpu.pipeline_mode<synchronous>, transform_indices = @transform_7, window_bounds = array<i64: 1, 128>}, {pipeline_mode = #tpu.pipeline_mode<synchronous>, transform_indices = @transform_8, window_bounds = array<i64: 32, 32>}, {pipeline_mode = #tpu.pipeline_mode<synchronous>, transform_indices = @transform_9, window_bounds = array<i64: 384, 256>}, {pipeline_mode = #tpu.pipeline_mode<synchronous>, transform_indices = @transform_10, window_bounds = array<i64: 256, 128>}, {pipeline_mode = #tpu.pipeline_mode<synchronous>, transform_indices = @transform_11, window_bounds = array<i64: 1, 128>}, {pipeline_mode = #tpu.pipeline_mode<synchronous>, transform_indices = @transform_12, window_bounds = array<i64: 16, 16>}, {pipeline_mode = #tpu.pipeline_mode<synchronous>, transform_indices = @transform_13, window_bounds = array<i64: 384, 256>}, {pipeline_mode = #tpu.pipeline_mode<synchronous>, transform_indices = @transform_14, window_bounds = array<i64: 256, 128>}, {pipeline_mode = #tpu.pipeline_mode<synchronous>, transform_indices = @transform_15, window_bounds = array<i64: 1, 128>}, {pipeline_mode = #tpu.pipeline_mode<synchronous>, transform_indices = @transform_16, window_bounds = array<i64: 8, 8>}, {pipeline_mode = #tpu.pipeline_mode<synchronous>, transform_indices = @transform_17, window_bounds = array<i64: 512, 40>}, {pipeline_mode = #tpu.pipeline_mode<synchronous>, transform_indices = @transform_18, window_bounds = array<i64: 1, 40>}, {pipeline_mode = #tpu.pipeline_mode<synchronous>, transform_indices = @transform_19, window_bounds = array<i64: 40, 8>}, {pipeline_mode = #tpu.pipeline_mode<synchronous>, transform_indices = @transform_20, window_bounds = array<i64: 1, 8>}, {transform_indices = @transform_21, window_bounds = array<i64: 1, 2, 8>}]} {
    %c0 = arith.constant 0 : index
    %c0_0 = arith.constant 0 : index
    %c0_1 = arith.constant 0 : index
    %0 = vector.load %arg1[%c0, %c0_0, %c0_1] : memref<1x128x64xf32, #tpu.memory_space<vmem>>, vector<1x128x64xf32>
    %1 = vector.shape_cast %0 : vector<1x128x64xf32> to vector<128x64xf32>
    %2 = tpu.iota {dimensions = array<i32: 0>} : vector<128x1xi32>
    %c63_i32 = arith.constant 63 : i32
    %3 = vector.broadcast %c63_i32 : i32 to vector<128x1xi32>
    %4 = arith.andi %2, %3 : vector<128x1xi32>
    %c0_i32 = arith.constant 0 : i32
    %5 = vector.broadcast %c0_i32 : i32 to vector<128x1xi32>
    %6 = arith.cmpi ne, %4, %5 : vector<128x1xi32>
    %7 = vector.extract_strided_slice %1 {offsets = [127, 0], sizes = [1, 64], strides = [1, 1]} : vector<128x64xf32> to vector<1x64xf32>
    %8 = vector.extract_strided_slice %1 {offsets = [0, 0], sizes = [127, 64], strides = [1, 1]} : vector<128x64xf32> to vector<127x64xf32>
    %9 = tpu.concatenate %7, %8 in 0 : vector<1x64xf32>, vector<127x64xf32> -> vector<128x64xf32>
    %cst = arith.constant 0.000000e+00 : f32
    %10 = vector.shape_cast %6 : vector<128x1xi1> to vector<128x1xi1>
    %11 = vector.broadcast %10 : vector<128x1xi1> to vector<128x64xi1>
    %12 = vector.broadcast %cst : f32 to vector<128x64xf32>
    %13 = arith.select %11, %9, %12 : vector<128x64xi1>, vector<128x64xf32>
    %c63_i32_2 = arith.constant 63 : i32
    %14 = vector.broadcast %c63_i32_2 : i32 to vector<128x1xi32>
    %15 = arith.cmpi ne, %4, %14 : vector<128x1xi32>
    %16 = vector.extract_strided_slice %1 {offsets = [1, 0], sizes = [127, 64], strides = [1, 1]} : vector<128x64xf32> to vector<127x64xf32>
    %17 = vector.extract_strided_slice %1 {offsets = [0, 0], sizes = [1, 64], strides = [1, 1]} : vector<128x64xf32> to vector<1x64xf32>
    %18 = tpu.concatenate %16, %17 in 0 : vector<127x64xf32>, vector<1x64xf32> -> vector<128x64xf32>
    %cst_3 = arith.constant 0.000000e+00 : f32
    %19 = vector.shape_cast %15 : vector<128x1xi1> to vector<128x1xi1>
    %20 = vector.broadcast %19 : vector<128x1xi1> to vector<128x64xi1>
    %21 = vector.broadcast %cst_3 : f32 to vector<128x64xf32>
    %22 = arith.select %20, %18, %21 : vector<128x64xi1>, vector<128x64xf32>
    %23 = tpu.concatenate %13, %1, %22 in 1 : vector<128x64xf32>, vector<128x64xf32>, vector<128x64xf32> -> vector<128x192xf32>
    %24 = arith.truncf %23 : vector<128x192xf32> to vector<128x192xbf16>
    %c0_4 = arith.constant 0 : index
    %c0_5 = arith.constant 0 : index
    %25 = vector.load %arg2[%c0_4, %c0_5] : memref<192x256xbf16, #tpu.memory_space<vmem>>, vector<192x256xbf16>
    %cst_6 = arith.constant dense<0.000000e+00> : vector<128x256xf32>
    %26 = tpu.matmul %24, %25, %cst_6 {dimension_numbers = #tpu.dot_dimension_numbers<[1], [0], [0], [1], [0, 0, 1, 1], [], []>} : vector<128x192xbf16>, vector<192x256xbf16>, vector<128x256xf32> -> vector<128x256xf32>
    %c0_7 = arith.constant 0 : index
    %c0_8 = arith.constant 0 : index
    %27 = vector.load %arg5[%c0_7, %c0_8] : memref<64x64xf32, #tpu.memory_space<vmem>>, vector<64x64xf32>
    %28 = vector.extract_strided_slice %26 {offsets = [0, 0], sizes = [64, 256], strides = [1, 1]} : vector<128x256xf32> to vector<64x256xf32>
    %cst_9 = arith.constant dense<0.000000e+00> : vector<64x256xf32>
    %29 = tpu.matmul %27, %28, %cst_9 {dimension_numbers = #tpu.dot_dimension_numbers<[1], [0], [0], [1], [0, 0, 1, 1], [], []>} : vector<64x64xf32>, vector<64x256xf32>, vector<64x256xf32> -> vector<64x256xf32>
    %30 = vector.extract_strided_slice %29 {offsets = [0, 0], sizes = [32, 256], strides = [1, 1]} : vector<64x256xf32> to vector<32x256xf32>
    %31 = vector.extract_strided_slice %29 {offsets = [32, 0], sizes = [32, 256], strides = [1, 1]} : vector<64x256xf32> to vector<32x256xf32>
    %32 = vector.extract_strided_slice %26 {offsets = [64, 0], sizes = [64, 256], strides = [1, 1]} : vector<128x256xf32> to vector<64x256xf32>
    %cst_10 = arith.constant dense<0.000000e+00> : vector<64x256xf32>
    %33 = tpu.matmul %27, %32, %cst_10 {dimension_numbers = #tpu.dot_dimension_numbers<[1], [0], [0], [1], [0, 0, 1, 1], [], []>} : vector<64x64xf32>, vector<64x256xf32>, vector<64x256xf32> -> vector<64x256xf32>
    %34 = vector.extract_strided_slice %33 {offsets = [0, 0], sizes = [32, 256], strides = [1, 1]} : vector<64x256xf32> to vector<32x256xf32>
    %35 = vector.extract_strided_slice %33 {offsets = [32, 0], sizes = [32, 256], strides = [1, 1]} : vector<64x256xf32> to vector<32x256xf32>
    %36 = tpu.concatenate %30, %34 in 0 : vector<32x256xf32>, vector<32x256xf32> -> vector<64x256xf32>
    %37 = tpu.concatenate %31, %35 in 0 : vector<32x256xf32>, vector<32x256xf32> -> vector<64x256xf32>
    %38 = arith.maximumf %36, %37 : vector<64x256xf32>
    %39 = vector.extract_strided_slice %38 {offsets = [0, 4], sizes = [64, 252], strides = [1, 1]} : vector<64x256xf32> to vector<64x252xf32>
    %40 = vector.extract_strided_slice %38 {offsets = [0, 0], sizes = [64, 4], strides = [1, 1]} : vector<64x256xf32> to vector<64x4xf32>
    %41 = tpu.concatenate %39, %40 in 1 : vector<64x252xf32>, vector<64x4xf32> -> vector<64x256xf32>
    %42 = arith.maximumf %38, %41 : vector<64x256xf32>
    %43 = arith.truncf %42 : vector<64x256xf32> to vector<64x256xbf16>
    %c0_11 = arith.constant 0 : index
    %c0_12 = arith.constant 0 : index
    %44 = vector.load %arg3[%c0_11, %c0_12] : memref<256x128xbf16, #tpu.memory_space<vmem>>, vector<256x128xbf16>
    %cst_13 = arith.constant dense<0.000000e+00> : vector<64x128xf32>
    %45 = tpu.matmul %43, %44, %cst_13 {dimension_numbers = #tpu.dot_dimension_numbers<[1], [0], [0], [1], [0, 0, 1, 1], [], []>} : vector<64x256xbf16>, vector<256x128xbf16>, vector<64x128xf32> -> vector<64x128xf32>
    %c0_14 = arith.constant 0 : index
    %c0_15 = arith.constant 0 : index
    %46 = vector.load %arg4[%c0_14, %c0_15] : memref<1x128xf32, #tpu.memory_space<vmem>>, vector<1x128xf32>
    %47 = vector.broadcast %46 : vector<1x128xf32> to vector<64x128xf32>
    %48 = arith.addf %45, %47 : vector<64x128xf32>
    %cst_16 = arith.constant 0.000000e+00 : f32
    %49 = vector.broadcast %cst_16 : f32 to vector<64x128xf32>
    %50 = arith.maximumf %48, %49 : vector<64x128xf32>
    %51 = tpu.iota {dimensions = array<i32: 0>} : vector<64x1xi32>
    %c31_i32 = arith.constant 31 : i32
    %52 = vector.broadcast %c31_i32 : i32 to vector<64x1xi32>
    %53 = arith.andi %51, %52 : vector<64x1xi32>
    %c0_i32_17 = arith.constant 0 : i32
    %54 = vector.broadcast %c0_i32_17 : i32 to vector<64x1xi32>
    %55 = arith.cmpi ne, %53, %54 : vector<64x1xi32>
    %56 = vector.extract_strided_slice %50 {offsets = [63, 0], sizes = [1, 128], strides = [1, 1]} : vector<64x128xf32> to vector<1x128xf32>
    %57 = vector.extract_strided_slice %50 {offsets = [0, 0], sizes = [63, 128], strides = [1, 1]} : vector<64x128xf32> to vector<63x128xf32>
    %58 = tpu.concatenate %56, %57 in 0 : vector<1x128xf32>, vector<63x128xf32> -> vector<64x128xf32>
    %cst_18 = arith.constant 0.000000e+00 : f32
    %59 = vector.shape_cast %55 : vector<64x1xi1> to vector<64x1xi1>
    %60 = vector.broadcast %59 : vector<64x1xi1> to vector<64x128xi1>
    %61 = vector.broadcast %cst_18 : f32 to vector<64x128xf32>
    %62 = arith.select %60, %58, %61 : vector<64x128xi1>, vector<64x128xf32>
    %c31_i32_19 = arith.constant 31 : i32
    %63 = vector.broadcast %c31_i32_19 : i32 to vector<64x1xi32>
    %64 = arith.cmpi ne, %53, %63 : vector<64x1xi32>
    %65 = vector.extract_strided_slice %50 {offsets = [1, 0], sizes = [63, 128], strides = [1, 1]} : vector<64x128xf32> to vector<63x128xf32>
    %66 = vector.extract_strided_slice %50 {offsets = [0, 0], sizes = [1, 128], strides = [1, 1]} : vector<64x128xf32> to vector<1x128xf32>
    %67 = tpu.concatenate %65, %66 in 0 : vector<63x128xf32>, vector<1x128xf32> -> vector<64x128xf32>
    %cst_20 = arith.constant 0.000000e+00 : f32
    %68 = vector.shape_cast %64 : vector<64x1xi1> to vector<64x1xi1>
    %69 = vector.broadcast %68 : vector<64x1xi1> to vector<64x128xi1>
    %70 = vector.broadcast %cst_20 : f32 to vector<64x128xf32>
    %71 = arith.select %69, %67, %70 : vector<64x128xi1>, vector<64x128xf32>
    %72 = tpu.concatenate %62, %50, %71 in 1 : vector<64x128xf32>, vector<64x128xf32>, vector<64x128xf32> -> vector<64x384xf32>
    %73 = arith.truncf %72 : vector<64x384xf32> to vector<64x384xbf16>
    %c0_21 = arith.constant 0 : index
    %c0_22 = arith.constant 0 : index
    %74 = vector.load %arg6[%c0_21, %c0_22] : memref<384x256xbf16, #tpu.memory_space<vmem>>, vector<384x256xbf16>
    %cst_23 = arith.constant dense<0.000000e+00> : vector<64x256xf32>
    %75 = tpu.matmul %73, %74, %cst_23 {dimension_numbers = #tpu.dot_dimension_numbers<[1], [0], [0], [1], [0, 0, 1, 1], [], []>} : vector<64x384xbf16>, vector<384x256xbf16>, vector<64x256xf32> -> vector<64x256xf32>
    %c0_24 = arith.constant 0 : index
    %c0_25 = arith.constant 0 : index
    %76 = vector.load %arg9[%c0_24, %c0_25] : memref<32x32xf32, #tpu.memory_space<vmem>>, vector<32x32xf32>
    %77 = vector.extract_strided_slice %75 {offsets = [0, 0], sizes = [32, 256], strides = [1, 1]} : vector<64x256xf32> to vector<32x256xf32>
    %cst_26 = arith.constant dense<0.000000e+00> : vector<32x256xf32>
    %78 = tpu.matmul %76, %77, %cst_26 {dimension_numbers = #tpu.dot_dimension_numbers<[1], [0], [0], [1], [0, 0, 1, 1], [], []>} : vector<32x32xf32>, vector<32x256xf32>, vector<32x256xf32> -> vector<32x256xf32>
    %79 = vector.extract_strided_slice %78 {offsets = [0, 0], sizes = [16, 256], strides = [1, 1]} : vector<32x256xf32> to vector<16x256xf32>
    %80 = vector.extract_strided_slice %78 {offsets = [16, 0], sizes = [16, 256], strides = [1, 1]} : vector<32x256xf32> to vector<16x256xf32>
    %81 = vector.extract_strided_slice %75 {offsets = [32, 0], sizes = [32, 256], strides = [1, 1]} : vector<64x256xf32> to vector<32x256xf32>
    %cst_27 = arith.constant dense<0.000000e+00> : vector<32x256xf32>
    %82 = tpu.matmul %76, %81, %cst_27 {dimension_numbers = #tpu.dot_dimension_numbers<[1], [0], [0], [1], [0, 0, 1, 1], [], []>} : vector<32x32xf32>, vector<32x256xf32>, vector<32x256xf32> -> vector<32x256xf32>
    %83 = vector.extract_strided_slice %82 {offsets = [0, 0], sizes = [16, 256], strides = [1, 1]} : vector<32x256xf32> to vector<16x256xf32>
    %84 = vector.extract_strided_slice %82 {offsets = [16, 0], sizes = [16, 256], strides = [1, 1]} : vector<32x256xf32> to vector<16x256xf32>
    %85 = tpu.concatenate %79, %83 in 0 : vector<16x256xf32>, vector<16x256xf32> -> vector<32x256xf32>
    %86 = tpu.concatenate %80, %84 in 0 : vector<16x256xf32>, vector<16x256xf32> -> vector<32x256xf32>
    %87 = arith.maximumf %85, %86 : vector<32x256xf32>
    %88 = vector.extract_strided_slice %87 {offsets = [0, 8], sizes = [32, 248], strides = [1, 1]} : vector<32x256xf32> to vector<32x248xf32>
    %89 = vector.extract_strided_slice %87 {offsets = [0, 0], sizes = [32, 8], strides = [1, 1]} : vector<32x256xf32> to vector<32x8xf32>
    %90 = tpu.concatenate %88, %89 in 1 : vector<32x248xf32>, vector<32x8xf32> -> vector<32x256xf32>
    %91 = arith.maximumf %87, %90 : vector<32x256xf32>
    %92 = arith.truncf %91 : vector<32x256xf32> to vector<32x256xbf16>
    %c0_28 = arith.constant 0 : index
    %c0_29 = arith.constant 0 : index
    %93 = vector.load %arg7[%c0_28, %c0_29] : memref<256x128xbf16, #tpu.memory_space<vmem>>, vector<256x128xbf16>
    %cst_30 = arith.constant dense<0.000000e+00> : vector<32x128xf32>
    %94 = tpu.matmul %92, %93, %cst_30 {dimension_numbers = #tpu.dot_dimension_numbers<[1], [0], [0], [1], [0, 0, 1, 1], [], []>} : vector<32x256xbf16>, vector<256x128xbf16>, vector<32x128xf32> -> vector<32x128xf32>
    %c0_31 = arith.constant 0 : index
    %c0_32 = arith.constant 0 : index
    %95 = vector.load %arg8[%c0_31, %c0_32] : memref<1x128xf32, #tpu.memory_space<vmem>>, vector<1x128xf32>
    %96 = vector.broadcast %95 : vector<1x128xf32> to vector<32x128xf32>
    %97 = arith.addf %94, %96 : vector<32x128xf32>
    %cst_33 = arith.constant 0.000000e+00 : f32
    %98 = vector.broadcast %cst_33 : f32 to vector<32x128xf32>
    %99 = arith.maximumf %97, %98 : vector<32x128xf32>
    %100 = tpu.iota {dimensions = array<i32: 0>} : vector<32x1xi32>
    %c15_i32 = arith.constant 15 : i32
    %101 = vector.broadcast %c15_i32 : i32 to vector<32x1xi32>
    %102 = arith.andi %100, %101 : vector<32x1xi32>
    %c0_i32_34 = arith.constant 0 : i32
    %103 = vector.broadcast %c0_i32_34 : i32 to vector<32x1xi32>
    %104 = arith.cmpi ne, %102, %103 : vector<32x1xi32>
    %105 = vector.extract_strided_slice %99 {offsets = [31, 0], sizes = [1, 128], strides = [1, 1]} : vector<32x128xf32> to vector<1x128xf32>
    %106 = vector.extract_strided_slice %99 {offsets = [0, 0], sizes = [31, 128], strides = [1, 1]} : vector<32x128xf32> to vector<31x128xf32>
    %107 = tpu.concatenate %105, %106 in 0 : vector<1x128xf32>, vector<31x128xf32> -> vector<32x128xf32>
    %cst_35 = arith.constant 0.000000e+00 : f32
    %108 = vector.shape_cast %104 : vector<32x1xi1> to vector<32x1xi1>
    %109 = vector.broadcast %108 : vector<32x1xi1> to vector<32x128xi1>
    %110 = vector.broadcast %cst_35 : f32 to vector<32x128xf32>
    %111 = arith.select %109, %107, %110 : vector<32x128xi1>, vector<32x128xf32>
    %c15_i32_36 = arith.constant 15 : i32
    %112 = vector.broadcast %c15_i32_36 : i32 to vector<32x1xi32>
    %113 = arith.cmpi ne, %102, %112 : vector<32x1xi32>
    %114 = vector.extract_strided_slice %99 {offsets = [1, 0], sizes = [31, 128], strides = [1, 1]} : vector<32x128xf32> to vector<31x128xf32>
    %115 = vector.extract_strided_slice %99 {offsets = [0, 0], sizes = [1, 128], strides = [1, 1]} : vector<32x128xf32> to vector<1x128xf32>
    %116 = tpu.concatenate %114, %115 in 0 : vector<31x128xf32>, vector<1x128xf32> -> vector<32x128xf32>
    %cst_37 = arith.constant 0.000000e+00 : f32
    %117 = vector.shape_cast %113 : vector<32x1xi1> to vector<32x1xi1>
    %118 = vector.broadcast %117 : vector<32x1xi1> to vector<32x128xi1>
    %119 = vector.broadcast %cst_37 : f32 to vector<32x128xf32>
    %120 = arith.select %118, %116, %119 : vector<32x128xi1>, vector<32x128xf32>
    %121 = tpu.concatenate %111, %99, %120 in 1 : vector<32x128xf32>, vector<32x128xf32>, vector<32x128xf32> -> vector<32x384xf32>
    %122 = arith.truncf %121 : vector<32x384xf32> to vector<32x384xbf16>
    %c0_38 = arith.constant 0 : index
    %c0_39 = arith.constant 0 : index
    %123 = vector.load %arg10[%c0_38, %c0_39] : memref<384x256xbf16, #tpu.memory_space<vmem>>, vector<384x256xbf16>
    %cst_40 = arith.constant dense<0.000000e+00> : vector<32x256xf32>
    %124 = tpu.matmul %122, %123, %cst_40 {dimension_numbers = #tpu.dot_dimension_numbers<[1], [0], [0], [1], [0, 0, 1, 1], [], []>} : vector<32x384xbf16>, vector<384x256xbf16>, vector<32x256xf32> -> vector<32x256xf32>
    %c0_41 = arith.constant 0 : index
    %c0_42 = arith.constant 0 : index
    %125 = vector.load %arg13[%c0_41, %c0_42] : memref<16x16xf32, #tpu.memory_space<vmem>>, vector<16x16xf32>
    %126 = vector.extract_strided_slice %124 {offsets = [0, 0], sizes = [16, 256], strides = [1, 1]} : vector<32x256xf32> to vector<16x256xf32>
    %cst_43 = arith.constant dense<0.000000e+00> : vector<16x256xf32>
    %127 = tpu.matmul %125, %126, %cst_43 {dimension_numbers = #tpu.dot_dimension_numbers<[1], [0], [0], [1], [0, 0, 1, 1], [], []>} : vector<16x16xf32>, vector<16x256xf32>, vector<16x256xf32> -> vector<16x256xf32>
    %128 = vector.extract_strided_slice %127 {offsets = [0, 0], sizes = [8, 256], strides = [1, 1]} : vector<16x256xf32> to vector<8x256xf32>
    %129 = vector.extract_strided_slice %127 {offsets = [8, 0], sizes = [8, 256], strides = [1, 1]} : vector<16x256xf32> to vector<8x256xf32>
    %130 = vector.extract_strided_slice %124 {offsets = [16, 0], sizes = [16, 256], strides = [1, 1]} : vector<32x256xf32> to vector<16x256xf32>
    %cst_44 = arith.constant dense<0.000000e+00> : vector<16x256xf32>
    %131 = tpu.matmul %125, %130, %cst_44 {dimension_numbers = #tpu.dot_dimension_numbers<[1], [0], [0], [1], [0, 0, 1, 1], [], []>} : vector<16x16xf32>, vector<16x256xf32>, vector<16x256xf32> -> vector<16x256xf32>
    %132 = vector.extract_strided_slice %131 {offsets = [0, 0], sizes = [8, 256], strides = [1, 1]} : vector<16x256xf32> to vector<8x256xf32>
    %133 = vector.extract_strided_slice %131 {offsets = [8, 0], sizes = [8, 256], strides = [1, 1]} : vector<16x256xf32> to vector<8x256xf32>
    %134 = tpu.concatenate %128, %132 in 0 : vector<8x256xf32>, vector<8x256xf32> -> vector<16x256xf32>
    %135 = tpu.concatenate %129, %133 in 0 : vector<8x256xf32>, vector<8x256xf32> -> vector<16x256xf32>
    %136 = arith.maximumf %134, %135 : vector<16x256xf32>
    %137 = vector.extract_strided_slice %136 {offsets = [0, 16], sizes = [16, 240], strides = [1, 1]} : vector<16x256xf32> to vector<16x240xf32>
    %138 = vector.extract_strided_slice %136 {offsets = [0, 0], sizes = [16, 16], strides = [1, 1]} : vector<16x256xf32> to vector<16x16xf32>
    %139 = tpu.concatenate %137, %138 in 1 : vector<16x240xf32>, vector<16x16xf32> -> vector<16x256xf32>
    %140 = arith.maximumf %136, %139 : vector<16x256xf32>
    %141 = arith.truncf %140 : vector<16x256xf32> to vector<16x256xbf16>
    %c0_45 = arith.constant 0 : index
    %c0_46 = arith.constant 0 : index
    %142 = vector.load %arg11[%c0_45, %c0_46] : memref<256x128xbf16, #tpu.memory_space<vmem>>, vector<256x128xbf16>
    %cst_47 = arith.constant dense<0.000000e+00> : vector<16x128xf32>
    %143 = tpu.matmul %141, %142, %cst_47 {dimension_numbers = #tpu.dot_dimension_numbers<[1], [0], [0], [1], [0, 0, 1, 1], [], []>} : vector<16x256xbf16>, vector<256x128xbf16>, vector<16x128xf32> -> vector<16x128xf32>
    %c0_48 = arith.constant 0 : index
    %c0_49 = arith.constant 0 : index
    %144 = vector.load %arg12[%c0_48, %c0_49] : memref<1x128xf32, #tpu.memory_space<vmem>>, vector<1x128xf32>
    %145 = vector.broadcast %144 : vector<1x128xf32> to vector<16x128xf32>
    %146 = arith.addf %143, %145 : vector<16x128xf32>
    %cst_50 = arith.constant 0.000000e+00 : f32
    %147 = vector.broadcast %cst_50 : f32 to vector<16x128xf32>
    %148 = arith.maximumf %146, %147 : vector<16x128xf32>
    %149 = tpu.iota {dimensions = array<i32: 0>} : vector<16x1xi32>
    %c7_i32 = arith.constant 7 : i32
    %150 = vector.broadcast %c7_i32 : i32 to vector<16x1xi32>
    %151 = arith.andi %149, %150 : vector<16x1xi32>
    %c0_i32_51 = arith.constant 0 : i32
    %152 = vector.broadcast %c0_i32_51 : i32 to vector<16x1xi32>
    %153 = arith.cmpi ne, %151, %152 : vector<16x1xi32>
    %154 = vector.extract_strided_slice %148 {offsets = [15, 0], sizes = [1, 128], strides = [1, 1]} : vector<16x128xf32> to vector<1x128xf32>
    %155 = vector.extract_strided_slice %148 {offsets = [0, 0], sizes = [15, 128], strides = [1, 1]} : vector<16x128xf32> to vector<15x128xf32>
    %156 = tpu.concatenate %154, %155 in 0 : vector<1x128xf32>, vector<15x128xf32> -> vector<16x128xf32>
    %cst_52 = arith.constant 0.000000e+00 : f32
    %157 = vector.shape_cast %153 : vector<16x1xi1> to vector<16x1xi1>
    %158 = vector.broadcast %157 : vector<16x1xi1> to vector<16x128xi1>
    %159 = vector.broadcast %cst_52 : f32 to vector<16x128xf32>
    %160 = arith.select %158, %156, %159 : vector<16x128xi1>, vector<16x128xf32>
    %c7_i32_53 = arith.constant 7 : i32
    %161 = vector.broadcast %c7_i32_53 : i32 to vector<16x1xi32>
    %162 = arith.cmpi ne, %151, %161 : vector<16x1xi32>
    %163 = vector.extract_strided_slice %148 {offsets = [1, 0], sizes = [15, 128], strides = [1, 1]} : vector<16x128xf32> to vector<15x128xf32>
    %164 = vector.extract_strided_slice %148 {offsets = [0, 0], sizes = [1, 128], strides = [1, 1]} : vector<16x128xf32> to vector<1x128xf32>
    %165 = tpu.concatenate %163, %164 in 0 : vector<15x128xf32>, vector<1x128xf32> -> vector<16x128xf32>
    %cst_54 = arith.constant 0.000000e+00 : f32
    %166 = vector.shape_cast %162 : vector<16x1xi1> to vector<16x1xi1>
    %167 = vector.broadcast %166 : vector<16x1xi1> to vector<16x128xi1>
    %168 = vector.broadcast %cst_54 : f32 to vector<16x128xf32>
    %169 = arith.select %167, %165, %168 : vector<16x128xi1>, vector<16x128xf32>
    %170 = tpu.concatenate %160, %148, %169 in 1 : vector<16x128xf32>, vector<16x128xf32>, vector<16x128xf32> -> vector<16x384xf32>
    %171 = arith.truncf %170 : vector<16x384xf32> to vector<16x384xbf16>
    %c0_55 = arith.constant 0 : index
    %c0_56 = arith.constant 0 : index
    %172 = vector.load %arg14[%c0_55, %c0_56] : memref<384x256xbf16, #tpu.memory_space<vmem>>, vector<384x256xbf16>
    %cst_57 = arith.constant dense<0.000000e+00> : vector<16x256xf32>
    %173 = tpu.matmul %171, %172, %cst_57 {dimension_numbers = #tpu.dot_dimension_numbers<[1], [0], [0], [1], [0, 0, 1, 1], [], []>} : vector<16x384xbf16>, vector<384x256xbf16>, vector<16x256xf32> -> vector<16x256xf32>
    %c0_58 = arith.constant 0 : index
    %c0_59 = arith.constant 0 : index
    %174 = vector.load %arg17[%c0_58, %c0_59] : memref<8x8xf32, #tpu.memory_space<vmem>>, vector<8x8xf32>
    %175 = vector.extract_strided_slice %173 {offsets = [0, 0], sizes = [8, 256], strides = [1, 1]} : vector<16x256xf32> to vector<8x256xf32>
    %cst_60 = arith.constant dense<0.000000e+00> : vector<8x256xf32>
    %176 = tpu.matmul %174, %175, %cst_60 {dimension_numbers = #tpu.dot_dimension_numbers<[1], [0], [0], [1], [0, 0, 1, 1], [], []>} : vector<8x8xf32>, vector<8x256xf32>, vector<8x256xf32> -> vector<8x256xf32>
    %177 = vector.extract_strided_slice %176 {offsets = [0, 0], sizes = [4, 256], strides = [1, 1]} : vector<8x256xf32> to vector<4x256xf32>
    %178 = vector.extract_strided_slice %176 {offsets = [4, 0], sizes = [4, 256], strides = [1, 1]} : vector<8x256xf32> to vector<4x256xf32>
    %179 = vector.extract_strided_slice %173 {offsets = [8, 0], sizes = [8, 256], strides = [1, 1]} : vector<16x256xf32> to vector<8x256xf32>
    %cst_61 = arith.constant dense<0.000000e+00> : vector<8x256xf32>
    %180 = tpu.matmul %174, %179, %cst_61 {dimension_numbers = #tpu.dot_dimension_numbers<[1], [0], [0], [1], [0, 0, 1, 1], [], []>} : vector<8x8xf32>, vector<8x256xf32>, vector<8x256xf32> -> vector<8x256xf32>
    %181 = vector.extract_strided_slice %180 {offsets = [0, 0], sizes = [4, 256], strides = [1, 1]} : vector<8x256xf32> to vector<4x256xf32>
    %182 = vector.extract_strided_slice %180 {offsets = [4, 0], sizes = [4, 256], strides = [1, 1]} : vector<8x256xf32> to vector<4x256xf32>
    %183 = tpu.concatenate %177, %181 in 0 : vector<4x256xf32>, vector<4x256xf32> -> vector<8x256xf32>
    %184 = tpu.concatenate %178, %182 in 0 : vector<4x256xf32>, vector<4x256xf32> -> vector<8x256xf32>
    %185 = arith.maximumf %183, %184 : vector<8x256xf32>
    %186 = vector.extract_strided_slice %185 {offsets = [0, 32], sizes = [8, 224], strides = [1, 1]} : vector<8x256xf32> to vector<8x224xf32>
    %187 = vector.extract_strided_slice %185 {offsets = [0, 0], sizes = [8, 32], strides = [1, 1]} : vector<8x256xf32> to vector<8x32xf32>
    %188 = tpu.concatenate %186, %187 in 1 : vector<8x224xf32>, vector<8x32xf32> -> vector<8x256xf32>
    %189 = arith.maximumf %185, %188 : vector<8x256xf32>
    %190 = arith.truncf %189 : vector<8x256xf32> to vector<8x256xbf16>
    %c0_62 = arith.constant 0 : index
    %c0_63 = arith.constant 0 : index
    %191 = vector.load %arg15[%c0_62, %c0_63] : memref<256x128xbf16, #tpu.memory_space<vmem>>, vector<256x128xbf16>
    %cst_64 = arith.constant dense<0.000000e+00> : vector<8x128xf32>
    %192 = tpu.matmul %190, %191, %cst_64 {dimension_numbers = #tpu.dot_dimension_numbers<[1], [0], [0], [1], [0, 0, 1, 1], [], []>} : vector<8x256xbf16>, vector<256x128xbf16>, vector<8x128xf32> -> vector<8x128xf32>
    %c0_65 = arith.constant 0 : index
    %c0_66 = arith.constant 0 : index
    %193 = vector.load %arg16[%c0_65, %c0_66] : memref<1x128xf32, #tpu.memory_space<vmem>>, vector<1x128xf32>
    %194 = vector.broadcast %193 : vector<1x128xf32> to vector<8x128xf32>
    %195 = arith.addf %192, %194 : vector<8x128xf32>
    %cst_67 = arith.constant 0.000000e+00 : f32
    %196 = vector.broadcast %cst_67 : f32 to vector<8x128xf32>
    %197 = arith.maximumf %195, %196 : vector<8x128xf32>
    %198 = tpu.iota {dimensions = array<i32: 0>} : vector<2x8xi32>
    %199 = tpu.iota {dimensions = array<i32: 1>} : vector<2x8xi32>
    %c4_i32 = arith.constant 4 : i32
    %200 = vector.broadcast %c4_i32 : i32 to vector<2x8xi32>
    %201 = arith.muli %200, %198 : vector<2x8xi32>
    %c0_i32_68 = arith.constant 0 : i32
    %202 = vector.broadcast %c0_i32_68 : i32 to vector<2x8xi32>
    %203 = arith.addi %201, %202 : vector<2x8xi32>
    %204 = arith.cmpi eq, %199, %203 : vector<2x8xi32>
    %205 = arith.extui %204 : vector<2x8xi1> to vector<2x8xi32>
    %206 = arith.sitofp %205 : vector<2x8xi32> to vector<2x8xf32>
    %cst_69 = arith.constant dense<0.000000e+00> : vector<2x128xf32>
    %207 = tpu.matmul %206, %197, %cst_69 {dimension_numbers = #tpu.dot_dimension_numbers<[1], [0], [0], [1], [0, 0, 1, 1], [], []>} : vector<2x8xf32>, vector<8x128xf32>, vector<2x128xf32> -> vector<2x128xf32>
    %c4_i32_70 = arith.constant 4 : i32
    %208 = vector.broadcast %c4_i32_70 : i32 to vector<2x8xi32>
    %209 = arith.muli %208, %198 : vector<2x8xi32>
    %c1_i32 = arith.constant 1 : i32
    %210 = vector.broadcast %c1_i32 : i32 to vector<2x8xi32>
    %211 = arith.addi %209, %210 : vector<2x8xi32>
    %212 = arith.cmpi eq, %199, %211 : vector<2x8xi32>
    %213 = arith.extui %212 : vector<2x8xi1> to vector<2x8xi32>
    %214 = arith.sitofp %213 : vector<2x8xi32> to vector<2x8xf32>
    %cst_71 = arith.constant dense<0.000000e+00> : vector<2x128xf32>
    %215 = tpu.matmul %214, %197, %cst_71 {dimension_numbers = #tpu.dot_dimension_numbers<[1], [0], [0], [1], [0, 0, 1, 1], [], []>} : vector<2x8xf32>, vector<8x128xf32>, vector<2x128xf32> -> vector<2x128xf32>
    %c4_i32_72 = arith.constant 4 : i32
    %216 = vector.broadcast %c4_i32_72 : i32 to vector<2x8xi32>
    %217 = arith.muli %216, %198 : vector<2x8xi32>
    %c2_i32 = arith.constant 2 : i32
    %218 = vector.broadcast %c2_i32 : i32 to vector<2x8xi32>
    %219 = arith.addi %217, %218 : vector<2x8xi32>
    %220 = arith.cmpi eq, %199, %219 : vector<2x8xi32>
    %221 = arith.extui %220 : vector<2x8xi1> to vector<2x8xi32>
    %222 = arith.sitofp %221 : vector<2x8xi32> to vector<2x8xf32>
    %cst_73 = arith.constant dense<0.000000e+00> : vector<2x128xf32>
    %223 = tpu.matmul %222, %197, %cst_73 {dimension_numbers = #tpu.dot_dimension_numbers<[1], [0], [0], [1], [0, 0, 1, 1], [], []>} : vector<2x8xf32>, vector<8x128xf32>, vector<2x128xf32> -> vector<2x128xf32>
    %c4_i32_74 = arith.constant 4 : i32
    %224 = vector.broadcast %c4_i32_74 : i32 to vector<2x8xi32>
    %225 = arith.muli %224, %198 : vector<2x8xi32>
    %c3_i32 = arith.constant 3 : i32
    %226 = vector.broadcast %c3_i32 : i32 to vector<2x8xi32>
    %227 = arith.addi %225, %226 : vector<2x8xi32>
    %228 = arith.cmpi eq, %199, %227 : vector<2x8xi32>
    %229 = arith.extui %228 : vector<2x8xi1> to vector<2x8xi32>
    %230 = arith.sitofp %229 : vector<2x8xi32> to vector<2x8xf32>
    %cst_75 = arith.constant dense<0.000000e+00> : vector<2x128xf32>
    %231 = tpu.matmul %230, %197, %cst_75 {dimension_numbers = #tpu.dot_dimension_numbers<[1], [0], [0], [1], [0, 0, 1, 1], [], []>} : vector<2x8xf32>, vector<8x128xf32>, vector<2x128xf32> -> vector<2x128xf32>
    %232 = tpu.concatenate %207, %215, %223, %231 in 1 : vector<2x128xf32>, vector<2x128xf32>, vector<2x128xf32>, vector<2x128xf32> -> vector<2x512xf32>
    %c0_76 = arith.constant 0 : index
    %c0_77 = arith.constant 0 : index
    %233 = vector.load %arg18[%c0_76, %c0_77] : memref<512x40xf32, #tpu.memory_space<vmem>>, vector<512x40xf32>
    %cst_78 = arith.constant dense<0.000000e+00> : vector<2x40xf32>
    %234 = tpu.matmul %232, %233, %cst_78 {dimension_numbers = #tpu.dot_dimension_numbers<[1], [0], [0], [1], [0, 0, 1, 1], [], []>} : vector<2x512xf32>, vector<512x40xf32>, vector<2x40xf32> -> vector<2x40xf32>
    %c0_79 = arith.constant 0 : index
    %c0_80 = arith.constant 0 : index
    %235 = vector.load %arg19[%c0_79, %c0_80] : memref<1x40xf32, #tpu.memory_space<vmem>>, vector<1x40xf32>
    %236 = vector.broadcast %235 : vector<1x40xf32> to vector<2x40xf32>
    %237 = arith.addf %234, %236 : vector<2x40xf32>
    %c0_81 = arith.constant 0 : index
    %c0_82 = arith.constant 0 : index
    %238 = vector.load %arg20[%c0_81, %c0_82] : memref<40x8xf32, #tpu.memory_space<vmem>>, vector<40x8xf32>
    %cst_83 = arith.constant dense<0.000000e+00> : vector<2x8xf32>
    %239 = tpu.matmul %237, %238, %cst_83 {dimension_numbers = #tpu.dot_dimension_numbers<[1], [0], [0], [1], [0, 0, 1, 1], [], []>} : vector<2x40xf32>, vector<40x8xf32>, vector<2x8xf32> -> vector<2x8xf32>
    %c0_84 = arith.constant 0 : index
    %c0_85 = arith.constant 0 : index
    %240 = vector.load %arg21[%c0_84, %c0_85] : memref<1x8xf32, #tpu.memory_space<vmem>>, vector<1x8xf32>
    %241 = vector.broadcast %240 : vector<1x8xf32> to vector<2x8xf32>
    %242 = arith.addf %239, %241 : vector<2x8xf32>
    %cst_86 = arith.constant dense<0xFF800000> : vector<2xf32>
    %243 = vector.multi_reduction <maximumf>, %242, %cst_86 [1] : vector<2x8xf32> to vector<2xf32>
    %244 = vector.shape_cast %243 : vector<2xf32> to vector<2x1xf32>
    %245 = vector.broadcast %244 : vector<2x1xf32> to vector<2x8xf32>
    %246 = arith.subf %242, %245 : vector<2x8xf32>
    %247 = math.exp %246 : vector<2x8xf32>
    %cst_87 = arith.constant dense<0.000000e+00> : vector<2xf32>
    %248 = vector.multi_reduction <add>, %247, %cst_87 [1] : vector<2x8xf32> to vector<2xf32>
    %249 = vector.shape_cast %248 : vector<2xf32> to vector<2x1xf32>
    %250 = math.log %249 : vector<2x1xf32>
    %251 = vector.broadcast %250 : vector<2x1xf32> to vector<2x8xf32>
    %252 = arith.subf %246, %251 : vector<2x8xf32>
    %c0_88 = arith.constant 0 : index
    %c0_89 = arith.constant 0 : index
    %c0_90 = arith.constant 0 : index
    %253 = vector.load %arg22[%c0_88, %c0_89, %c0_90] : memref<1x2x8xf32, #tpu.memory_space<vmem>>, vector<1x2x8xf32>
    %254 = vector.shape_cast %253 : vector<1x2x8xf32> to vector<2x8xf32>
    %255 = vector.shape_cast %252 : vector<2x8xf32> to vector<1x2x8xf32>
    tpu.vector_store %arg22[%c0_88, %c0_89, %c0_90], %255 {strides = array<i32>} : memref<1x2x8xf32, #tpu.memory_space<vmem>>, vector<1x2x8xf32>,
    return
  }
  func.func @transform_0(%arg0: i32) -> (i32, i32, i32) {
    %c0_i32 = arith.constant 0 : i32
    %c0_i32_0 = arith.constant 0 : i32
    %c0_i32_1 = arith.constant 0 : i32
    return %arg0, %c0_i32, %c0_i32_0 : i32, i32, i32
  }
  func.func @transform_1(%arg0: i32) -> (i32, i32) {
    %c0_i32 = arith.constant 0 : i32
    %c0_i32_0 = arith.constant 0 : i32
    %c0_i32_1 = arith.constant 0 : i32
    return %c0_i32, %c0_i32_0 : i32, i32
  }
  func.func @transform_2(%arg0: i32) -> (i32, i32) {
    %c0_i32 = arith.constant 0 : i32
    %c0_i32_0 = arith.constant 0 : i32
    %c0_i32_1 = arith.constant 0 : i32
    return %c0_i32, %c0_i32_0 : i32, i32
  }
  func.func @transform_3(%arg0: i32) -> (i32, i32) {
    %c0_i32 = arith.constant 0 : i32
    %c0_i32_0 = arith.constant 0 : i32
    %c0_i32_1 = arith.constant 0 : i32
    return %c0_i32, %c0_i32_0 : i32, i32
  }
  func.func @transform_4(%arg0: i32) -> (i32, i32) {
    %c0_i32 = arith.constant 0 : i32
    %c0_i32_0 = arith.constant 0 : i32
    %c0_i32_1 = arith.constant 0 : i32
    return %c0_i32, %c0_i32_0 : i32, i32
  }
  func.func @transform_5(%arg0: i32) -> (i32, i32) {
    %c0_i32 = arith.constant 0 : i32
    %c0_i32_0 = arith.constant 0 : i32
    %c0_i32_1 = arith.constant 0 : i32
    return %c0_i32, %c0_i32_0 : i32, i32
  }
  func.func @transform_6(%arg0: i32) -> (i32, i32) {
    %c0_i32 = arith.constant 0 : i32
    %c0_i32_0 = arith.constant 0 : i32
    %c0_i32_1 = arith.constant 0 : i32
    return %c0_i32, %c0_i32_0 : i32, i32
  }
  func.func @transform_7(%arg0: i32) -> (i32, i32) {
    %c0_i32 = arith.constant 0 : i32
    %c0_i32_0 = arith.constant 0 : i32
    %c0_i32_1 = arith.constant 0 : i32
    return %c0_i32, %c0_i32_0 : i32, i32
  }
  func.func @transform_8(%arg0: i32) -> (i32, i32) {
    %c0_i32 = arith.constant 0 : i32
    %c0_i32_0 = arith.constant 0 : i32
    %c0_i32_1 = arith.constant 0 : i32
    return %c0_i32, %c0_i32_0 : i32, i32
  }
  func.func @transform_9(%arg0: i32) -> (i32, i32) {
    %c0_i32 = arith.constant 0 : i32
    %c0_i32_0 = arith.constant 0 : i32
    %c0_i32_1 = arith.constant 0 : i32
    return %c0_i32, %c0_i32_0 : i32, i32
  }
  func.func @transform_10(%arg0: i32) -> (i32, i32) {
    %c0_i32 = arith.constant 0 : i32
    %c0_i32_0 = arith.constant 0 : i32
    %c0_i32_1 = arith.constant 0 : i32
    return %c0_i32, %c0_i32_0 : i32, i32
  }
  func.func @transform_11(%arg0: i32) -> (i32, i32) {
    %c0_i32 = arith.constant 0 : i32
    %c0_i32_0 = arith.constant 0 : i32
    %c0_i32_1 = arith.constant 0 : i32
    return %c0_i32, %c0_i32_0 : i32, i32
  }
  func.func @transform_12(%arg0: i32) -> (i32, i32) {
    %c0_i32 = arith.constant 0 : i32
    %c0_i32_0 = arith.constant 0 : i32
    %c0_i32_1 = arith.constant 0 : i32
    return %c0_i32, %c0_i32_0 : i32, i32
  }
  func.func @transform_13(%arg0: i32) -> (i32, i32) {
    %c0_i32 = arith.constant 0 : i32
    %c0_i32_0 = arith.constant 0 : i32
    %c0_i32_1 = arith.constant 0 : i32
    return %c0_i32, %c0_i32_0 : i32, i32
  }
  func.func @transform_14(%arg0: i32) -> (i32, i32) {
    %c0_i32 = arith.constant 0 : i32
    %c0_i32_0 = arith.constant 0 : i32
    %c0_i32_1 = arith.constant 0 : i32
    return %c0_i32, %c0_i32_0 : i32, i32
  }
  func.func @transform_15(%arg0: i32) -> (i32, i32) {
    %c0_i32 = arith.constant 0 : i32
    %c0_i32_0 = arith.constant 0 : i32
    %c0_i32_1 = arith.constant 0 : i32
    return %c0_i32, %c0_i32_0 : i32, i32
  }
  func.func @transform_16(%arg0: i32) -> (i32, i32) {
    %c0_i32 = arith.constant 0 : i32
    %c0_i32_0 = arith.constant 0 : i32
    %c0_i32_1 = arith.constant 0 : i32
    return %c0_i32, %c0_i32_0 : i32, i32
  }
  func.func @transform_17(%arg0: i32) -> (i32, i32) {
    %c0_i32 = arith.constant 0 : i32
    %c0_i32_0 = arith.constant 0 : i32
    %c0_i32_1 = arith.constant 0 : i32
    return %c0_i32, %c0_i32_0 : i32, i32
  }
  func.func @transform_18(%arg0: i32) -> (i32, i32) {
    %c0_i32 = arith.constant 0 : i32
    %c0_i32_0 = arith.constant 0 : i32
    %c0_i32_1 = arith.constant 0 : i32
    return %c0_i32, %c0_i32_0 : i32, i32
  }
  func.func @transform_19(%arg0: i32) -> (i32, i32) {
    %c0_i32 = arith.constant 0 : i32
    %c0_i32_0 = arith.constant 0 : i32
    %c0_i32_1 = arith.constant 0 : i32
    return %c0_i32, %c0_i32_0 : i32, i32
  }
  func.func @transform_20(%arg0: i32) -> (i32, i32) {
    %c0_i32 = arith.constant 0 : i32
    %c0_i32_0 = arith.constant 0 : i32
    %c0_i32_1 = arith.constant 0 : i32
    return %c0_i32, %c0_i32_0 : i32, i32
  }
  func.func @transform_21(%arg0: i32) -> (i32, i32, i32) {
    %c0_i32 = arith.constant 0 : i32
    %c0_i32_0 = arith.constant 0 : i32
    %c0_i32_1 = arith.constant 0 : i32
    return %arg0, %c0_i32, %c0_i32_0 : i32, i32, i32
  }
}

</mosaic_0001>

<llo_original>
// kernel: tpu_custom_call.1
$region0: #{tpu_custom_call.1}
  #allocation0 [shape = 'u32[]', space=smem, size = 0x4, offset = 0x4, fixed_abs, tag = 'smem constant byte address 0x4 - core index']
  #allocation1 [shape = 'u32[144,128]{1,0:T(1,128)}', space=vmem, size = 0x12000, scoped, tag = 'internal scratch']
  #allocation2 [shape = 'f32[128,256]{1,0:T(8,128)}', space=vmem, size = 0x20000, scoped, tag = 'scratch operand']
  %s0 = inlined_call_operand.vmem [shape: f32[1,128,64], index: 0, kind: input, shape index: {}]
  %s1 = inlined_call_operand.hbm [shape: bf16[192,256], index: 1, kind: input, shape index: {}]
  %s2 = inlined_call_operand.hbm [shape: bf16[256,128], index: 2, kind: input, shape index: {}]
  %s3 = inlined_call_operand.hbm [shape: f32[1,128], index: 3, kind: input, shape index: {}]
  %s4 = inlined_call_operand.hbm [shape: f32[64,64], index: 4, kind: input, shape index: {}]
  %s5 = inlined_call_operand.vmem [shape: bf16[384,256], index: 5, kind: input, shape index: {}]
  %s6 = inlined_call_operand.hbm [shape: bf16[256,128], index: 6, kind: input, shape index: {}]
  %s7 = inlined_call_operand.hbm [shape: f32[1,128], index: 7, kind: input, shape index: {}]
  %s8 = inlined_call_operand.vmem [shape: f32[32,32], index: 8, kind: input, shape index: {}]
  %s9 = inlined_call_operand.vmem [shape: bf16[384,256], index: 9, kind: input, shape index: {}]
  %s10 = inlined_call_operand.hbm [shape: bf16[256,128], index: 10, kind: input, shape index: {}]
  %s11 = inlined_call_operand.hbm [shape: f32[1,128], index: 11, kind: input, shape index: {}]
  %s12 = inlined_call_operand.vmem [shape: f32[16,16], index: 12, kind: input, shape index: {}]
  %s13 = inlined_call_operand.hbm [shape: bf16[384,256], index: 13, kind: input, shape index: {}]
  %s14 = inlined_call_operand.hbm [shape: bf16[256,128], index: 14, kind: input, shape index: {}]
  %s15 = inlined_call_operand.hbm [shape: f32[1,128], index: 15, kind: input, shape index: {}]
  %s16 = inlined_call_operand.hbm [shape: f32[8,8], index: 16, kind: input, shape index: {}]
  %s17 = inlined_call_operand.vmem [shape: f32[512,40], index: 17, kind: input, shape index: {}]
  %s18 = inlined_call_operand.vmem [shape: f32[1,40], index: 18, kind: input, shape index: {}]
  %s19 = inlined_call_operand.vmem [shape: f32[40,8], index: 19, kind: input, shape index: {}]
  %s20 = inlined_call_operand.vmem [shape: f32[1,8], index: 20, kind: input, shape index: {}]
  %s21 = inlined_call_operand.hbm [shape: f32[1,2,8], index: 21, kind: output, shape index: {}]
  %s22 = sld [smem:[#allocation0]]
  $region142: #{tpu_custom_call.1} parent=0
    _
  %s24 = ssub.s32 1, %s22
  %s25 = scalar_select 0, %s24, %s22
  $region1: #{tpu_custom_call.1} parent=0
    #allocation3 [shape = 'u8[98304]{0}', space=vmem, size = 0x18000, scoped, tag = 'input window, operand 1, single buffered']
    #allocation4 [shape = 's32[1]{0}', space=sflag, size = 0x4, scoped, tag = 'scoped memory for tpu_custom_call.1']
    #allocation5 [shape = 's32[1]{0}', space=sflag, size = 0x4, scoped, tag = 'scoped memory for tpu_custom_call.1']
    #allocation6 [shape = 'u8[65536]{0}', space=vmem, size = 0x10000, scoped, tag = 'input window, operand 2, single buffered']
    #allocation7 [shape = 's32[1]{0}', space=sflag, size = 0x4, scoped, tag = 'scoped memory for tpu_custom_call.1']
    #allocation8 [shape = 'u8[512]{0}', space=vmem, size = 0x400, scoped, tag = 'input window, operand 3, single buffered']
    #allocation9 [shape = 'u8[32768]{0}', space=vmem, size = 0x8000, scoped, tag = 'input window, operand 4, single buffered']
    #allocation10 [shape = 's32[1]{0}', space=sflag, size = 0x4, scoped, tag = 'scoped memory for tpu_custom_call.1']
    #allocation11 [shape = 'u8[65536]{0}', space=vmem, size = 0x10000, scoped, tag = 'input window, operand 6, single buffered']
    #allocation12 [shape = 'u8[512]{0}', space=vmem, size = 0x400, scoped, tag = 'input window, operand 7, single buffered']
    #allocation13 [shape = 's32[1]{0}', space=sflag, size = 0x4, scoped, tag = 'scoped memory for tpu_custom_call.1']
    #allocation14 [shape = 'u8[65536]{0}', space=vmem, size = 0x10000, scoped, tag = 'input window, operand 10, single buffered']
    #allocation15 [shape = 'u8[512]{0}', space=vmem, size = 0x400, scoped, tag = 'input window, operand 11, single buffered']
    #allocation16 [shape = 's32[1]{0}', space=sflag, size = 0x4, scoped, tag = 'scoped memory for tpu_custom_call.1']
    #allocation17 [shape = 'u8[196608]{0}', space=vmem, size = 0x30000, scoped, tag = 'input window, operand 13, single buffered']
    #allocation18 [shape = 'u8[65536]{0}', space=vmem, size = 0x10000, scoped, tag = 'input window, operand 14, single buffered']
    #allocation19 [shape = 's32[1]{0}', space=sflag, size = 0x4, scoped, tag = 'scoped memory for tpu_custom_call.1']
    #allocation20 [shape = 'u8[512]{0}', space=vmem, size = 0x400, scoped, tag = 'input window, operand 15, single buffered']
    #allocation21 [shape = 'u8[4096]{0}', space=vmem, size = 0x1000, scoped, tag = 'input window, operand 16, single buffered']
    #allocation22 [shape = 's32[1]{0}', space=sflag, size = 0x4, scoped, tag = 'scoped memory for tpu_custom_call.1']
    #allocation23 [shape = 'u8[1024]{0}', space=vmem, size = 0x400, scoped, tag = 'output window, operand 0, single buffered']
    %26 = vsyncpa [#allocation4], 0
    %27 = vsyncpa [#allocation7], 0
    %28 = vsyncpa [#allocation10], 0
    %29 = vsyncpa [#allocation13], 0
    %30 = vsyncpa [#allocation16], 0
    %31 = vsyncpa [#allocation19], 0
    %32 = vsyncpa [#allocation22], 0
    %33 = vsyncpa [#allocation5], 0
    // Predicated region
    $region2: #{tpu_custom_call.1} parent=1 // pred_check
      _
    $region3: #{tpu_custom_call.1} parent=1 // pred_check_branch
      %35 = sbr.rel (0) target = $region5
    $region4: #{tpu_custom_call.1} parent=1 // pred_region
      _
    $region5: #{tpu_custom_call.1} parent=1 // pred_fallthru
      _
    // Predicated region
    $region6: #{tpu_custom_call.1} parent=1 // pred_check
      _
    $region7: #{tpu_custom_call.1} parent=1 // pred_check_branch
      %37 = sbr.rel (0) target = $region9
    $region8: #{tpu_custom_call.1} parent=1 // pred_region
      %s39 = ssub.s32 3072, 3072
      %40 = vsyncadd [#allocation4], %s39
      %s41 = sshll.u32 [#allocation3], 4
      %s42 = int_to_ptr.vmem [resolvable:$true] %s41
      %47 = dma.hbm_to_vmem [thread:$0]  %s1, 3072, %s42, [#allocation4], 128, 128, 8
    $region9: #{tpu_custom_call.1} parent=1 // pred_fallthru
      _
    // Predicated region
    $region10: #{tpu_custom_call.1} parent=1 // pred_check
      _
    $region11: #{tpu_custom_call.1} parent=1 // pred_check_branch
      %49 = sbr.rel (0) target = $region13
    $region12: #{tpu_custom_call.1} parent=1 // pred_region
      %s51 = ssub.s32 2048, 2048
      %52 = vsyncadd [#allocation7], %s51
      %s53 = sshll.u32 [#allocation6], 4
      %s54 = int_to_ptr.vmem [resolvable:$true] %s53
      %59 = dma.hbm_to_vmem [thread:$0]  %s2, 2048, %s54, [#allocation7], 64, 64, 4
    $region13: #{tpu_custom_call.1} parent=1 // pred_fallthru
      _
    // Predicated region
    $region14: #{tpu_custom_call.1} parent=1 // pred_check
      _
    $region15: #{tpu_custom_call.1} parent=1 // pred_check_branch
      %61 = sbr.rel (0) target = $region17
    $region16: #{tpu_custom_call.1} parent=1 // pred_region
      %s63 = ssub.s32 16, 16
      %64 = vsyncadd [#allocation7], %s63
      %s66 = sshll.u32 [#allocation8], 4
      %s67 = int_to_ptr.vmem [resolvable:$true] %s66
      %69 = dma.hbm_to_vmem [thread:$0]  %s3, 16, %s67, [#allocation7]
    $region17: #{tpu_custom_call.1} parent=1 // pred_fallthru
      _
    // Predicated region
    $region18: #{tpu_custom_call.1} parent=1 // pred_check
      _
    $region19: #{tpu_custom_call.1} parent=1 // pred_check_branch
      %71 = sbr.rel (0) target = $region21
    $region20: #{tpu_custom_call.1} parent=1 // pred_region
      %s73 = ssub.s32 1024, 1024
      %74 = vsyncadd [#allocation10], %s73
      %s75 = sshll.u32 [#allocation9], 4
      %s76 = int_to_ptr.vmem [resolvable:$true] %s75
      %81 = dma.hbm_to_vmem [thread:$0]  %s4, 1024, %s76, [#allocation10], 128, 128, 8
    $region21: #{tpu_custom_call.1} parent=1 // pred_fallthru
      _
    // Predicated region
    $region22: #{tpu_custom_call.1} parent=1 // pred_check
      _
    $region23: #{tpu_custom_call.1} parent=1 // pred_check_branch
      %83 = sbr.rel (0) target = $region25
    $region24: #{tpu_custom_call.1} parent=1 // pred_region
      _
    $region25: #{tpu_custom_call.1} parent=1 // pred_fallthru
      _
    // Predicated region
    $region26: #{tpu_custom_call.1} parent=1 // pred_check
      _
    $region27: #{tpu_custom_call.1} parent=1 // pred_check_branch
      %85 = sbr.rel (0) target = $region29
    $region28: #{tpu_custom_call.1} parent=1 // pred_region
      %s87 = ssub.s32 2048, 2048
      %88 = vsyncadd [#allocation10], %s87
      %s89 = sshll.u32 [#allocation11], 4
      %s90 = int_to_ptr.vmem [resolvable:$true] %s89
      %95 = dma.hbm_to_vmem [thread:$0]  %s6, 2048, %s90, [#allocation10], 64, 64, 4
    $region29: #{tpu_custom_call.1} parent=1 // pred_fallthru
      _
    // Predicated region
    $region30: #{tpu_custom_call.1} parent=1 // pred_check
      _
    $region31: #{tpu_custom_call.1} parent=1 // pred_check_branch
      %97 = sbr.rel (0) target = $region33
    $region32: #{tpu_custom_call.1} parent=1 // pred_region
      %s99 = ssub.s32 16, 16
      %100 = vsyncadd [#allocation13], %s99
      %s102 = sshll.u32 [#allocation12], 4
      %s103 = int_to_ptr.vmem [resolvable:$true] %s102
      %105 = dma.hbm_to_vmem [thread:$0]  %s7, 16, %s103, [#allocation13]
    $region33: #{tpu_custom_call.1} parent=1 // pred_fallthru
      _
    // Predicated region
    $region34: #{tpu_custom_call.1} parent=1 // pred_check
      _
    $region35: #{tpu_custom_call.1} parent=1 // pred_check_branch
      %107 = sbr.rel (0) target = $region37
    $region36: #{tpu_custom_call.1} parent=1 // pred_region
      _
    $region37: #{tpu_custom_call.1} parent=1 // pred_fallthru
      _
    // Predicated region
    $region38: #{tpu_custom_call.1} parent=1 // pred_check
      _
    $region39: #{tpu_custom_call.1} parent=1 // pred_check_branch
      %109 = sbr.rel (0) target = $region41
    $region40: #{tpu_custom_call.1} parent=1 // pred_region
      _
    $region41: #{tpu_custom_call.1} parent=1 // pred_fallthru
      _
    // Predicated region
    $region42: #{tpu_custom_call.1} parent=1 // pred_check
      _
    $region43: #{tpu_custom_call.1} parent=1 // pred_check_branch
      %111 = sbr.rel (0) target = $region45
    $region44: #{tpu_custom_call.1} parent=1 // pred_region
      %s113 = ssub.s32 2048, 2048
      %114 = vsyncadd [#allocation13], %s113
      %s115 = sshll.u32 [#allocation14], 4
      %s116 = int_to_ptr.vmem [resolvable:$true] %s115
      %121 = dma.hbm_to_vmem [thread:$0]  %s10, 2048, %s116, [#allocation13], 64, 64, 4
    $region45: #{tpu_custom_call.1} parent=1 // pred_fallthru
      _
    // Predicated region
    $region46: #{tpu_custom_call.1} parent=1 // pred_check
      _
    $region47: #{tpu_custom_call.1} parent=1 // pred_check_branch
      %123 = sbr.rel (0) target = $region49
    $region48: #{tpu_custom_call.1} parent=1 // pred_region
      %s125 = ssub.s32 16, 16
      %126 = vsyncadd [#allocation16], %s125
      %s128 = sshll.u32 [#allocation15], 4
      %s129 = int_to_ptr.vmem [resolvable:$true] %s128
      %131 = dma.hbm_to_vmem [thread:$0]  %s11, 16, %s129, [#allocation16]
    $region49: #{tpu_custom_call.1} parent=1 // pred_fallthru
      _
    // Predicated region
    $region50: #{tpu_custom_call.1} parent=1 // pred_check
      _
    $region51: #{tpu_custom_call.1} parent=1 // pred_check_branch
      %133 = sbr.rel (0) target = $region53
    $region52: #{tpu_custom_call.1} parent=1 // pred_region
      _
    $region53: #{tpu_custom_call.1} parent=1 // pred_fallthru
      _
    // Predicated region
    $region54: #{tpu_custom_call.1} parent=1 // pred_check
      _
    $region55: #{tpu_custom_call.1} parent=1 // pred_check_branch
      %135 = sbr.rel (0) target = $region57
    $region56: #{tpu_custom_call.1} parent=1 // pred_region
      %s137 = ssub.s32 6144, 6144
      %138 = vsyncadd [#allocation16], %s137
      %s139 = sshll.u32 [#allocation17], 4
      %s140 = int_to_ptr.vmem [resolvable:$true] %s139
      %145 = dma.hbm_to_vmem [thread:$0]  %s13, 6144, %s140, [#allocation16], 128, 128, 8
    $region57: #{tpu_custom_call.1} parent=1 // pred_fallthru
      _
    // Predicated region
    $region58: #{tpu_custom_call.1} parent=1 // pred_check
      _
    $region59: #{tpu_custom_call.1} parent=1 // pred_check_branch
      %147 = sbr.rel (0) target = $region61
    $region60: #{tpu_custom_call.1} parent=1 // pred_region
      %s149 = ssub.s32 2048, 2048
      %150 = vsyncadd [#allocation19], %s149
      %s151 = sshll.u32 [#allocation18], 4
      %s152 = int_to_ptr.vmem [resolvable:$true] %s151
      %157 = dma.hbm_to_vmem [thread:$0]  %s14, 2048, %s152, [#allocation19], 64, 64, 4
    $region61: #{tpu_custom_call.1} parent=1 // pred_fallthru
      _
    // Predicated region
    $region62: #{tpu_custom_call.1} parent=1 // pred_check
      _
    $region63: #{tpu_custom_call.1} parent=1 // pred_check_branch
      %159 = sbr.rel (0) target = $region65
    $region64: #{tpu_custom_call.1} parent=1 // pred_region
      %s161 = ssub.s32 16, 16
      %162 = vsyncadd [#allocation19], %s161
      %s164 = sshll.u32 [#allocation20], 4
      %s165 = int_to_ptr.vmem [resolvable:$true] %s164
      %167 = dma.hbm_to_vmem [thread:$0]  %s15, 16, %s165, [#allocation19]
    $region65: #{tpu_custom_call.1} parent=1 // pred_fallthru
      _
    // Predicated region
    $region66: #{tpu_custom_call.1} parent=1 // pred_check
      _
    $region67: #{tpu_custom_call.1} parent=1 // pred_check_branch
      %169 = sbr.rel (0) target = $region69
    $region68: #{tpu_custom_call.1} parent=1 // pred_region
      %s171 = ssub.s32 128, 128
      %172 = vsyncadd [#allocation22], %s171
      %s174 = sshll.u32 [#allocation21], 4
      %s175 = int_to_ptr.vmem [resolvable:$true] %s174
      %177 = dma.hbm_to_vmem [thread:$0]  %s16, 128, %s175, [#allocation22]
    $region69: #{tpu_custom_call.1} parent=1 // pred_fallthru
      _
    // Predicated region
    $region70: #{tpu_custom_call.1} parent=1 // pred_check
      _
    $region71: #{tpu_custom_call.1} parent=1 // pred_check_branch
      %179 = sbr.rel (0) target = $region73
    $region72: #{tpu_custom_call.1} parent=1 // pred_region
      _
    $region73: #{tpu_custom_call.1} parent=1 // pred_fallthru
      _
    // Predicated region
    $region74: #{tpu_custom_call.1} parent=1 // pred_check
      _
    $region75: #{tpu_custom_call.1} parent=1 // pred_check_branch
      %181 = sbr.rel (0) target = $region77
    $region76: #{tpu_custom_call.1} parent=1 // pred_region
      _
    $region77: #{tpu_custom_call.1} parent=1 // pred_fallthru
      _
    // Predicated region
    $region78: #{tpu_custom_call.1} parent=1 // pred_check
      _
    $region79: #{tpu_custom_call.1} parent=1 // pred_check_branch
      %183 = sbr.rel (0) target = $region81
    $region80: #{tpu_custom_call.1} parent=1 // pred_region
      _
    $region81: #{tpu_custom_call.1} parent=1 // pred_fallthru
      _
    // Predicated region
    $region82: #{tpu_custom_call.1} parent=1 // pred_check
      _
    $region83: #{tpu_custom_call.1} parent=1 // pred_check_branch
      %185 = sbr.rel (0) target = $region85
    $region84: #{tpu_custom_call.1} parent=1 // pred_region
      _
    $region85: #{tpu_custom_call.1} parent=1 // pred_fallthru
      _
    // Predicated region
    $region86: #{tpu_custom_call.1} parent=1 // pred_check
      _
    $region87: #{tpu_custom_call.1} parent=1 // pred_check_branch
      %187 = sbr.rel (0) target = $region89
    $region88: #{tpu_custom_call.1} parent=1 // pred_region
      %188 = dma.done [#allocation4], 3072
    $region89: #{tpu_custom_call.1} parent=1 // pred_fallthru
      _
    // Predicated region
    $region90: #{tpu_custom_call.1} parent=1 // pred_check
      _
    $region91: #{tpu_custom_call.1} parent=1 // pred_check_branch
      %190 = sbr.rel (0) target = $region93
    $region92: #{tpu_custom_call.1} parent=1 // pred_region
      %191 = dma.done [#allocation7], 2048
    $region93: #{tpu_custom_call.1} parent=1 // pred_fallthru
      _
    // Predicated region
    $region94: #{tpu_custom_call.1} parent=1 // pred_check
      _
    $region95: #{tpu_custom_call.1} parent=1 // pred_check_branch
      %193 = sbr.rel (0) target = $region97
    $region96: #{tpu_custom_call.1} parent=1 // pred_region
      %194 = dma.done [#allocation7], 16
    $region97: #{tpu_custom_call.1} parent=1 // pred_fallthru
      _
    // Predicated region
    $region98: #{tpu_custom_call.1} parent=1 // pred_check
      _
    $region99: #{tpu_custom_call.1} parent=1 // pred_check_branch
      %196 = sbr.rel (0) target = $region101
    $region100: #{tpu_custom_call.1} parent=1 // pred_region
      %197 = dma.done [#allocation10], 1024
    $region101: #{tpu_custom_call.1} parent=1 // pred_fallthru
      _
    // Predicated region
    $region102: #{tpu_custom_call.1} parent=1 // pred_check
      _
    $region103: #{tpu_custom_call.1} parent=1 // pred_check_branch
      %199 = sbr.rel (0) target = $region105
    $region104: #{tpu_custom_call.1} parent=1 // pred_region
      %200 = dma.done [#allocation10], 2048
    $region105: #{tpu_custom_call.1} parent=1 // pred_fallthru
      _
    // Predicated region
    $region106: #{tpu_custom_call.1} parent=1 // pred_check
      _
    $region107: #{tpu_custom_call.1} parent=1 // pred_check_branch
      %202 = sbr.rel (0) target = $region109
    $region108: #{tpu_custom_call.1} parent=1 // pred_region
      %203 = dma.done [#allocation13], 16
    $region109: #{tpu_custom_call.1} parent=1 // pred_fallthru
      _
    // Predicated region
    $region110: #{tpu_custom_call.1} parent=1 // pred_check
      _
    $region111: #{tpu_custom_call.1} parent=1 // pred_check_branch
      %205 = sbr.rel (0) target = $region113
    $region112: #{tpu_custom_call.1} parent=1 // pred_region
      %206 = dma.done [#allocation13], 2048
    $region113: #{tpu_custom_call.1} parent=1 // pred_fallthru
      _
    // Predicated region
    $region114: #{tpu_custom_call.1} parent=1 // pred_check
      _
    $region115: #{tpu_custom_call.1} parent=1 // pred_check_branch
      %208 = sbr.rel (0) target = $region117
    $region116: #{tpu_custom_call.1} parent=1 // pred_region
      %209 = dma.done [#allocation16], 16
    $region117: #{tpu_custom_call.1} parent=1 // pred_fallthru
      _
    // Predicated region
    $region118: #{tpu_custom_call.1} parent=1 // pred_check
      _
    $region119: #{tpu_custom_call.1} parent=1 // pred_check_branch
      %211 = sbr.rel (0) target = $region121
    $region120: #{tpu_custom_call.1} parent=1 // pred_region
      %212 = dma.done [#allocation16], 6144
    $region121: #{tpu_custom_call.1} parent=1 // pred_fallthru
      _
    // Predicated region
    $region122: #{tpu_custom_call.1} parent=1 // pred_check
      _
    $region123: #{tpu_custom_call.1} parent=1 // pred_check_branch
      %214 = sbr.rel (0) target = $region125
    $region124: #{tpu_custom_call.1} parent=1 // pred_region
      %215 = dma.done [#allocation19], 2048
    $region125: #{tpu_custom_call.1} parent=1 // pred_fallthru
      _
    // Predicated region
    $region126: #{tpu_custom_call.1} parent=1 // pred_check
      _
    $region127: #{tpu_custom_call.1} parent=1 // pred_check_branch
      %217 = sbr.rel (0) target = $region129
    $region128: #{tpu_custom_call.1} parent=1 // pred_region
      %218 = dma.done [#allocation19], 16
    $region129: #{tpu_custom_call.1} parent=1 // pred_fallthru
      _
    // Predicated region
    $region130: #{tpu_custom_call.1} parent=1 // pred_check
      _
    $region131: #{tpu_custom_call.1} parent=1 // pred_check_branch
      %220 = sbr.rel (0) target = $region133
    $region132: #{tpu_custom_call.1} parent=1 // pred_region
      %221 = dma.done [#allocation22], 128
    $region133: #{tpu_custom_call.1} parent=1 // pred_fallthru
      _
    %v223 = vld [vmem:[%s0] sm:$0xff]
    %v224 = vld [vmem:[%s0 + $0x8] sm:$0xff]
    %v225 = vld [vmem:[%s0 + $0x10] sm:$0xff]
    %v226 = vld [vmem:[%s0 + $0x18] sm:$0xff]
    %v227 = vld [vmem:[%s0 + $0x20] sm:$0xff]
    %v228 = vld [vmem:[%s0 + $0x28] sm:$0xff]
    %v229 = vld [vmem:[%s0 + $0x30] sm:$0xff]
    %v230 = vld [vmem:[%s0 + $0x38] sm:$0xff]
    %v231 = vld [vmem:[%s0 + $0x40] sm:$0xff]
    %v232 = vld [vmem:[%s0 + $0x48] sm:$0xff]
    %v233 = vld [vmem:[%s0 + $0x50] sm:$0xff]
    %v234 = vld [vmem:[%s0 + $0x58] sm:$0xff]
    %v235 = vld [vmem:[%s0 + $0x60] sm:$0xff]
    %v236 = vld [vmem:[%s0 + $0x68] sm:$0xff]
    %v237 = vld [vmem:[%s0 + $0x70] sm:$0xff]
    %v238 = vld [vmem:[%s0 + $0x78] sm:$0xff]
    %v239 = vlaneseq
    %v240 = vshrl.u32 %v239, 7
    %v241 = vadd.s32 %v240, 8
    %v242 = vadd.s32 %v240, 16
    %v243 = vadd.s32 %v240, 24
    %v244 = vadd.s32 %v240, 32
    %v245 = vadd.s32 %v240, 40
    %v246 = vadd.s32 %v240, 48
    %v247 = vadd.s32 %v240, 56
    %v248 = vadd.s32 %v240, 64
    %v249 = vadd.s32 %v240, 72
    %v250 = vadd.s32 %v240, 80
    %v251 = vadd.s32 %v240, 88
    %v252 = vadd.s32 %v240, 96
    %v253 = vadd.s32 %v240, 104
    %v254 = vadd.s32 %v240, 112
    %v255 = vadd.s32 %v240, 120
    %v256 = vand.u32 %v240, 63
    %v257 = vand.u32 %v241, 63
    %v258 = vand.u32 %v242, 63
    %v259 = vand.u32 %v243, 63
    %v260 = vand.u32 %v244, 63
    %v261 = vand.u32 %v245, 63
    %v262 = vand.u32 %v246, 63
    %v263 = vand.u32 %v247, 63
    %v264 = vand.u32 %v248, 63
    %v265 = vand.u32 %v249, 63
    %v266 = vand.u32 %v250, 63
    %v267 = vand.u32 %v251, 63
    %v268 = vand.u32 %v252, 63
    %v269 = vand.u32 %v253, 63
    %v270 = vand.u32 %v254, 63
    %v271 = vand.u32 %v255, 63
    %vm272 = vcmp.ne.s32.totalorder %v256, 0
    %vm273 = vcmp.ne.s32.totalorder %v257, 0
    %vm274 = vcmp.ne.s32.totalorder %v258, 0
    %vm275 = vcmp.ne.s32.totalorder %v259, 0
    %vm276 = vcmp.ne.s32.totalorder %v260, 0
    %vm277 = vcmp.ne.s32.totalorder %v261, 0
    %vm278 = vcmp.ne.s32.totalorder %v262, 0
    %vm279 = vcmp.ne.s32.totalorder %v263, 0
    %vm280 = vcmp.ne.s32.totalorder %v264, 0
    %vm281 = vcmp.ne.s32.totalorder %v265, 0
    %vm282 = vcmp.ne.s32.totalorder %v266, 0
    %vm283 = vcmp.ne.s32.totalorder %v267, 0
    %vm284 = vcmp.ne.s32.totalorder %v268, 0
    %vm285 = vcmp.ne.s32.totalorder %v269, 0
    %vm286 = vcmp.ne.s32.totalorder %v270, 0
    %vm287 = vcmp.ne.s32.totalorder %v271, 0
    %v289 = vrot.slane %v238, 7
    %vm306 = vcmask 1040384
    %v307 = vrot.slane %v223, 7
    %v308 = vrot.slane %v224, 7
    %v309 = vsel %vm306, %v307, %v308
    %v310 = vrot.slane %v225, 7
    %v311 = vsel %vm306, %v308, %v310
    %v312 = vrot.slane %v226, 7
    %v313 = vsel %vm306, %v310, %v312
    %v314 = vrot.slane %v227, 7
    %v315 = vsel %vm306, %v312, %v314
    %v316 = vrot.slane %v228, 7
    %v317 = vsel %vm306, %v314, %v316
    %v318 = vrot.slane %v229, 7
    %v319 = vsel %vm306, %v316, %v318
    %v320 = vrot.slane %v230, 7
    %v321 = vsel %vm306, %v318, %v320
    %v322 = vrot.slane %v231, 7
    %v323 = vsel %vm306, %v320, %v322
    %v324 = vrot.slane %v232, 7
    %v325 = vsel %vm306, %v322, %v324
    %v326 = vrot.slane %v233, 7
    %v327 = vsel %vm306, %v324, %v326
    %v328 = vrot.slane %v234, 7
    %v329 = vsel %vm306, %v326, %v328
    %v330 = vrot.slane %v235, 7
    %v331 = vsel %vm306, %v328, %v330
    %v332 = vrot.slane %v236, 7
    %v333 = vsel %vm306, %v330, %v332
    %v334 = vrot.slane %v237, 7
    %v335 = vsel %vm306, %v332, %v334
    %v336 = vsel %vm306, %v334, %v289
    %v353 = vsel %vm306, %v289, %v307
    %v354 = vsel %vm272, 1, 0
    %v355 = vsel %vm273, 1, 0
    %v356 = vsel %vm274, 1, 0
    %v357 = vsel %vm275, 1, 0
    %v358 = vsel %vm276, 1, 0
    %v359 = vsel %vm277, 1, 0
    %v360 = vsel %vm278, 1, 0
    %v361 = vsel %vm279, 1, 0
    %v362 = vsel %vm280, 1, 0
    %v363 = vsel %vm281, 1, 0
    %v364 = vsel %vm282, 1, 0
    %v365 = vsel %vm283, 1, 0
    %v366 = vsel %vm284, 1, 0
    %v367 = vsel %vm285, 1, 0
    %v368 = vsel %vm286, 1, 0
    %v369 = vsel %vm287, 1, 0
    %vm370 = vcmp.eq.s32.totalorder %v354, 1
    %vm371 = vcmp.eq.s32.totalorder %v355, 1
    %vm372 = vcmp.eq.s32.totalorder %v356, 1
    %vm373 = vcmp.eq.s32.totalorder %v357, 1
    %vm374 = vcmp.eq.s32.totalorder %v358, 1
    %vm375 = vcmp.eq.s32.totalorder %v359, 1
    %vm376 = vcmp.eq.s32.totalorder %v360, 1
    %vm377 = vcmp.eq.s32.totalorder %v361, 1
    %vm378 = vcmp.eq.s32.totalorder %v362, 1
    %vm379 = vcmp.eq.s32.totalorder %v363, 1
    %vm380 = vcmp.eq.s32.totalorder %v364, 1
    %vm381 = vcmp.eq.s32.totalorder %v365, 1
    %vm382 = vcmp.eq.s32.totalorder %v366, 1
    %vm383 = vcmp.eq.s32.totalorder %v367, 1
    %vm384 = vcmp.eq.s32.totalorder %v368, 1
    %vm385 = vcmp.eq.s32.totalorder %v369, 1
    %v386 = vsel %vm370, %v353, 0.0
    %v387 = vsel %vm371, %v309, 0.0
    %v388 = vsel %vm372, %v311, 0.0
    %v389 = vsel %vm373, %v313, 0.0
    %v390 = vsel %vm374, %v315, 0.0
    %v391 = vsel %vm375, %v317, 0.0
    %v392 = vsel %vm376, %v319, 0.0
    %v393 = vsel %vm377, %v321, 0.0
    %v394 = vsel %vm378, %v323, 0.0
    %v395 = vsel %vm379, %v325, 0.0
    %v396 = vsel %vm380, %v327, 0.0
    %v397 = vsel %vm381, %v329, 0.0
    %v398 = vsel %vm382, %v331, 0.0
    %v399 = vsel %vm383, %v333, 0.0
    %v400 = vsel %vm384, %v335, 0.0
    %v401 = vsel %vm385, %v336, 0.0
    %vm402 = vcmp.ne.s32.totalorder %v256, 63
    %vm403 = vcmp.ne.s32.totalorder %v257, 63
    %vm404 = vcmp.ne.s32.totalorder %v258, 63
    %vm405 = vcmp.ne.s32.totalorder %v259, 63
    %vm406 = vcmp.ne.s32.totalorder %v260, 63
    %vm407 = vcmp.ne.s32.totalorder %v261, 63
    %vm408 = vcmp.ne.s32.totalorder %v262, 63
    %vm409 = vcmp.ne.s32.totalorder %v263, 63
    %vm410 = vcmp.ne.s32.totalorder %v264, 63
    %vm411 = vcmp.ne.s32.totalorder %v265, 63
    %vm412 = vcmp.ne.s32.totalorder %v266, 63
    %vm413 = vcmp.ne.s32.totalorder %v267, 63
    %vm414 = vcmp.ne.s32.totalorder %v268, 63
    %vm415 = vcmp.ne.s32.totalorder %v269, 63
    %vm416 = vcmp.ne.s32.totalorder %v270, 63
    %vm417 = vcmp.ne.s32.totalorder %v271, 63
    %vm418 = vcmask 1046528
    %v419 = vrot.slane %v223, 1
    %v420 = vrot.slane %v224, 1
    %v421 = vsel %vm418, %v419, %v420
    %v422 = vrot.slane %v225, 1
    %v423 = vsel %vm418, %v420, %v422
    %v424 = vrot.slane %v226, 1
    %v425 = vsel %vm418, %v422, %v424
    %v426 = vrot.slane %v227, 1
    %v427 = vsel %vm418, %v424, %v426
    %v428 = vrot.slane %v228, 1
    %v429 = vsel %vm418, %v426, %v428
    %v430 = vrot.slane %v229, 1
    %v431 = vsel %vm418, %v428, %v430
    %v432 = vrot.slane %v230, 1
    %v433 = vsel %vm418, %v430, %v432
    %v434 = vrot.slane %v231, 1
    %v435 = vsel %vm418, %v432, %v434
    %v436 = vrot.slane %v232, 1
    %v437 = vsel %vm418, %v434, %v436
    %v438 = vrot.slane %v233, 1
    %v439 = vsel %vm418, %v436, %v438
    %v440 = vrot.slane %v234, 1
    %v441 = vsel %vm418, %v438, %v440
    %v442 = vrot.slane %v235, 1
    %v443 = vsel %vm418, %v440, %v442
    %v444 = vrot.slane %v236, 1
    %v445 = vsel %vm418, %v442, %v444
    %v446 = vrot.slane %v237, 1
    %v447 = vsel %vm418, %v444, %v446
    %v448 = vrot.slane %v238, 1
    %v449 = vsel %vm418, %v446, %v448
    %v467 = vsel %vm418, %v448, %v419
    %v468 = vsel %vm402, 1, 0
    %v469 = vsel %vm403, 1, 0
    %v470 = vsel %vm404, 1, 0
    %v471 = vsel %vm405, 1, 0
    %v472 = vsel %vm406, 1, 0
    %v473 = vsel %vm407, 1, 0
    %v474 = vsel %vm408, 1, 0
    %v475 = vsel %vm409, 1, 0
    %v476 = vsel %vm410, 1, 0
    %v477 = vsel %vm411, 1, 0
    %v478 = vsel %vm412, 1, 0
    %v479 = vsel %vm413, 1, 0
    %v480 = vsel %vm414, 1, 0
    %v481 = vsel %vm415, 1, 0
    %v482 = vsel %vm416, 1, 0
    %v483 = vsel %vm417, 1, 0
    %vm484 = vcmp.eq.s32.totalorder %v468, 1
    %vm485 = vcmp.eq.s32.totalorder %v469, 1
    %vm486 = vcmp.eq.s32.totalorder %v470, 1
    %vm487 = vcmp.eq.s32.totalorder %v471, 1
    %vm488 = vcmp.eq.s32.totalorder %v472, 1
    %vm489 = vcmp.eq.s32.totalorder %v473, 1
    %vm490 = vcmp.eq.s32.totalorder %v474, 1
    %vm491 = vcmp.eq.s32.totalorder %v475, 1
    %vm492 = vcmp.eq.s32.totalorder %v476, 1
    %vm493 = vcmp.eq.s32.totalorder %v477, 1
    %vm494 = vcmp.eq.s32.totalorder %v478, 1
    %vm495 = vcmp.eq.s32.totalorder %v479, 1
    %vm496 = vcmp.eq.s32.totalorder %v480, 1
    %vm497 = vcmp.eq.s32.totalorder %v481, 1
    %vm498 = vcmp.eq.s32.totalorder %v482, 1
    %vm499 = vcmp.eq.s32.totalorder %v483, 1
    %v500 = vsel %vm484, %v421, 0.0
    %v501 = vsel %vm485, %v423, 0.0
    %v502 = vsel %vm486, %v425, 0.0
    %v503 = vsel %vm487, %v427, 0.0
    %v504 = vsel %vm488, %v429, 0.0
    %v505 = vsel %vm489, %v431, 0.0
    %v506 = vsel %vm490, %v433, 0.0
    %v507 = vsel %vm491, %v435, 0.0
    %v508 = vsel %vm492, %v437, 0.0
    %v509 = vsel %vm493, %v439, 0.0
    %v510 = vsel %vm494, %v441, 0.0
    %v511 = vsel %vm495, %v443, 0.0
    %v512 = vsel %vm496, %v445, 0.0
    %v513 = vsel %vm497, %v447, 0.0
    %v514 = vsel %vm498, %v449, 0.0
    %v515 = vsel %vm499, %v467, 0.0
    %516 = vrot.lane.b32.xlu0 %v223, 64
    %v517 = vpop.permute.xlu0 %516
    %518 = vrot.lane.b32.xlu0 %v224, 64
    %v519 = vpop.permute.xlu0 %518
    %520 = vrot.lane.b32.xlu0 %v225, 64
    %v521 = vpop.permute.xlu0 %520
    %522 = vrot.lane.b32.xlu0 %v226, 64
    %v523 = vpop.permute.xlu0 %522
    %524 = vrot.lane.b32.xlu0 %v227, 64
    %v525 = vpop.permute.xlu0 %524
    %526 = vrot.lane.b32.xlu0 %v228, 64
    %v527 = vpop.permute.xlu0 %526
    %528 = vrot.lane.b32.xlu0 %v229, 64
    %v529 = vpop.permute.xlu0 %528
    %530 = vrot.lane.b32.xlu0 %v230, 64
    %v531 = vpop.permute.xlu0 %530
    %532 = vrot.lane.b32.xlu0 %v231, 64
    %v533 = vpop.permute.xlu0 %532
    %534 = vrot.lane.b32.xlu0 %v232, 64
    %v535 = vpop.permute.xlu0 %534
    %536 = vrot.lane.b32.xlu0 %v233, 64
    %v537 = vpop.permute.xlu0 %536
    %538 = vrot.lane.b32.xlu0 %v234, 64
    %v539 = vpop.permute.xlu0 %538
    %540 = vrot.lane.b32.xlu0 %v235, 64
    %v541 = vpop.permute.xlu0 %540
    %542 = vrot.lane.b32.xlu0 %v236, 64
    %v543 = vpop.permute.xlu0 %542
    %544 = vrot.lane.b32.xlu0 %v237, 64
    %v545 = vpop.permute.xlu0 %544
    %546 = vrot.lane.b32.xlu0 %v238, 64
    %v547 = vpop.permute.xlu0 %546
    %vm564 = vcmask 523264
    %v565 = vsel %vm564, %v386, %v517
    %v566 = vsel %vm564, %v387, %v519
    %v567 = vsel %vm564, %v388, %v521
    %v568 = vsel %vm564, %v389, %v523
    %v569 = vsel %vm564, %v390, %v525
    %v570 = vsel %vm564, %v391, %v527
    %v571 = vsel %vm564, %v392, %v529
    %v572 = vsel %vm564, %v393, %v531
    %v573 = vsel %vm564, %v394, %v533
    %v574 = vsel %vm564, %v395, %v535
    %v575 = vsel %vm564, %v396, %v537
    %v576 = vsel %vm564, %v397, %v539
    %v577 = vsel %vm564, %v398, %v541
    %v578 = vsel %vm564, %v399, %v543
    %v579 = vsel %vm564, %v400, %v545
    %v580 = vsel %vm564, %v401, %v547
    %v581 = vpack.c.bf16 %v566, %v565
    %v582 = vpack.c.bf16 %v501, %v500
    %v583 = vpack.c.bf16 %v568, %v567
    %v584 = vpack.c.bf16 %v503, %v502
    %v585 = vpack.c.bf16 %v570, %v569
    %v586 = vpack.c.bf16 %v505, %v504
    %v587 = vpack.c.bf16 %v572, %v571
    %v588 = vpack.c.bf16 %v507, %v506
    %v589 = vpack.c.bf16 %v574, %v573
    %v590 = vpack.c.bf16 %v509, %v508
    %v591 = vpack.c.bf16 %v576, %v575
    %v592 = vpack.c.bf16 %v511, %v510
    %v593 = vpack.c.bf16 %v578, %v577
    %v594 = vpack.c.bf16 %v513, %v512
    %v595 = vpack.c.bf16 %v580, %v579
    %v596 = vpack.c.bf16 %v515, %v514
    %v597 = vld [vmem:[#allocation3] sm:$0xff]
    %v598 = vld [vmem:[#allocation3 + $0x8] sm:$0xff]
    %v599 = vld [vmem:[#allocation3 + $0x10] sm:$0xff]
    %v600 = vld [vmem:[#allocation3 + $0x18] sm:$0xff]
    %v601 = vld [vmem:[#allocation3 + $0x20] sm:$0xff]
    %v602 = vld [vmem:[#allocation3 + $0x28] sm:$0xff]
    %v603 = vld [vmem:[#allocation3 + $0x30] sm:$0xff]
    %v604 = vld [vmem:[#allocation3 + $0x38] sm:$0xff]
    %v605 = vld [vmem:[#allocation3 + $0x40] sm:$0xff]
    %v606 = vld [vmem:[#allocation3 + $0x48] sm:$0xff]
    %v607 = vld [vmem:[#allocation3 + $0x50] sm:$0xff]
    %v608 = vld [vmem:[#allocation3 + $0x58] sm:$0xff]
    %v609 = vld [vmem:[#allocation3 + $0x60] sm:$0xff]
    %v610 = vld [vmem:[#allocation3 + $0x68] sm:$0xff]
    %v611 = vld [vmem:[#allocation3 + $0x70] sm:$0xff]
    %v612 = vld [vmem:[#allocation3 + $0x78] sm:$0xff]
    %v613 = vld [vmem:[#allocation3 + $0x80] sm:$0xff]
    %v614 = vld [vmem:[#allocation3 + $0x88] sm:$0xff]
    %v615 = vld [vmem:[#allocation3 + $0x90] sm:$0xff]
    %v616 = vld [vmem:[#allocation3 + $0x98] sm:$0xff]
    %v617 = vld [vmem:[#allocation3 + $0xa0] sm:$0xff]
    %v618 = vld [vmem:[#allocation3 + $0xa8] sm:$0xff]
    %v619 = vld [vmem:[#allocation3 + $0xb0] sm:$0xff]
    %v620 = vld [vmem:[#allocation3 + $0xb8] sm:$0xff]
    %v645 = vunpack.c.l.b16 %v597
    %v646 = vunpack.c.h.b16 %v597
    %v647 = vunpack.c.l.b16 %v598
    %v648 = vunpack.c.h.b16 %v598
    %v649 = vunpack.c.l.b16 %v599
    %v650 = vunpack.c.h.b16 %v599
    %v651 = vunpack.c.l.b16 %v600
    %v652 = vunpack.c.h.b16 %v600
    %v653 = vunpack.c.l.b16 %v601
    %v654 = vunpack.c.h.b16 %v601
    %v655 = vunpack.c.l.b16 %v602
    %v656 = vunpack.c.h.b16 %v602
    %v657 = vunpack.c.l.b16 %v603
    %v658 = vunpack.c.h.b16 %v603
    %v659 = vunpack.c.l.b16 %v604
    %v660 = vunpack.c.h.b16 %v604
    %v661 = vunpack.c.l.b16 %v605
    %v662 = vunpack.c.h.b16 %v605
    %v663 = vunpack.c.l.b16 %v606
    %v664 = vunpack.c.h.b16 %v606
    %v665 = vunpack.c.l.b16 %v607
    %v666 = vunpack.c.h.b16 %v607
    %v667 = vunpack.c.l.b16 %v608
    %v668 = vunpack.c.h.b16 %v608
    %v669 = vunpack.c.l.b16 %v609
    %v670 = vunpack.c.h.b16 %v609
    %v671 = vunpack.c.l.b16 %v610
    %v672 = vunpack.c.h.b16 %v610
    %v673 = vunpack.c.l.b16 %v611
    %v674 = vunpack.c.h.b16 %v611
    %v675 = vunpack.c.l.b16 %v612
    %v676 = vunpack.c.h.b16 %v612
    %v677 = vunpack.c.l.b16 %v613
    %v678 = vunpack.c.h.b16 %v613
    %v679 = vunpack.c.l.b16 %v614
    %v680 = vunpack.c.h.b16 %v614
    %v681 = vunpack.c.l.b16 %v615
    %v682 = vunpack.c.h.b16 %v615
    %v683 = vunpack.c.l.b16 %v616
    %v684 = vunpack.c.h.b16 %v616
    %v685 = vunpack.c.l.b16 %v617
    %v686 = vunpack.c.h.b16 %v617
    %v687 = vunpack.c.l.b16 %v618
    %v688 = vunpack.c.h.b16 %v618
    %v689 = vunpack.c.l.b16 %v619
    %v690 = vunpack.c.h.b16 %v619
    %v691 = vunpack.c.l.b16 %v620
    %v692 = vunpack.c.h.b16 %v620
    %v693 = vpack.c.b16 %v647, %v645
    %v694 = vpack.c.b16 %v648, %v646
    %v695 = vpack.c.b16 %v651, %v649
    %v696 = vpack.c.b16 %v652, %v650
    %v697 = vpack.c.b16 %v655, %v653
    %v698 = vpack.c.b16 %v656, %v654
    %v699 = vpack.c.b16 %v659, %v657
    %v700 = vpack.c.b16 %v660, %v658
    %v701 = vpack.c.b16 %v663, %v661
    %v702 = vpack.c.b16 %v664, %v662
    %v703 = vpack.c.b16 %v667, %v665
    %v704 = vpack.c.b16 %v668, %v666
    %v705 = vpack.c.b16 %v671, %v669
    %v706 = vpack.c.b16 %v672, %v670
    %v707 = vpack.c.b16 %v675, %v673
    %v708 = vpack.c.b16 %v676, %v674
    %v709 = vpack.c.b16 %v679, %v677
    %v710 = vpack.c.b16 %v680, %v678
    %v711 = vpack.c.b16 %v683, %v681
    %v712 = vpack.c.b16 %v684, %v682
    %v713 = vpack.c.b16 %v687, %v685
    %v714 = vpack.c.b16 %v688, %v686
    %v715 = vpack.c.b16 %v691, %v689
    %v716 = vpack.c.b16 %v692, %v690
    %v742 = vsel %vm564, %v582, 0
    %v745 = vsel %vm564, %v584, 0
    %v748 = vsel %vm564, %v586, 0
    %v751 = vsel %vm564, %v588, 0
    %v754 = vsel %vm564, %v590, 0
    %v757 = vsel %vm564, %v592, 0
    %v760 = vsel %vm564, %v594, 0
    %v763 = vsel %vm564, %v596, 0
    %765 = vmatprep.subr.bf16.mxu0 %v694
    %766 = vmatpush1.bf16.msra.mxu0 %v693
    %767 = vmatprep.subr.bf16.mxu0 %v696
    %768 = vmatpush1.bf16.msra.mxu0 %v695
    %769 = vmatprep.subr.bf16.mxu0 %v698
    %770 = vmatpush1.bf16.msra.mxu0 %v697
    %771 = vmatprep.subr.bf16.mxu0 %v700
    %772 = vmatpush1.bf16.msra.mxu0 %v699
    %773 = vmatprep.subr.bf16.mxu0 %v702
    %774 = vmatpush1.bf16.msra.mxu0 %v701
    %775 = vmatprep.subr.bf16.mxu0 %v704
    %776 = vmatpush1.bf16.msra.mxu0 %v703
    %777 = vmatprep.subr.bf16.mxu0 %v706
    %778 = vmatpush1.bf16.msra.mxu0 %v705
    %779 = vmatprep.subr.bf16.mxu0 %v708
    %780 = vmatpush1.bf16.msra.mxu0 %v707
    %781 = vmatprep.subr.bf16.mxu0 %v710
    %782 = vmatpush1.bf16.msra.mxu0 %v709
    %783 = vmatprep.subr.bf16.mxu0 %v712
    %784 = vmatpush1.bf16.msra.mxu0 %v711
    %785 = vmatprep.subr.bf16.mxu0 %v714
    %786 = vmatpush1.bf16.msra.mxu0 %v713
    %787 = vmatprep.subr.bf16.mxu0 %v716
    %788 = vmatpush1.bf16.msra.mxu0 %v715
    %789 = vmatprep.subr.bf16.mxu0 0
    %790 = vmatpush1.bf16.msra.mxu0 0
    %791 = vmatprep.subr.bf16.mxu0 0
    %792 = vmatpush1.bf16.msra.mxu0 0
    %793 = vmatprep.subr.bf16.mxu0 0
    %794 = vmatpush1.bf16.msra.mxu0 0
    %795 = vmatprep.subr.bf16.mxu0 0
    %796 = vmatpush1.bf16.msra.mxu0 0
    %797 = vmatprep.mubr.bf16.mxu0 %v742
    %798 = vmatmul.mubr.bf16.gmra.mrb[0].mxu0 %v581
    %v799 = vpop.f32.mrb[0].mxu0
    %v800 = vadd.f32 0.0, %v799
    %v801 = vpop.f32.mrb[0].mxu0
    %v802 = vadd.f32 0.0, %v801
    %v803 = vpop.f32.mrb[0].mxu0
    %v804 = vadd.f32 0.0, %v803
    %v805 = vpop.f32.mrb[0].mxu0
    %v806 = vadd.f32 0.0, %v805
    %807 = vmatprep.mubr.bf16.mxu0 %v745
    %808 = vmatmul.mubr.bf16.gmra.mrb[0].mxu0 %v583
    %v809 = vpop.f32.mrb[0].mxu0
    %v810 = vadd.f32 0.0, %v809
    %v811 = vpop.f32.mrb[0].mxu0
    %v812 = vadd.f32 0.0, %v811
    %v813 = vpop.f32.mrb[0].mxu0
    %v814 = vadd.f32 0.0, %v813
    %v815 = vpop.f32.mrb[0].mxu0
    %v816 = vadd.f32 0.0, %v815
    %817 = vmatprep.mubr.bf16.mxu0 %v748
    %818 = vmatmul.mubr.bf16.gmra.mrb[0].mxu0 %v585
    %v819 = vpop.f32.mrb[0].mxu0
    %v820 = vadd.f32 0.0, %v819
    %v821 = vpop.f32.mrb[0].mxu0
    %v822 = vadd.f32 0.0, %v821
    %v823 = vpop.f32.mrb[0].mxu0
    %v824 = vadd.f32 0.0, %v823
    %v825 = vpop.f32.mrb[0].mxu0
    %v826 = vadd.f32 0.0, %v825
    %827 = vmatprep.mubr.bf16.mxu0 %v751
    %828 = vmatmul.mubr.bf16.gmra.mrb[0].mxu0 %v587
    %v829 = vpop.f32.mrb[0].mxu0
    %v830 = vadd.f32 0.0, %v829
    %v831 = vpop.f32.mrb[0].mxu0
    %v832 = vadd.f32 0.0, %v831
    %v833 = vpop.f32.mrb[0].mxu0
    %v834 = vadd.f32 0.0, %v833
    %v835 = vpop.f32.mrb[0].mxu0
    %v836 = vadd.f32 0.0, %v835
    %837 = vmatprep.mubr.bf16.mxu0 %v754
    %838 = vmatmul.mubr.bf16.gmra.mrb[0].mxu0 %v589
    %v839 = vpop.f32.mrb[0].mxu0
    %v840 = vadd.f32 0.0, %v839
    %v841 = vpop.f32.mrb[0].mxu0
    %v842 = vadd.f32 0.0, %v841
    %v843 = vpop.f32.mrb[0].mxu0
    %v844 = vadd.f32 0.0, %v843
    %v845 = vpop.f32.mrb[0].mxu0
    %v846 = vadd.f32 0.0, %v845
    %847 = vmatprep.mubr.bf16.mxu0 %v757
    %848 = vmatmul.mubr.bf16.gmra.mrb[0].mxu0 %v591
    %v849 = vpop.f32.mrb[0].mxu0
    %v850 = vadd.f32 0.0, %v849
    %v851 = vpop.f32.mrb[0].mxu0
    %v852 = vadd.f32 0.0, %v851
    %v853 = vpop.f32.mrb[0].mxu0
    %v854 = vadd.f32 0.0, %v853
    %v855 = vpop.f32.mrb[0].mxu0
    %v856 = vadd.f32 0.0, %v855
    %857 = vmatprep.mubr.bf16.mxu0 %v760
    %858 = vmatmul.mubr.bf16.gmra.mrb[0].mxu0 %v593
    %v859 = vpop.f32.mrb[0].mxu0
    %v860 = vadd.f32 0.0, %v859
    %v861 = vpop.f32.mrb[0].mxu0
    %v862 = vadd.f32 0.0, %v861
    %v863 = vpop.f32.mrb[0].mxu0
    %v864 = vadd.f32 0.0, %v863
    %v865 = vpop.f32.mrb[0].mxu0
    %v866 = vadd.f32 0.0, %v865
    %867 = vmatprep.mubr.bf16.mxu0 %v763
    %868 = vmatmul.mubr.bf16.gmra.mrb[0].mxu0 %v595
    %v869 = vpop.f32.mrb[0].mxu0
    %v870 = vadd.f32 0.0, %v869
    %v871 = vpop.f32.mrb[0].mxu0
    %v872 = vadd.f32 0.0, %v871
    %v873 = vpop.f32.mrb[0].mxu0
    %v874 = vadd.f32 0.0, %v873
    %v875 = vpop.f32.mrb[0].mxu0
    %v876 = vadd.f32 0.0, %v875
    %877 = vdwg.mxu0
    %v878 = vld [vmem:[#allocation9] sm:$0xff]
    %v879 = vld [vmem:[#allocation9 + $0x8] sm:$0xff]
    %v880 = vld [vmem:[#allocation9 + $0x10] sm:$0xff]
    %v881 = vld [vmem:[#allocation9 + $0x18] sm:$0xff]
    %v882 = vld [vmem:[#allocation9 + $0x20] sm:$0xff]
    %v883 = vld [vmem:[#allocation9 + $0x28] sm:$0xff]
    %v884 = vld [vmem:[#allocation9 + $0x30] sm:$0xff]
    %v885 = vld [vmem:[#allocation9 + $0x38] sm:$0xff]
    %v887 = vsel %vm564, %v878, 0
    %v890 = vsel %vm564, %v879, 0
    %v893 = vsel %vm564, %v880, 0
    %v896 = vsel %vm564, %v881, 0
    %v899 = vsel %vm564, %v882, 0
    %v902 = vsel %vm564, %v883, 0
    %v905 = vsel %vm564, %v884, 0
    %v908 = vsel %vm564, %v885, 0
    %910 = vmatprep.subr.mxu0 %v802
    %911 = vmatpush1.msra.mxu0 %v800
    %912 = vmatprep.subr.mxu0 %v806
    %913 = vmatpush1.msra.mxu0 %v804
    %914 = vmatprep.subr.mxu0 %v812
    %915 = vmatpush1.msra.mxu0 %v810
    %916 = vmatprep.subr.mxu0 %v816
    %917 = vmatpush1.msra.mxu0 %v814
    %918 = vmatprep.subr.mxu0 %v822
    %919 = vmatpush1.msra.mxu0 %v820
    %920 = vmatprep.subr.mxu0 %v826
    %921 = vmatpush1.msra.mxu0 %v824
    %922 = vmatprep.subr.mxu0 %v832
    %923 = vmatpush1.msra.mxu0 %v830
    %924 = vmatprep.subr.mxu0 %v836
    %925 = vmatpush1.msra.mxu0 %v834
    %926 = vmatprep.subr.mxu0 0.0
    %927 = vmatpush1.msra.mxu0 0.0
    %928 = vmatprep.subr.mxu0 0.0
    %929 = vmatpush1.msra.mxu0 0.0
    %930 = vmatprep.subr.mxu0 0.0
    %931 = vmatpush1.msra.mxu0 0.0
    %932 = vmatprep.subr.mxu0 0.0
    %933 = vmatpush1.msra.mxu0 0.0
    %934 = vmatprep.subr.mxu0 0.0
    %935 = vmatpush1.msra.mxu0 0.0
    %936 = vmatprep.subr.mxu0 0.0
    %937 = vmatpush1.msra.mxu0 0.0
    %938 = vmatprep.subr.mxu0 0.0
    %939 = vmatpush1.msra.mxu0 0.0
    %940 = vmatprep.subr.mxu0 0.0
    %941 = vmatpush1.msra.mxu0 0.0
    %942 = vmatprep.subr.mxu0 0.0
    %943 = vmatpush1.msra.mxu0 0.0
    %944 = vmatprep.subr.mxu0 0.0
    %945 = vmatpush1.msra.mxu0 0.0
    %946 = vmatprep.subr.mxu0 0.0
    %947 = vmatpush1.msra.mxu0 0.0
    %948 = vmatprep.subr.mxu0 0.0
    %949 = vmatpush1.msra.mxu0 0.0
    %950 = vmatprep.subr.mxu0 0.0
    %951 = vmatpush1.msra.mxu0 0.0
    %952 = vmatprep.subr.mxu0 0.0
    %953 = vmatpush1.msra.mxu0 0.0
    %954 = vmatprep.subr.mxu0 0.0
    %955 = vmatpush1.msra.mxu0 0.0
    %956 = vmatprep.subr.mxu0 0.0
    %957 = vmatpush1.msra.mxu0 0.0
    %958 = vmatprep.subr.mxu0 0.0
    %959 = vmatpush1.msra.mxu0 0.0
    %960 = vmatprep.subr.mxu0 0.0
    %961 = vmatpush1.msra.mxu0 0.0
    %962 = vmatprep.subr.mxu0 0.0
    %963 = vmatpush1.msra.mxu0 0.0
    %964 = vmatprep.subr.mxu0 0.0
    %965 = vmatpush1.msra.mxu0 0.0
    %966 = vmatprep.subr.mxu0 0.0
    %967 = vmatpush1.msra.mxu0 0.0
    %968 = vmatprep.subr.mxu0 0.0
    %969 = vmatpush1.msra.mxu0 0.0
    %970 = vmatprep.subr.mxu0 0.0
    %971 = vmatpush1.msra.mxu0 0.0
    %972 = vmatprep.subr.mxu0 0.0
    %973 = vmatpush1.msra.mxu0 0.0
    %974 = vmatprep.mubr.f32.mxu0 0.0
    %975 = vmatmul.mubr.f32.gmra.mrb[0].mxu0 %v887
    %v976 = vpop.f32.mrb[0].mxu0
    %v977 = vadd.f32 0.0, %v976
    %v978 = vpop.f32.mrb[0].mxu0
    %v979 = vadd.f32 0.0, %v978
    %980 = vmatprep.mubr.f32.mxu0 0.0
    %981 = vmatmul.mubr.f32.gmra.mrb[0].mxu0 %v890
    %v982 = vpop.f32.mrb[0].mxu0
    %v983 = vadd.f32 0.0, %v982
    %v984 = vpop.f32.mrb[0].mxu0
    %v985 = vadd.f32 0.0, %v984
    %986 = vmatprep.mubr.f32.mxu0 0.0
    %987 = vmatmul.mubr.f32.gmra.mrb[0].mxu0 %v893
    %v988 = vpop.f32.mrb[0].mxu0
    %v989 = vadd.f32 0.0, %v988
    %v990 = vpop.f32.mrb[0].mxu0
    %v991 = vadd.f32 0.0, %v990
    %992 = vmatprep.mubr.f32.mxu0 0.0
    %993 = vmatmul.mubr.f32.gmra.mrb[0].mxu0 %v896
    %v994 = vpop.f32.mrb[0].mxu0
    %v995 = vadd.f32 0.0, %v994
    %v996 = vpop.f32.mrb[0].mxu0
    %v997 = vadd.f32 0.0, %v996
    %998 = vmatprep.mubr.f32.mxu0 0.0
    %999 = vmatmul.mubr.f32.gmra.mrb[0].mxu0 %v899
    %v1000 = vpop.f32.mrb[0].mxu0
    %v1001 = vadd.f32 0.0, %v1000
    %v1002 = vpop.f32.mrb[0].mxu0
    %v1003 = vadd.f32 0.0, %v1002
    %1004 = vmatprep.mubr.f32.mxu0 0.0
    %1005 = vmatmul.mubr.f32.gmra.mrb[0].mxu0 %v902
    %v1006 = vpop.f32.mrb[0].mxu0
    %v1007 = vadd.f32 0.0, %v1006
    %v1008 = vpop.f32.mrb[0].mxu0
    %v1009 = vadd.f32 0.0, %v1008
    %1010 = vmatprep.mubr.f32.mxu0 0.0
    %1011 = vmatmul.mubr.f32.gmra.mrb[0].mxu0 %v905
    %v1012 = vpop.f32.mrb[0].mxu0
    %v1013 = vadd.f32 0.0, %v1012
    %v1014 = vpop.f32.mrb[0].mxu0
    %v1015 = vadd.f32 0.0, %v1014
    %1016 = vmatprep.mubr.f32.mxu0 0.0
    %1017 = vmatmul.mubr.f32.gmra.mrb[0].mxu0 %v908
    %v1018 = vpop.f32.mrb[0].mxu0
    %v1019 = vadd.f32 0.0, %v1018
    %v1020 = vpop.f32.mrb[0].mxu0
    %v1021 = vadd.f32 0.0, %v1020
    %1022 = vdwg.mxu0
    %1023 = vmatprep.subr.mxu0 %v842
    %1024 = vmatpush1.msra.mxu0 %v840
    %1025 = vmatprep.subr.mxu0 %v846
    %1026 = vmatpush1.msra.mxu0 %v844
    %1027 = vmatprep.subr.mxu0 %v852
    %1028 = vmatpush1.msra.mxu0 %v850
    %1029 = vmatprep.subr.mxu0 %v856
    %1030 = vmatpush1.msra.mxu0 %v854
    %1031 = vmatprep.subr.mxu0 %v862
    %1032 = vmatpush1.msra.mxu0 %v860
    %1033 = vmatprep.subr.mxu0 %v866
    %1034 = vmatpush1.msra.mxu0 %v864
    %1035 = vmatprep.subr.mxu0 %v872
    %1036 = vmatpush1.msra.mxu0 %v870
    %1037 = vmatprep.subr.mxu0 %v876
    %1038 = vmatpush1.msra.mxu0 %v874
    %1039 = vmatprep.subr.mxu0 0.0
    %1040 = vmatpush1.msra.mxu0 0.0
    %1041 = vmatprep.subr.mxu0 0.0
    %1042 = vmatpush1.msra.mxu0 0.0
    %1043 = vmatprep.subr.mxu0 0.0
    %1044 = vmatpush1.msra.mxu0 0.0
    %1045 = vmatprep.subr.mxu0 0.0
    %1046 = vmatpush1.msra.mxu0 0.0
    %1047 = vmatprep.subr.mxu0 0.0
    %1048 = vmatpush1.msra.mxu0 0.0
    %1049 = vmatprep.subr.mxu0 0.0
    %1050 = vmatpush1.msra.mxu0 0.0
    %1051 = vmatprep.subr.mxu0 0.0
    %1052 = vmatpush1.msra.mxu0 0.0
    %1053 = vmatprep.subr.mxu0 0.0
    %1054 = vmatpush1.msra.mxu0 0.0
    %1055 = vmatprep.subr.mxu0 0.0
    %1056 = vmatpush1.msra.mxu0 0.0
    %1057 = vmatprep.subr.mxu0 0.0
    %1058 = vmatpush1.msra.mxu0 0.0
    %1059 = vmatprep.subr.mxu0 0.0
    %1060 = vmatpush1.msra.mxu0 0.0
    %1061 = vmatprep.subr.mxu0 0.0
    %1062 = vmatpush1.msra.mxu0 0.0
    %1063 = vmatprep.subr.mxu0 0.0
    %1064 = vmatpush1.msra.mxu0 0.0
    %1065 = vmatprep.subr.mxu0 0.0
    %1066 = vmatpush1.msra.mxu0 0.0
    %1067 = vmatprep.subr.mxu0 0.0
    %1068 = vmatpush1.msra.mxu0 0.0
    %1069 = vmatprep.subr.mxu0 0.0
    %1070 = vmatpush1.msra.mxu0 0.0
    %1071 = vmatprep.subr.mxu0 0.0
    %1072 = vmatpush1.msra.mxu0 0.0
    %1073 = vmatprep.subr.mxu0 0.0
    %1074 = vmatpush1.msra.mxu0 0.0
    %1075 = vmatprep.subr.mxu0 0.0
    %1076 = vmatpush1.msra.mxu0 0.0
    %1077 = vmatprep.subr.mxu0 0.0
    %1078 = vmatpush1.msra.mxu0 0.0
    %1079 = vmatprep.subr.mxu0 0.0
    %1080 = vmatpush1.msra.mxu0 0.0
    %1081 = vmatprep.subr.mxu0 0.0
    %1082 = vmatpush1.msra.mxu0 0.0
    %1083 = vmatprep.subr.mxu0 0.0
    %1084 = vmatpush1.msra.mxu0 0.0
    %1085 = vmatprep.subr.mxu0 0.0
    %1086 = vmatpush1.msra.mxu0 0.0
    %1087 = vmatprep.mubr.f32.mxu0 0.0
    %1088 = vmatmul.mubr.f32.gmra.mrb[0].mxu0 %v887
    %v1089 = vpop.f32.mrb[0].mxu0
    %v1090 = vadd.f32 0.0, %v1089
    %v1091 = vpop.f32.mrb[0].mxu0
    %v1092 = vadd.f32 0.0, %v1091
    %1093 = vmatprep.mubr.f32.mxu0 0.0
    %1094 = vmatmul.mubr.f32.gmra.mrb[0].mxu0 %v890
    %v1095 = vpop.f32.mrb[0].mxu0
    %v1096 = vadd.f32 0.0, %v1095
    %v1097 = vpop.f32.mrb[0].mxu0
    %v1098 = vadd.f32 0.0, %v1097
    %1099 = vmatprep.mubr.f32.mxu0 0.0
    %1100 = vmatmul.mubr.f32.gmra.mrb[0].mxu0 %v893
    %v1101 = vpop.f32.mrb[0].mxu0
    %v1102 = vadd.f32 0.0, %v1101
    %v1103 = vpop.f32.mrb[0].mxu0
    %v1104 = vadd.f32 0.0, %v1103
    %1105 = vmatprep.mubr.f32.mxu0 0.0
    %1106 = vmatmul.mubr.f32.gmra.mrb[0].mxu0 %v896
    %v1107 = vpop.f32.mrb[0].mxu0
    %v1108 = vadd.f32 0.0, %v1107
    %v1109 = vpop.f32.mrb[0].mxu0
    %v1110 = vadd.f32 0.0, %v1109
    %1111 = vmatprep.mubr.f32.mxu0 0.0
    %1112 = vmatmul.mubr.f32.gmra.mrb[0].mxu0 %v899
    %v1113 = vpop.f32.mrb[0].mxu0
    %v1114 = vadd.f32 0.0, %v1113
    %v1115 = vpop.f32.mrb[0].mxu0
    %v1116 = vadd.f32 0.0, %v1115
    %1117 = vmatprep.mubr.f32.mxu0 0.0
    %1118 = vmatmul.mubr.f32.gmra.mrb[0].mxu0 %v902
    %v1119 = vpop.f32.mrb[0].mxu0
    %v1120 = vadd.f32 0.0, %v1119
    %v1121 = vpop.f32.mrb[0].mxu0
    %v1122 = vadd.f32 0.0, %v1121
    %1123 = vmatprep.mubr.f32.mxu0 0.0
    %1124 = vmatmul.mubr.f32.gmra.mrb[0].mxu0 %v905
    %v1125 = vpop.f32.mrb[0].mxu0
    %v1126 = vadd.f32 0.0, %v1125
    %v1127 = vpop.f32.mrb[0].mxu0
    %v1128 = vadd.f32 0.0, %v1127
    %1129 = vmatprep.mubr.f32.mxu0 0.0
    %1130 = vmatmul.mubr.f32.gmra.mrb[0].mxu0 %v908
    %v1131 = vpop.f32.mrb[0].mxu0
    %v1132 = vadd.f32 0.0, %v1131
    %v1133 = vpop.f32.mrb[0].mxu0
    %v1134 = vadd.f32 0.0, %v1133
    %1135 = vdwg.mxu0
    %v1136 = vmax.f32 %v977, %v1001
    %v1137 = vmax.f32 %v979, %v1003
    %v1138 = vmax.f32 %v983, %v1007
    %v1139 = vmax.f32 %v985, %v1009
    %v1140 = vmax.f32 %v989, %v1013
    %v1141 = vmax.f32 %v991, %v1015
    %v1142 = vmax.f32 %v995, %v1019
    %v1143 = vmax.f32 %v997, %v1021
    %v1144 = vmax.f32 %v1090, %v1114
    %v1145 = vmax.f32 %v1092, %v1116
    %v1146 = vmax.f32 %v1096, %v1120
    %v1147 = vmax.f32 %v1098, %v1122
    %v1148 = vmax.f32 %v1102, %v1126
    %v1149 = vmax.f32 %v1104, %v1128
    %v1150 = vmax.f32 %v1108, %v1132
    %v1151 = vmax.f32 %v1110, %v1134
    %1168 = vrot.lane.b32.xlu0 %v1136, 124
    %v1169 = vpop.permute.xlu0 %1168
    %1170 = vrot.lane.b32.xlu0 %v1137, 124
    %v1171 = vpop.permute.xlu0 %1170
    %1172 = vrot.lane.b32.xlu0 %v1138, 124
    %v1173 = vpop.permute.xlu0 %1172
    %1174 = vrot.lane.b32.xlu0 %v1139, 124
    %v1175 = vpop.permute.xlu0 %1174
    %1176 = vrot.lane.b32.xlu0 %v1140, 124
    %v1177 = vpop.permute.xlu0 %1176
    %1178 = vrot.lane.b32.xlu0 %v1141, 124
    %v1179 = vpop.permute.xlu0 %1178
    %1180 = vrot.lane.b32.xlu0 %v1142, 124
    %v1181 = vpop.permute.xlu0 %1180
    %1182 = vrot.lane.b32.xlu0 %v1143, 124
    %v1183 = vpop.permute.xlu0 %1182
    %1184 = vrot.lane.b32.xlu0 %v1144, 124
    %v1185 = vpop.permute.xlu0 %1184
    %1186 = vrot.lane.b32.xlu0 %v1145, 124
    %v1187 = vpop.permute.xlu0 %1186
    %1188 = vrot.lane.b32.xlu0 %v1146, 124
    %v1189 = vpop.permute.xlu0 %1188
    %1190 = vrot.lane.b32.xlu0 %v1147, 124
    %v1191 = vpop.permute.xlu0 %1190
    %1192 = vrot.lane.b32.xlu0 %v1148, 124
    %v1193 = vpop.permute.xlu0 %1192
    %1194 = vrot.lane.b32.xlu0 %v1149, 124
    %v1195 = vpop.permute.xlu0 %1194
    %1196 = vrot.lane.b32.xlu0 %v1150, 124
    %v1197 = vpop.permute.xlu0 %1196
    %1198 = vrot.lane.b32.xlu0 %v1151, 124
    %v1199 = vpop.permute.xlu0 %1198
    %vm1200 = vcmask 1014784
    %v1201 = vsel %vm1200, %v1169, %v1171
    %v1202 = vsel %vm1200, %v1173, %v1175
    %v1203 = vsel %vm1200, %v1177, %v1179
    %v1204 = vsel %vm1200, %v1181, %v1183
    %v1205 = vsel %vm1200, %v1185, %v1187
    %v1206 = vsel %vm1200, %v1189, %v1191
    %v1207 = vsel %vm1200, %v1193, %v1195
    %v1208 = vsel %vm1200, %v1197, %v1199
    %v1233 = vsel %vm1200, %v1171, %v1169
    %v1234 = vsel %vm1200, %v1175, %v1173
    %v1235 = vsel %vm1200, %v1179, %v1177
    %v1236 = vsel %vm1200, %v1183, %v1181
    %v1237 = vsel %vm1200, %v1187, %v1185
    %v1238 = vsel %vm1200, %v1191, %v1189
    %v1239 = vsel %vm1200, %v1195, %v1193
    %v1240 = vsel %vm1200, %v1199, %v1197
    %v1241 = vmax.f32 %v1136, %v1201
    %v1242 = vmax.f32 %v1137, %v1233
    %v1243 = vmax.f32 %v1138, %v1202
    %v1244 = vmax.f32 %v1139, %v1234
    %v1245 = vmax.f32 %v1140, %v1203
    %v1246 = vmax.f32 %v1141, %v1235
    %v1247 = vmax.f32 %v1142, %v1204
    %v1248 = vmax.f32 %v1143, %v1236
    %v1249 = vmax.f32 %v1144, %v1205
    %v1250 = vmax.f32 %v1145, %v1237
    %v1251 = vmax.f32 %v1146, %v1206
    %v1252 = vmax.f32 %v1147, %v1238
    %v1253 = vmax.f32 %v1148, %v1207
    %v1254 = vmax.f32 %v1149, %v1239
    %v1255 = vmax.f32 %v1150, %v1208
    %v1256 = vmax.f32 %v1151, %v1240
    %v1257 = vpack.c.bf16 %v1243, %v1241
    %v1258 = vpack.c.bf16 %v1244, %v1242
    %v1259 = vpack.c.bf16 %v1247, %v1245
    %v1260 = vpack.c.bf16 %v1248, %v1246
    %v1261 = vpack.c.bf16 %v1251, %v1249
    %v1262 = vpack.c.bf16 %v1252, %v1250
    %v1263 = vpack.c.bf16 %v1255, %v1253
    %v1264 = vpack.c.bf16 %v1256, %v1254
    %v1265 = vld [vmem:[#allocation6] sm:$0xf]
    %v1266 = vld [vmem:[#allocation6 + $0x4] sm:$0xf]
    %v1267 = vld [vmem:[#allocation6 + $0x8] sm:$0xf]
    %v1268 = vld [vmem:[#allocation6 + $0xc] sm:$0xf]
    %v1269 = vld [vmem:[#allocation6 + $0x10] sm:$0xf]
    %v1270 = vld [vmem:[#allocation6 + $0x14] sm:$0xf]
    %v1271 = vld [vmem:[#allocation6 + $0x18] sm:$0xf]
    %v1272 = vld [vmem:[#allocation6 + $0x1c] sm:$0xf]
    %v1273 = vld [vmem:[#allocation6 + $0x20] sm:$0xf]
    %v1274 = vld [vmem:[#allocation6 + $0x24] sm:$0xf]
    %v1275 = vld [vmem:[#allocation6 + $0x28] sm:$0xf]
    %v1276 = vld [vmem:[#allocation6 + $0x2c] sm:$0xf]
    %v1277 = vld [vmem:[#allocation6 + $0x30] sm:$0xf]
    %v1278 = vld [vmem:[#allocation6 + $0x34] sm:$0xf]
    %v1279 = vld [vmem:[#allocation6 + $0x38] sm:$0xf]
    %v1280 = vld [vmem:[#allocation6 + $0x3c] sm:$0xf]
    %v1281 = vld [vmem:[#allocation6 + $0x40] sm:$0xf]
    %v1282 = vld [vmem:[#allocation6 + $0x44] sm:$0xf]
    %v1283 = vld [vmem:[#allocation6 + $0x48] sm:$0xf]
    %v1284 = vld [vmem:[#allocation6 + $0x4c] sm:$0xf]
    %v1285 = vld [vmem:[#allocation6 + $0x50] sm:$0xf]
    %v1286 = vld [vmem:[#allocation6 + $0x54] sm:$0xf]
    %v1287 = vld [vmem:[#allocation6 + $0x58] sm:$0xf]
    %v1288 = vld [vmem:[#allocation6 + $0x5c] sm:$0xf]
    %v1289 = vld [vmem:[#allocation6 + $0x60] sm:$0xf]
    %v1290 = vld [vmem:[#allocation6 + $0x64] sm:$0xf]
    %v1291 = vld [vmem:[#allocation6 + $0x68] sm:$0xf]
    %v1292 = vld [vmem:[#allocation6 + $0x6c] sm:$0xf]
    %v1293 = vld [vmem:[#allocation6 + $0x70] sm:$0xf]
    %v1294 = vld [vmem:[#allocation6 + $0x74] sm:$0xf]
    %v1295 = vld [vmem:[#allocation6 + $0x78] sm:$0xf]
    %v1296 = vld [vmem:[#allocation6 + $0x7c] sm:$0xf]
    %v1297 = vld [vmem:[#allocation8] sm:$0x1]
    %v1299 = vlaneseq
    %v1300 = vshrl.u32 %v1299, 7
    %v1301 = vsub.s32 0, %v1300
    %v1302 = vrot.slane %v1297, %v1301
    %v1336 = vunpack.c.l.b16 %v1265
    %v1337 = vunpack.c.l.b16 %v1266
    %v1338 = vunpack.c.l.b16 %v1267
    %v1339 = vunpack.c.l.b16 %v1268
    %v1340 = vunpack.c.l.b16 %v1269
    %v1341 = vunpack.c.l.b16 %v1270
    %v1342 = vunpack.c.l.b16 %v1271
    %v1343 = vunpack.c.l.b16 %v1272
    %v1344 = vunpack.c.l.b16 %v1273
    %v1345 = vunpack.c.l.b16 %v1274
    %v1346 = vunpack.c.l.b16 %v1275
    %v1347 = vunpack.c.l.b16 %v1276
    %v1348 = vunpack.c.l.b16 %v1277
    %v1349 = vunpack.c.l.b16 %v1278
    %v1350 = vunpack.c.l.b16 %v1279
    %v1351 = vunpack.c.l.b16 %v1280
    %v1352 = vunpack.c.l.b16 %v1281
    %v1353 = vunpack.c.l.b16 %v1282
    %v1354 = vunpack.c.l.b16 %v1283
    %v1355 = vunpack.c.l.b16 %v1284
    %v1356 = vunpack.c.l.b16 %v1285
    %v1357 = vunpack.c.l.b16 %v1286
    %v1358 = vunpack.c.l.b16 %v1287
    %v1359 = vunpack.c.l.b16 %v1288
    %v1360 = vunpack.c.l.b16 %v1289
    %v1361 = vunpack.c.l.b16 %v1290
    %v1362 = vunpack.c.l.b16 %v1291
    %v1363 = vunpack.c.l.b16 %v1292
    %v1364 = vunpack.c.l.b16 %v1293
    %v1365 = vunpack.c.l.b16 %v1294
    %v1366 = vunpack.c.l.b16 %v1295
    %v1367 = vunpack.c.l.b16 %v1296
    %v1368 = vpack.c.b16 %v1337, %v1336
    %v1369 = vpack.c.b16 %v1339, %v1338
    %v1370 = vpack.c.b16 %v1341, %v1340
    %v1371 = vpack.c.b16 %v1343, %v1342
    %v1372 = vpack.c.b16 %v1345, %v1344
    %v1373 = vpack.c.b16 %v1347, %v1346
    %v1374 = vpack.c.b16 %v1349, %v1348
    %v1375 = vpack.c.b16 %v1351, %v1350
    %v1376 = vpack.c.b16 %v1353, %v1352
    %v1377 = vpack.c.b16 %v1355, %v1354
    %v1378 = vpack.c.b16 %v1357, %v1356
    %v1379 = vpack.c.b16 %v1359, %v1358
    %v1380 = vpack.c.b16 %v1361, %v1360
    %v1381 = vpack.c.b16 %v1363, %v1362
    %v1382 = vpack.c.b16 %v1365, %v1364
    %v1383 = vpack.c.b16 %v1367, %v1366
    %1400 = vmatprep.subr.bf16.mxu0 0
    %1401 = vmatpush1.bf16.msra.mxu0 %v1368
    %1402 = vmatprep.subr.bf16.mxu0 0
    %1403 = vmatpush1.bf16.msra.mxu0 %v1369
    %1404 = vmatprep.subr.bf16.mxu0 0
    %1405 = vmatpush1.bf16.msra.mxu0 %v1370
    %1406 = vmatprep.subr.bf16.mxu0 0
    %1407 = vmatpush1.bf16.msra.mxu0 %v1371
    %1408 = vmatprep.subr.bf16.mxu0 0
    %1409 = vmatpush1.bf16.msra.mxu0 %v1372
    %1410 = vmatprep.subr.bf16.mxu0 0
    %1411 = vmatpush1.bf16.msra.mxu0 %v1373
    %1412 = vmatprep.subr.bf16.mxu0 0
    %1413 = vmatpush1.bf16.msra.mxu0 %v1374
    %1414 = vmatprep.subr.bf16.mxu0 0
    %1415 = vmatpush1.bf16.msra.mxu0 %v1375
    %1416 = vmatprep.subr.bf16.mxu0 0
    %1417 = vmatpush1.bf16.msra.mxu0 %v1376
    %1418 = vmatprep.subr.bf16.mxu0 0
    %1419 = vmatpush1.bf16.msra.mxu0 %v1377
    %1420 = vmatprep.subr.bf16.mxu0 0
    %1421 = vmatpush1.bf16.msra.mxu0 %v1378
    %1422 = vmatprep.subr.bf16.mxu0 0
    %1423 = vmatpush1.bf16.msra.mxu0 %v1379
    %1424 = vmatprep.subr.bf16.mxu0 0
    %1425 = vmatpush1.bf16.msra.mxu0 %v1380
    %1426 = vmatprep.subr.bf16.mxu0 0
    %1427 = vmatpush1.bf16.msra.mxu0 %v1381
    %1428 = vmatprep.subr.bf16.mxu0 0
    %1429 = vmatpush1.bf16.msra.mxu0 %v1382
    %1430 = vmatprep.subr.bf16.mxu0 0
    %1431 = vmatpush1.bf16.msra.mxu0 %v1383
    %1432 = vmatprep.mubr.bf16.mxu0 %v1258
    %1433 = vmatmul.mubr.bf16.gmra.mrb[0].mxu0 %v1257
    %v1434 = vpop.f32.mrb[0].mxu0
    %v1435 = vadd.f32 %v1302, %v1434
    %v1436 = vpop.f32.mrb[0].mxu0
    %v1437 = vpop.f32.mrb[0].mxu0
    %v1438 = vadd.f32 %v1302, %v1437
    %v1439 = vpop.f32.mrb[0].mxu0
    %1440 = vmatprep.mubr.bf16.mxu0 %v1260
    %1441 = vmatmul.mubr.bf16.gmra.mrb[0].mxu0 %v1259
    %v1442 = vpop.f32.mrb[0].mxu0
    %v1443 = vadd.f32 %v1302, %v1442
    %v1444 = vpop.f32.mrb[0].mxu0
    %v1445 = vpop.f32.mrb[0].mxu0
    %v1446 = vadd.f32 %v1302, %v1445
    %v1447 = vpop.f32.mrb[0].mxu0
    %1448 = vmatprep.mubr.bf16.mxu0 %v1262
    %1449 = vmatmul.mubr.bf16.gmra.mrb[0].mxu0 %v1261
    %v1450 = vpop.f32.mrb[0].mxu0
    %v1451 = vadd.f32 %v1302, %v1450
    %v1452 = vpop.f32.mrb[0].mxu0
    %v1453 = vpop.f32.mrb[0].mxu0
    %v1454 = vadd.f32 %v1302, %v1453
    %v1455 = vpop.f32.mrb[0].mxu0
    %1456 = vmatprep.mubr.bf16.mxu0 %v1264
    %1457 = vmatmul.mubr.bf16.gmra.mrb[0].mxu0 %v1263
    %v1458 = vpop.f32.mrb[0].mxu0
    %v1459 = vadd.f32 %v1302, %v1458
    %v1460 = vpop.f32.mrb[0].mxu0
    %v1461 = vpop.f32.mrb[0].mxu0
    %v1462 = vadd.f32 %v1302, %v1461
    %v1463 = vpop.f32.mrb[0].mxu0
    %1464 = vdwg.mxu0
    %v1465 = vmax.f32 %v1435, 0.0
    %v1466 = vmax.f32 %v1438, 0.0
    %v1467 = vmax.f32 %v1443, 0.0
    %v1468 = vmax.f32 %v1446, 0.0
    %v1469 = vmax.f32 %v1451, 0.0
    %v1470 = vmax.f32 %v1454, 0.0
    %v1471 = vmax.f32 %v1459, 0.0
    %v1472 = vmax.f32 %v1462, 0.0
    %v1473 = vand.u32 %v240, 31
    %v1474 = vand.u32 %v241, 31
    %v1475 = vand.u32 %v242, 31
    %v1476 = vand.u32 %v243, 31
    %v1477 = vand.u32 %v244, 31
    %v1478 = vand.u32 %v245, 31
    %v1479 = vand.u32 %v246, 31
    %v1480 = vand.u32 %v247, 31
    %vm1481 = vcmp.ne.s32.totalorder %v1473, 0
    %vm1482 = vcmp.ne.s32.totalorder %v1474, 0
    %vm1483 = vcmp.ne.s32.totalorder %v1475, 0
    %vm1484 = vcmp.ne.s32.totalorder %v1476, 0
    %vm1485 = vcmp.ne.s32.totalorder %v1477, 0
    %vm1486 = vcmp.ne.s32.totalorder %v1478, 0
    %vm1487 = vcmp.ne.s32.totalorder %v1479, 0
    %vm1488 = vcmp.ne.s32.totalorder %v1480, 0
    %v1490 = vrot.slane %v1472, 7
    %v1499 = vrot.slane %v1465, 7
    %v1500 = vrot.slane %v1466, 7
    %v1501 = vsel %vm306, %v1499, %v1500
    %v1502 = vrot.slane %v1467, 7
    %v1503 = vsel %vm306, %v1500, %v1502
    %v1504 = vrot.slane %v1468, 7
    %v1505 = vsel %vm306, %v1502, %v1504
    %v1506 = vrot.slane %v1469, 7
    %v1507 = vsel %vm306, %v1504, %v1506
    %v1508 = vrot.slane %v1470, 7
    %v1509 = vsel %vm306, %v1506, %v1508
    %v1510 = vrot.slane %v1471, 7
    %v1511 = vsel %vm306, %v1508, %v1510
    %v1512 = vsel %vm306, %v1510, %v1490
    %v1521 = vsel %vm306, %v1490, %v1499
    %v1522 = vsel %vm1481, 1, 0
    %v1523 = vsel %vm1482, 1, 0
    %v1524 = vsel %vm1483, 1, 0
    %v1525 = vsel %vm1484, 1, 0
    %v1526 = vsel %vm1485, 1, 0
    %v1527 = vsel %vm1486, 1, 0
    %v1528 = vsel %vm1487, 1, 0
    %v1529 = vsel %vm1488, 1, 0
    %vm1530 = vcmp.eq.s32.totalorder %v1522, 1
    %vm1531 = vcmp.eq.s32.totalorder %v1523, 1
    %vm1532 = vcmp.eq.s32.totalorder %v1524, 1
    %vm1533 = vcmp.eq.s32.totalorder %v1525, 1
    %vm1534 = vcmp.eq.s32.totalorder %v1526, 1
    %vm1535 = vcmp.eq.s32.totalorder %v1527, 1
    %vm1536 = vcmp.eq.s32.totalorder %v1528, 1
    %vm1537 = vcmp.eq.s32.totalorder %v1529, 1
    %v1538 = vsel %vm1530, %v1521, 0.0
    %v1539 = vsel %vm1531, %v1501, 0.0
    %v1540 = vsel %vm1532, %v1503, 0.0
    %v1541 = vsel %vm1533, %v1505, 0.0
    %v1542 = vsel %vm1534, %v1507, 0.0
    %v1543 = vsel %vm1535, %v1509, 0.0
    %v1544 = vsel %vm1536, %v1511, 0.0
    %v1545 = vsel %vm1537, %v1512, 0.0
    %vm1546 = vcmp.ne.s32.totalorder %v1473, 31
    %vm1547 = vcmp.ne.s32.totalorder %v1474, 31
    %vm1548 = vcmp.ne.s32.totalorder %v1475, 31
    %vm1549 = vcmp.ne.s32.totalorder %v1476, 31
    %vm1550 = vcmp.ne.s32.totalorder %v1477, 31
    %vm1551 = vcmp.ne.s32.totalorder %v1478, 31
    %vm1552 = vcmp.ne.s32.totalorder %v1479, 31
    %vm1553 = vcmp.ne.s32.totalorder %v1480, 31
    %v1554 = vrot.slane %v1465, 1
    %v1555 = vrot.slane %v1466, 1
    %v1556 = vsel %vm418, %v1554, %v1555
    %v1557 = vrot.slane %v1467, 1
    %v1558 = vsel %vm418, %v1555, %v1557
    %v1559 = vrot.slane %v1468, 1
    %v1560 = vsel %vm418, %v1557, %v1559
    %v1561 = vrot.slane %v1469, 1
    %v1562 = vsel %vm418, %v1559, %v1561
    %v1563 = vrot.slane %v1470, 1
    %v1564 = vsel %vm418, %v1561, %v1563
    %v1565 = vrot.slane %v1471, 1
    %v1566 = vsel %vm418, %v1563, %v1565
    %v1567 = vrot.slane %v1472, 1
    %v1568 = vsel %vm418, %v1565, %v1567
    %v1578 = vsel %vm418, %v1567, %v1554
    %v1579 = vsel %vm1546, 1, 0
    %v1580 = vsel %vm1547, 1, 0
    %v1581 = vsel %vm1548, 1, 0
    %v1582 = vsel %vm1549, 1, 0
    %v1583 = vsel %vm1550, 1, 0
    %v1584 = vsel %vm1551, 1, 0
    %v1585 = vsel %vm1552, 1, 0
    %v1586 = vsel %vm1553, 1, 0
    %vm1587 = vcmp.eq.s32.totalorder %v1579, 1
    %vm1588 = vcmp.eq.s32.totalorder %v1580, 1
    %vm1589 = vcmp.eq.s32.totalorder %v1581, 1
    %vm1590 = vcmp.eq.s32.totalorder %v1582, 1
    %vm1591 = vcmp.eq.s32.totalorder %v1583, 1
    %vm1592 = vcmp.eq.s32.totalorder %v1584, 1
    %vm1593 = vcmp.eq.s32.totalorder %v1585, 1
    %vm1594 = vcmp.eq.s32.totalorder %v1586, 1
    %v1595 = vsel %vm1587, %v1556, 0.0
    %v1596 = vsel %vm1588, %v1558, 0.0
    %v1597 = vsel %vm1589, %v1560, 0.0
    %v1598 = vsel %vm1590, %v1562, 0.0
    %v1599 = vsel %vm1591, %v1564, 0.0
    %v1600 = vsel %vm1592, %v1566, 0.0
    %v1601 = vsel %vm1593, %v1568, 0.0
    %v1602 = vsel %vm1594, %v1578, 0.0
    %v1603 = vpack.c.bf16 %v1539, %v1538
    %v1604 = vpack.c.bf16 %v1466, %v1465
    %v1605 = vpack.c.bf16 %v1596, %v1595
    %v1606 = vpack.c.bf16 %v1541, %v1540
    %v1607 = vpack.c.bf16 %v1468, %v1467
    %v1608 = vpack.c.bf16 %v1598, %v1597
    %v1609 = vpack.c.bf16 %v1543, %v1542
    %v1610 = vpack.c.bf16 %v1470, %v1469
    %v1611 = vpack.c.bf16 %v1600, %v1599
    %v1612 = vpack.c.bf16 %v1545, %v1544
    %v1613 = vpack.c.bf16 %v1472, %v1471
    %v1614 = vpack.c.bf16 %v1602, %v1601
    %v1615 = vld [vmem:[%s5] sm:$0xff]
    %v1616 = vld [vmem:[%s5 + $0x8] sm:$0xff]
    %v1617 = vld [vmem:[%s5 + $0x10] sm:$0xff]
    %v1618 = vld [vmem:[%s5 + $0x18] sm:$0xff]
    %v1619 = vld [vmem:[%s5 + $0x20] sm:$0xff]
    %v1620 = vld [vmem:[%s5 + $0x28] sm:$0xff]
    %v1621 = vld [vmem:[%s5 + $0x30] sm:$0xff]
    %v1622 = vld [vmem:[%s5 + $0x38] sm:$0xff]
    %v1623 = vld [vmem:[%s5 + $0x40] sm:$0xff]
    %v1624 = vld [vmem:[%s5 + $0x48] sm:$0xff]
    %v1625 = vld [vmem:[%s5 + $0x50] sm:$0xff]
    %v1626 = vld [vmem:[%s5 + $0x58] sm:$0xff]
    %v1627 = vld [vmem:[%s5 + $0x60] sm:$0xff]
    %v1628 = vld [vmem:[%s5 + $0x68] sm:$0xff]
    %v1629 = vld [vmem:[%s5 + $0x70] sm:$0xff]
    %v1630 = vld [vmem:[%s5 + $0x78] sm:$0xff]
    %v1631 = vld [vmem:[%s5 + $0x80] sm:$0xff]
    %v1632 = vld [vmem:[%s5 + $0x88] sm:$0xff]
    %v1633 = vld [vmem:[%s5 + $0x90] sm:$0xff]
    %v1634 = vld [vmem:[%s5 + $0x98] sm:$0xff]
    %v1635 = vld [vmem:[%s5 + $0xa0] sm:$0xff]
    %v1636 = vld [vmem:[%s5 + $0xa8] sm:$0xff]
    %v1637 = vld [vmem:[%s5 + $0xb0] sm:$0xff]
    %v1638 = vld [vmem:[%s5 + $0xb8] sm:$0xff]
    %v1639 = vld [vmem:[%s5 + $0xc0] sm:$0xff]
    %v1640 = vld [vmem:[%s5 + $0xc8] sm:$0xff]
    %v1641 = vld [vmem:[%s5 + $0xd0] sm:$0xff]
    %v1642 = vld [vmem:[%s5 + $0xd8] sm:$0xff]
    %v1643 = vld [vmem:[%s5 + $0xe0] sm:$0xff]
    %v1644 = vld [vmem:[%s5 + $0xe8] sm:$0xff]
    %v1645 = vld [vmem:[%s5 + $0xf0] sm:$0xff]
    %v1646 = vld [vmem:[%s5 + $0xf8] sm:$0xff]
    %v1647 = vld [vmem:[%s5 + $0x100] sm:$0xff]
    %v1648 = vld [vmem:[%s5 + $0x108] sm:$0xff]
    %v1649 = vld [vmem:[%s5 + $0x110] sm:$0xff]
    %v1650 = vld [vmem:[%s5 + $0x118] sm:$0xff]
    %v1651 = vld [vmem:[%s5 + $0x120] sm:$0xff]
    %v1652 = vld [vmem:[%s5 + $0x128] sm:$0xff]
    %v1653 = vld [vmem:[%s5 + $0x130] sm:$0xff]
    %v1654 = vld [vmem:[%s5 + $0x138] sm:$0xff]
    %v1655 = vld [vmem:[%s5 + $0x140] sm:$0xff]
    %v1656 = vld [vmem:[%s5 + $0x148] sm:$0xff]
    %v1657 = vld [vmem:[%s5 + $0x150] sm:$0xff]
    %v1658 = vld [vmem:[%s5 + $0x158] sm:$0xff]
    %v1659 = vld [vmem:[%s5 + $0x160] sm:$0xff]
    %v1660 = vld [vmem:[%s5 + $0x168] sm:$0xff]
    %v1661 = vld [vmem:[%s5 + $0x170] sm:$0xff]
    %v1662 = vld [vmem:[%s5 + $0x178] sm:$0xff]
    %v1711 = vunpack.c.l.b16 %v1615
    %v1712 = vunpack.c.h.b16 %v1615
    %v1713 = vunpack.c.l.b16 %v1616
    %v1714 = vunpack.c.h.b16 %v1616
    %v1715 = vunpack.c.l.b16 %v1617
    %v1716 = vunpack.c.h.b16 %v1617
    %v1717 = vunpack.c.l.b16 %v1618
    %v1718 = vunpack.c.h.b16 %v1618
    %v1719 = vunpack.c.l.b16 %v1619
    %v1720 = vunpack.c.h.b16 %v1619
    %v1721 = vunpack.c.l.b16 %v1620
    %v1722 = vunpack.c.h.b16 %v1620
    %v1723 = vunpack.c.l.b16 %v1621
    %v1724 = vunpack.c.h.b16 %v1621
    %v1725 = vunpack.c.l.b16 %v1622
    %v1726 = vunpack.c.h.b16 %v1622
    %v1727 = vunpack.c.l.b16 %v1623
    %v1728 = vunpack.c.h.b16 %v1623
    %v1729 = vunpack.c.l.b16 %v1624
    %v1730 = vunpack.c.h.b16 %v1624
    %v1731 = vunpack.c.l.b16 %v1625
    %v1732 = vunpack.c.h.b16 %v1625
    %v1733 = vunpack.c.l.b16 %v1626
    %v1734 = vunpack.c.h.b16 %v1626
    %v1735 = vunpack.c.l.b16 %v1627
    %v1736 = vunpack.c.h.b16 %v1627
    %v1737 = vunpack.c.l.b16 %v1628
    %v1738 = vunpack.c.h.b16 %v1628
    %v1739 = vunpack.c.l.b16 %v1629
    %v1740 = vunpack.c.h.b16 %v1629
    %v1741 = vunpack.c.l.b16 %v1630
    %v1742 = vunpack.c.h.b16 %v1630
    %v1743 = vunpack.c.l.b16 %v1631
    %v1744 = vunpack.c.h.b16 %v1631
    %v1745 = vunpack.c.l.b16 %v1632
    %v1746 = vunpack.c.h.b16 %v1632
    %v1747 = vunpack.c.l.b16 %v1633
    %v1748 = vunpack.c.h.b16 %v1633
    %v1749 = vunpack.c.l.b16 %v1634
    %v1750 = vunpack.c.h.b16 %v1634
    %v1751 = vunpack.c.l.b16 %v1635
    %v1752 = vunpack.c.h.b16 %v1635
    %v1753 = vunpack.c.l.b16 %v1636
    %v1754 = vunpack.c.h.b16 %v1636
    %v1755 = vunpack.c.l.b16 %v1637
    %v1756 = vunpack.c.h.b16 %v1637
    %v1757 = vunpack.c.l.b16 %v1638
    %v1758 = vunpack.c.h.b16 %v1638
    %v1759 = vunpack.c.l.b16 %v1639
    %v1760 = vunpack.c.h.b16 %v1639
    %v1761 = vunpack.c.l.b16 %v1640
    %v1762 = vunpack.c.h.b16 %v1640
    %v1763 = vunpack.c.l.b16 %v1641
    %v1764 = vunpack.c.h.b16 %v1641
    %v1765 = vunpack.c.l.b16 %v1642
    %v1766 = vunpack.c.h.b16 %v1642
    %v1767 = vunpack.c.l.b16 %v1643
    %v1768 = vunpack.c.h.b16 %v1643
    %v1769 = vunpack.c.l.b16 %v1644
    %v1770 = vunpack.c.h.b16 %v1644
    %v1771 = vunpack.c.l.b16 %v1645
    %v1772 = vunpack.c.h.b16 %v1645
    %v1773 = vunpack.c.l.b16 %v1646
    %v1774 = vunpack.c.h.b16 %v1646
    %v1775 = vunpack.c.l.b16 %v1647
    %v1776 = vunpack.c.h.b16 %v1647
    %v1777 = vunpack.c.l.b16 %v1648
    %v1778 = vunpack.c.h.b16 %v1648
    %v1779 = vunpack.c.l.b16 %v1649
    %v1780 = vunpack.c.h.b16 %v1649
    %v1781 = vunpack.c.l.b16 %v1650
    %v1782 = vunpack.c.h.b16 %v1650
    %v1783 = vunpack.c.l.b16 %v1651
    %v1784 = vunpack.c.h.b16 %v1651
    %v1785 = vunpack.c.l.b16 %v1652
    %v1786 = vunpack.c.h.b16 %v1652
    %v1787 = vunpack.c.l.b16 %v1653
    %v1788 = vunpack.c.h.b16 %v1653
    %v1789 = vunpack.c.l.b16 %v1654
    %v1790 = vunpack.c.h.b16 %v1654
    %v1791 = vunpack.c.l.b16 %v1655
    %v1792 = vunpack.c.h.b16 %v1655
    %v1793 = vunpack.c.l.b16 %v1656
    %v1794 = vunpack.c.h.b16 %v1656
    %v1795 = vunpack.c.l.b16 %v1657
    %v1796 = vunpack.c.h.b16 %v1657
    %v1797 = vunpack.c.l.b16 %v1658
    %v1798 = vunpack.c.h.b16 %v1658
    %v1799 = vunpack.c.l.b16 %v1659
    %v1800 = vunpack.c.h.b16 %v1659
    %v1801 = vunpack.c.l.b16 %v1660
    %v1802 = vunpack.c.h.b16 %v1660
    %v1803 = vunpack.c.l.b16 %v1661
    %v1804 = vunpack.c.h.b16 %v1661
    %v1805 = vunpack.c.l.b16 %v1662
    %v1806 = vunpack.c.h.b16 %v1662
    %v1807 = vpack.c.b16 %v1713, %v1711
    %v1808 = vpack.c.b16 %v1714, %v1712
    %v1809 = vpack.c.b16 %v1717, %v1715
    %v1810 = vpack.c.b16 %v1718, %v1716
    %v1811 = vpack.c.b16 %v1721, %v1719
    %v1812 = vpack.c.b16 %v1722, %v1720
    %v1813 = vpack.c.b16 %v1725, %v1723
    %v1814 = vpack.c.b16 %v1726, %v1724
    %v1815 = vpack.c.b16 %v1729, %v1727
    %v1816 = vpack.c.b16 %v1730, %v1728
    %v1817 = vpack.c.b16 %v1733, %v1731
    %v1818 = vpack.c.b16 %v1734, %v1732
    %v1819 = vpack.c.b16 %v1737, %v1735
    %v1820 = vpack.c.b16 %v1738, %v1736
    %v1821 = vpack.c.b16 %v1741, %v1739
    %v1822 = vpack.c.b16 %v1742, %v1740
    %v1823 = vpack.c.b16 %v1745, %v1743
    %v1824 = vpack.c.b16 %v1746, %v1744
    %v1825 = vpack.c.b16 %v1749, %v1747
    %v1826 = vpack.c.b16 %v1750, %v1748
    %v1827 = vpack.c.b16 %v1753, %v1751
    %v1828 = vpack.c.b16 %v1754, %v1752
    %v1829 = vpack.c.b16 %v1757, %v1755
    %v1830 = vpack.c.b16 %v1758, %v1756
    %v1831 = vpack.c.b16 %v1761, %v1759
    %v1832 = vpack.c.b16 %v1762, %v1760
    %v1833 = vpack.c.b16 %v1765, %v1763
    %v1834 = vpack.c.b16 %v1766, %v1764
    %v1835 = vpack.c.b16 %v1769, %v1767
    %v1836 = vpack.c.b16 %v1770, %v1768
    %v1837 = vpack.c.b16 %v1773, %v1771
    %v1838 = vpack.c.b16 %v1774, %v1772
    %v1839 = vpack.c.b16 %v1777, %v1775
    %v1840 = vpack.c.b16 %v1778, %v1776
    %v1841 = vpack.c.b16 %v1781, %v1779
    %v1842 = vpack.c.b16 %v1782, %v1780
    %v1843 = vpack.c.b16 %v1785, %v1783
    %v1844 = vpack.c.b16 %v1786, %v1784
    %v1845 = vpack.c.b16 %v1789, %v1787
    %v1846 = vpack.c.b16 %v1790, %v1788
    %v1847 = vpack.c.b16 %v1793, %v1791
    %v1848 = vpack.c.b16 %v1794, %v1792
    %v1849 = vpack.c.b16 %v1797, %v1795
    %v1850 = vpack.c.b16 %v1798, %v1796
    %v1851 = vpack.c.b16 %v1801, %v1799
    %v1852 = vpack.c.b16 %v1802, %v1800
    %v1853 = vpack.c.b16 %v1805, %v1803
    %v1854 = vpack.c.b16 %v1806, %v1804
    %1903 = vmatprep.subr.bf16.mxu0 %v1808
    %1904 = vmatpush1.bf16.msra.mxu0 %v1807
    %1905 = vmatprep.subr.bf16.mxu0 %v1810
    %1906 = vmatpush1.bf16.msra.mxu0 %v1809
    %1907 = vmatprep.subr.bf16.mxu0 %v1812
    %1908 = vmatpush1.bf16.msra.mxu0 %v1811
    %1909 = vmatprep.subr.bf16.mxu0 %v1814
    %1910 = vmatpush1.bf16.msra.mxu0 %v1813
    %1911 = vmatprep.subr.bf16.mxu0 %v1816
    %1912 = vmatpush1.bf16.msra.mxu0 %v1815
    %1913 = vmatprep.subr.bf16.mxu0 %v1818
    %1914 = vmatpush1.bf16.msra.mxu0 %v1817
    %1915 = vmatprep.subr.bf16.mxu0 %v1820
    %1916 = vmatpush1.bf16.msra.mxu0 %v1819
    %1917 = vmatprep.subr.bf16.mxu0 %v1822
    %1918 = vmatpush1.bf16.msra.mxu0 %v1821
    %1919 = vmatprep.subr.bf16.mxu0 %v1824
    %1920 = vmatpush1.bf16.msra.mxu0 %v1823
    %1921 = vmatprep.subr.bf16.mxu0 %v1826
    %1922 = vmatpush1.bf16.msra.mxu0 %v1825
    %1923 = vmatprep.subr.bf16.mxu0 %v1828
    %1924 = vmatpush1.bf16.msra.mxu0 %v1827
    %1925 = vmatprep.subr.bf16.mxu0 %v1830
    %1926 = vmatpush1.bf16.msra.mxu0 %v1829
    %1927 = vmatprep.subr.bf16.mxu0 %v1832
    %1928 = vmatpush1.bf16.msra.mxu0 %v1831
    %1929 = vmatprep.subr.bf16.mxu0 %v1834
    %1930 = vmatpush1.bf16.msra.mxu0 %v1833
    %1931 = vmatprep.subr.bf16.mxu0 %v1836
    %1932 = vmatpush1.bf16.msra.mxu0 %v1835
    %1933 = vmatprep.subr.bf16.mxu0 %v1838
    %1934 = vmatpush1.bf16.msra.mxu0 %v1837
    %1935 = vmatprep.mubr.bf16.mxu0 %v1604
    %1936 = vmatmul.mubr.bf16.gmra.mrb[0].mxu0 %v1603
    %v1937 = vpop.f32.mrb[0].mxu0
    %v1938 = vadd.f32 0.0, %v1937
    %v1939 = vpop.f32.mrb[0].mxu0
    %v1940 = vadd.f32 0.0, %v1939
    %v1941 = vpop.f32.mrb[0].mxu0
    %v1942 = vadd.f32 0.0, %v1941
    %v1943 = vpop.f32.mrb[0].mxu0
    %v1944 = vadd.f32 0.0, %v1943
    %1945 = vmatprep.mubr.bf16.mxu0 %v1607
    %1946 = vmatmul.mubr.bf16.gmra.mrb[0].mxu0 %v1606
    %v1947 = vpop.f32.mrb[0].mxu0
    %v1948 = vadd.f32 0.0, %v1947
    %v1949 = vpop.f32.mrb[0].mxu0
    %v1950 = vadd.f32 0.0, %v1949
    %v1951 = vpop.f32.mrb[0].mxu0
    %v1952 = vadd.f32 0.0, %v1951
    %v1953 = vpop.f32.mrb[0].mxu0
    %v1954 = vadd.f32 0.0, %v1953
    %1955 = vmatprep.mubr.bf16.mxu0 %v1610
    %1956 = vmatmul.mubr.bf16.gmra.mrb[0].mxu0 %v1609
    %v1957 = vpop.f32.mrb[0].mxu0
    %v1958 = vadd.f32 0.0, %v1957
    %v1959 = vpop.f32.mrb[0].mxu0
    %v1960 = vadd.f32 0.0, %v1959
    %v1961 = vpop.f32.mrb[0].mxu0
    %v1962 = vadd.f32 0.0, %v1961
    %v1963 = vpop.f32.mrb[0].mxu0
    %v1964 = vadd.f32 0.0, %v1963
    %1965 = vmatprep.mubr.bf16.mxu0 %v1613
    %1966 = vmatmul.mubr.bf16.gmra.mrb[0].mxu0 %v1612
    %v1967 = vpop.f32.mrb[0].mxu0
    %v1968 = vadd.f32 0.0, %v1967
    %v1969 = vpop.f32.mrb[0].mxu0
    %v1970 = vadd.f32 0.0, %v1969
    %v1971 = vpop.f32.mrb[0].mxu0
    %v1972 = vadd.f32 0.0, %v1971
    %v1973 = vpop.f32.mrb[0].mxu0
    %v1974 = vadd.f32 0.0, %v1973
    %1975 = vdwg.mxu0
    %1976 = vmatprep.subr.bf16.mxu0 %v1840
    %1977 = vmatpush1.bf16.msra.mxu0 %v1839
    %1978 = vmatprep.subr.bf16.mxu0 %v1842
    %1979 = vmatpush1.bf16.msra.mxu0 %v1841
    %1980 = vmatprep.subr.bf16.mxu0 %v1844
    %1981 = vmatpush1.bf16.msra.mxu0 %v1843
    %1982 = vmatprep.subr.bf16.mxu0 %v1846
    %1983 = vmatpush1.bf16.msra.mxu0 %v1845
    %1984 = vmatprep.subr.bf16.mxu0 %v1848
    %1985 = vmatpush1.bf16.msra.mxu0 %v1847
    %1986 = vmatprep.subr.bf16.mxu0 %v1850
    %1987 = vmatpush1.bf16.msra.mxu0 %v1849
    %1988 = vmatprep.subr.bf16.mxu0 %v1852
    %1989 = vmatpush1.bf16.msra.mxu0 %v1851
    %1990 = vmatprep.subr.bf16.mxu0 %v1854
    %1991 = vmatpush1.bf16.msra.mxu0 %v1853
    %1992 = vmatprep.subr.bf16.mxu0 0
    %1993 = vmatpush1.bf16.msra.mxu0 0
    %1994 = vmatprep.subr.bf16.mxu0 0
    %1995 = vmatpush1.bf16.msra.mxu0 0
    %1996 = vmatprep.subr.bf16.mxu0 0
    %1997 = vmatpush1.bf16.msra.mxu0 0
    %1998 = vmatprep.subr.bf16.mxu0 0
    %1999 = vmatpush1.bf16.msra.mxu0 0
    %2000 = vmatprep.subr.bf16.mxu0 0
    %2001 = vmatpush1.bf16.msra.mxu0 0
    %2002 = vmatprep.subr.bf16.mxu0 0
    %2003 = vmatpush1.bf16.msra.mxu0 0
    %2004 = vmatprep.subr.bf16.mxu0 0
    %2005 = vmatpush1.bf16.msra.mxu0 0
    %2006 = vmatprep.subr.bf16.mxu0 0
    %2007 = vmatpush1.bf16.msra.mxu0 0
    %2008 = vmatprep.mubr.bf16.mxu0 0
    %2009 = vmatmul.mubr.bf16.gmra.mrb[0].mxu0 %v1605
    %v2010 = vpop.f32.mrb[0].mxu0
    %v2011 = vadd.f32 %v1938, %v2010
    %v2012 = vpop.f32.mrb[0].mxu0
    %v2013 = vadd.f32 %v1940, %v2012
    %v2014 = vpop.f32.mrb[0].mxu0
    %v2015 = vadd.f32 %v1942, %v2014
    %v2016 = vpop.f32.mrb[0].mxu0
    %v2017 = vadd.f32 %v1944, %v2016
    %2018 = vmatprep.mubr.bf16.mxu0 0
    %2019 = vmatmul.mubr.bf16.gmra.mrb[0].mxu0 %v1608
    %v2020 = vpop.f32.mrb[0].mxu0
    %v2021 = vadd.f32 %v1948, %v2020
    %v2022 = vpop.f32.mrb[0].mxu0
    %v2023 = vadd.f32 %v1950, %v2022
    %v2024 = vpop.f32.mrb[0].mxu0
    %v2025 = vadd.f32 %v1952, %v2024
    %v2026 = vpop.f32.mrb[0].mxu0
    %v2027 = vadd.f32 %v1954, %v2026
    %2028 = vmatprep.mubr.bf16.mxu0 0
    %2029 = vmatmul.mubr.bf16.gmra.mrb[0].mxu0 %v1611
    %v2030 = vpop.f32.mrb[0].mxu0
    %v2031 = vadd.f32 %v1958, %v2030
    %v2032 = vpop.f32.mrb[0].mxu0
    %v2033 = vadd.f32 %v1960, %v2032
    %v2034 = vpop.f32.mrb[0].mxu0
    %v2035 = vadd.f32 %v1962, %v2034
    %v2036 = vpop.f32.mrb[0].mxu0
    %v2037 = vadd.f32 %v1964, %v2036
    %2038 = vmatprep.mubr.bf16.mxu0 0
    %2039 = vmatmul.mubr.bf16.gmra.mrb[0].mxu0 %v1614
    %v2040 = vpop.f32.mrb[0].mxu0
    %v2041 = vadd.f32 %v1968, %v2040
    %v2042 = vpop.f32.mrb[0].mxu0
    %v2043 = vadd.f32 %v1970, %v2042
    %v2044 = vpop.f32.mrb[0].mxu0
    %v2045 = vadd.f32 %v1972, %v2044
    %v2046 = vpop.f32.mrb[0].mxu0
    %v2047 = vadd.f32 %v1974, %v2046
    %2048 = vdwg.mxu0
    %v2049 = vld [vmem:[%s8] sm:$0xff]
    %v2050 = vld [vmem:[%s8 + $0x8] sm:$0xff]
    %v2051 = vld [vmem:[%s8 + $0x10] sm:$0xff]
    %v2052 = vld [vmem:[%s8 + $0x18] sm:$0xff]
    %vm2053 = vcmask 261120
    %v2055 = vsel %vm2053, %v2049, 0
    %v2058 = vsel %vm2053, %v2050, 0
    %v2061 = vsel %vm2053, %v2051, 0
    %v2064 = vsel %vm2053, %v2052, 0
    %2066 = vmatprep.subr.mxu0 %v2013
    %2067 = vmatpush1.msra.mxu0 %v2011
    %2068 = vmatprep.subr.mxu0 %v2017
    %2069 = vmatpush1.msra.mxu0 %v2015
    %2070 = vmatprep.subr.mxu0 %v2023
    %2071 = vmatpush1.msra.mxu0 %v2021
    %2072 = vmatprep.subr.mxu0 %v2027
    %2073 = vmatpush1.msra.mxu0 %v2025
    %2074 = vmatprep.subr.mxu0 0.0
    %2075 = vmatpush1.msra.mxu0 0.0
    %2076 = vmatprep.subr.mxu0 0.0
    %2077 = vmatpush1.msra.mxu0 0.0
    %2078 = vmatprep.subr.mxu0 0.0
    %2079 = vmatpush1.msra.mxu0 0.0
    %2080 = vmatprep.subr.mxu0 0.0
    %2081 = vmatpush1.msra.mxu0 0.0
    %2082 = vmatprep.subr.mxu0 0.0
    %2083 = vmatpush1.msra.mxu0 0.0
    %2084 = vmatprep.subr.mxu0 0.0
    %2085 = vmatpush1.msra.mxu0 0.0
    %2086 = vmatprep.subr.mxu0 0.0
    %2087 = vmatpush1.msra.mxu0 0.0
    %2088 = vmatprep.subr.mxu0 0.0
    %2089 = vmatpush1.msra.mxu0 0.0
    %2090 = vmatprep.subr.mxu0 0.0
    %2091 = vmatpush1.msra.mxu0 0.0
    %2092 = vmatprep.subr.mxu0 0.0
    %2093 = vmatpush1.msra.mxu0 0.0
    %2094 = vmatprep.subr.mxu0 0.0
    %2095 = vmatpush1.msra.mxu0 0.0
    %2096 = vmatprep.subr.mxu0 0.0
    %2097 = vmatpush1.msra.mxu0 0.0
    %2098 = vmatprep.subr.mxu0 0.0
    %2099 = vmatpush1.msra.mxu0 0.0
    %2100 = vmatprep.subr.mxu0 0.0
    %2101 = vmatpush1.msra.mxu0 0.0
    %2102 = vmatprep.subr.mxu0 0.0
    %2103 = vmatpush1.msra.mxu0 0.0
    %2104 = vmatprep.subr.mxu0 0.0
    %2105 = vmatpush1.msra.mxu0 0.0
    %2106 = vmatprep.subr.mxu0 0.0
    %2107 = vmatpush1.msra.mxu0 0.0
    %2108 = vmatprep.subr.mxu0 0.0
    %2109 = vmatpush1.msra.mxu0 0.0
    %2110 = vmatprep.subr.mxu0 0.0
    %2111 = vmatpush1.msra.mxu0 0.0
    %2112 = vmatprep.subr.mxu0 0.0
    %2113 = vmatpush1.msra.mxu0 0.0
    %2114 = vmatprep.subr.mxu0 0.0
    %2115 = vmatpush1.msra.mxu0 0.0
    %2116 = vmatprep.subr.mxu0 0.0
    %2117 = vmatpush1.msra.mxu0 0.0
    %2118 = vmatprep.subr.mxu0 0.0
    %2119 = vmatpush1.msra.mxu0 0.0
    %2120 = vmatprep.subr.mxu0 0.0
    %2121 = vmatpush1.msra.mxu0 0.0
    %2122 = vmatprep.subr.mxu0 0.0
    %2123 = vmatpush1.msra.mxu0 0.0
    %2124 = vmatprep.subr.mxu0 0.0
    %2125 = vmatpush1.msra.mxu0 0.0
    %2126 = vmatprep.subr.mxu0 0.0
    %2127 = vmatpush1.msra.mxu0 0.0
    %2128 = vmatprep.subr.mxu0 0.0
    %2129 = vmatpush1.msra.mxu0 0.0
    %2130 = vmatprep.mubr.f32.mxu0 0.0
    %2131 = vmatmul.mubr.f32.gmra.mrb[0].mxu0 %v2055
    %v2132 = vpop.f32.mrb[0].mxu0
    %v2133 = vadd.f32 0.0, %v2132
    %v2134 = vpop.f32.mrb[0].mxu0
    %v2135 = vadd.f32 0.0, %v2134
    %2136 = vmatprep.mubr.f32.mxu0 0.0
    %2137 = vmatmul.mubr.f32.gmra.mrb[0].mxu0 %v2058
    %v2138 = vpop.f32.mrb[0].mxu0
    %v2139 = vadd.f32 0.0, %v2138
    %v2140 = vpop.f32.mrb[0].mxu0
    %v2141 = vadd.f32 0.0, %v2140
    %2142 = vmatprep.mubr.f32.mxu0 0.0
    %2143 = vmatmul.mubr.f32.gmra.mrb[0].mxu0 %v2061
    %v2144 = vpop.f32.mrb[0].mxu0
    %v2145 = vadd.f32 0.0, %v2144
    %v2146 = vpop.f32.mrb[0].mxu0
    %v2147 = vadd.f32 0.0, %v2146
    %2148 = vmatprep.mubr.f32.mxu0 0.0
    %2149 = vmatmul.mubr.f32.gmra.mrb[0].mxu0 %v2064
    %v2150 = vpop.f32.mrb[0].mxu0
    %v2151 = vadd.f32 0.0, %v2150
    %v2152 = vpop.f32.mrb[0].mxu0
    %v2153 = vadd.f32 0.0, %v2152
    %2154 = vdwg.mxu0
    %2155 = vmatprep.subr.mxu0 %v2033
    %2156 = vmatpush1.msra.mxu0 %v2031
    %2157 = vmatprep.subr.mxu0 %v2037
    %2158 = vmatpush1.msra.mxu0 %v2035
    %2159 = vmatprep.subr.mxu0 %v2043
    %2160 = vmatpush1.msra.mxu0 %v2041
    %2161 = vmatprep.subr.mxu0 %v2047
    %2162 = vmatpush1.msra.mxu0 %v2045
    %2163 = vmatprep.subr.mxu0 0.0
    %2164 = vmatpush1.msra.mxu0 0.0
    %2165 = vmatprep.subr.mxu0 0.0
    %2166 = vmatpush1.msra.mxu0 0.0
    %2167 = vmatprep.subr.mxu0 0.0
    %2168 = vmatpush1.msra.mxu0 0.0
    %2169 = vmatprep.subr.mxu0 0.0
    %2170 = vmatpush1.msra.mxu0 0.0
    %2171 = vmatprep.subr.mxu0 0.0
    %2172 = vmatpush1.msra.mxu0 0.0
    %2173 = vmatprep.subr.mxu0 0.0
    %2174 = vmatpush1.msra.mxu0 0.0
    %2175 = vmatprep.subr.mxu0 0.0
    %2176 = vmatpush1.msra.mxu0 0.0
    %2177 = vmatprep.subr.mxu0 0.0
    %2178 = vmatpush1.msra.mxu0 0.0
    %2179 = vmatprep.subr.mxu0 0.0
    %2180 = vmatpush1.msra.mxu0 0.0
    %2181 = vmatprep.subr.mxu0 0.0
    %2182 = vmatpush1.msra.mxu0 0.0
    %2183 = vmatprep.subr.mxu0 0.0
    %2184 = vmatpush1.msra.mxu0 0.0
    %2185 = vmatprep.subr.mxu0 0.0
    %2186 = vmatpush1.msra.mxu0 0.0
    %2187 = vmatprep.subr.mxu0 0.0
    %2188 = vmatpush1.msra.mxu0 0.0
    %2189 = vmatprep.subr.mxu0 0.0
    %2190 = vmatpush1.msra.mxu0 0.0
    %2191 = vmatprep.subr.mxu0 0.0
    %2192 = vmatpush1.msra.mxu0 0.0
    %2193 = vmatprep.subr.mxu0 0.0
    %2194 = vmatpush1.msra.mxu0 0.0
    %2195 = vmatprep.subr.mxu0 0.0
    %2196 = vmatpush1.msra.mxu0 0.0
    %2197 = vmatprep.subr.mxu0 0.0
    %2198 = vmatpush1.msra.mxu0 0.0
    %2199 = vmatprep.subr.mxu0 0.0
    %2200 = vmatpush1.msra.mxu0 0.0
    %2201 = vmatprep.subr.mxu0 0.0
    %2202 = vmatpush1.msra.mxu0 0.0
    %2203 = vmatprep.subr.mxu0 0.0
    %2204 = vmatpush1.msra.mxu0 0.0
    %2205 = vmatprep.subr.mxu0 0.0
    %2206 = vmatpush1.msra.mxu0 0.0
    %2207 = vmatprep.subr.mxu0 0.0
    %2208 = vmatpush1.msra.mxu0 0.0
    %2209 = vmatprep.subr.mxu0 0.0
    %2210 = vmatpush1.msra.mxu0 0.0
    %2211 = vmatprep.subr.mxu0 0.0
    %2212 = vmatpush1.msra.mxu0 0.0
    %2213 = vmatprep.subr.mxu0 0.0
    %2214 = vmatpush1.msra.mxu0 0.0
    %2215 = vmatprep.subr.mxu0 0.0
    %2216 = vmatpush1.msra.mxu0 0.0
    %2217 = vmatprep.subr.mxu0 0.0
    %2218 = vmatpush1.msra.mxu0 0.0
    %2219 = vmatprep.mubr.f32.mxu0 0.0
    %2220 = vmatmul.mubr.f32.gmra.mrb[0].mxu0 %v2055
    %v2221 = vpop.f32.mrb[0].mxu0
    %v2222 = vadd.f32 0.0, %v2221
    %v2223 = vpop.f32.mrb[0].mxu0
    %v2224 = vadd.f32 0.0, %v2223
    %2225 = vmatprep.mubr.f32.mxu0 0.0
    %2226 = vmatmul.mubr.f32.gmra.mrb[0].mxu0 %v2058
    %v2227 = vpop.f32.mrb[0].mxu0
    %v2228 = vadd.f32 0.0, %v2227
    %v2229 = vpop.f32.mrb[0].mxu0
    %v2230 = vadd.f32 0.0, %v2229
    %2231 = vmatprep.mubr.f32.mxu0 0.0
    %2232 = vmatmul.mubr.f32.gmra.mrb[0].mxu0 %v2061
    %v2233 = vpop.f32.mrb[0].mxu0
    %v2234 = vadd.f32 0.0, %v2233
    %v2235 = vpop.f32.mrb[0].mxu0
    %v2236 = vadd.f32 0.0, %v2235
    %2237 = vmatprep.mubr.f32.mxu0 0.0
    %2238 = vmatmul.mubr.f32.gmra.mrb[0].mxu0 %v2064
    %v2239 = vpop.f32.mrb[0].mxu0
    %v2240 = vadd.f32 0.0, %v2239
    %v2241 = vpop.f32.mrb[0].mxu0
    %v2242 = vadd.f32 0.0, %v2241
    %2243 = vdwg.mxu0
    %v2244 = vmax.f32 %v2133, %v2145
    %v2245 = vmax.f32 %v2135, %v2147
    %v2246 = vmax.f32 %v2139, %v2151
    %v2247 = vmax.f32 %v2141, %v2153
    %v2248 = vmax.f32 %v2222, %v2234
    %v2249 = vmax.f32 %v2224, %v2236
    %v2250 = vmax.f32 %v2228, %v2240
    %v2251 = vmax.f32 %v2230, %v2242
    %2260 = vrot.lane.b32.xlu0 %v2244, 120
    %v2261 = vpop.permute.xlu0 %2260
    %2262 = vrot.lane.b32.xlu0 %v2245, 120
    %v2263 = vpop.permute.xlu0 %2262
    %2264 = vrot.lane.b32.xlu0 %v2246, 120
    %v2265 = vpop.permute.xlu0 %2264
    %2266 = vrot.lane.b32.xlu0 %v2247, 120
    %v2267 = vpop.permute.xlu0 %2266
    %2268 = vrot.lane.b32.xlu0 %v2248, 120
    %v2269 = vpop.permute.xlu0 %2268
    %2270 = vrot.lane.b32.xlu0 %v2249, 120
    %v2271 = vpop.permute.xlu0 %2270
    %2272 = vrot.lane.b32.xlu0 %v2250, 120
    %v2273 = vpop.permute.xlu0 %2272
    %2274 = vrot.lane.b32.xlu0 %v2251, 120
    %v2275 = vpop.permute.xlu0 %2274
    %vm2276 = vcmask 982016
    %v2277 = vsel %vm2276, %v2261, %v2263
    %v2278 = vsel %vm2276, %v2265, %v2267
    %v2279 = vsel %vm2276, %v2269, %v2271
    %v2280 = vsel %vm2276, %v2273, %v2275
    %v2293 = vsel %vm2276, %v2263, %v2261
    %v2294 = vsel %vm2276, %v2267, %v2265
    %v2295 = vsel %vm2276, %v2271, %v2269
    %v2296 = vsel %vm2276, %v2275, %v2273
    %v2297 = vmax.f32 %v2244, %v2277
    %v2298 = vmax.f32 %v2245, %v2293
    %v2299 = vmax.f32 %v2246, %v2278
    %v2300 = vmax.f32 %v2247, %v2294
    %v2301 = vmax.f32 %v2248, %v2279
    %v2302 = vmax.f32 %v2249, %v2295
    %v2303 = vmax.f32 %v2250, %v2280
    %v2304 = vmax.f32 %v2251, %v2296
    %v2305 = vpack.c.bf16 %v2299, %v2297
    %v2306 = vpack.c.bf16 %v2300, %v2298
    %v2307 = vpack.c.bf16 %v2303, %v2301
    %v2308 = vpack.c.bf16 %v2304, %v2302
    %v2309 = vld [vmem:[#allocation11] sm:$0xf]
    %v2310 = vld [vmem:[#allocation11 + $0x4] sm:$0xf]
    %v2311 = vld [vmem:[#allocation11 + $0x8] sm:$0xf]
    %v2312 = vld [vmem:[#allocation11 + $0xc] sm:$0xf]
    %v2313 = vld [vmem:[#allocation11 + $0x10] sm:$0xf]
    %v2314 = vld [vmem:[#allocation11 + $0x14] sm:$0xf]
    %v2315 = vld [vmem:[#allocation11 + $0x18] sm:$0xf]
    %v2316 = vld [vmem:[#allocation11 + $0x1c] sm:$0xf]
    %v2317 = vld [vmem:[#allocation11 + $0x20] sm:$0xf]
    %v2318 = vld [vmem:[#allocation11 + $0x24] sm:$0xf]
    %v2319 = vld [vmem:[#allocation11 + $0x28] sm:$0xf]
    %v2320 = vld [vmem:[#allocation11 + $0x2c] sm:$0xf]
    %v2321 = vld [vmem:[#allocation11 + $0x30] sm:$0xf]
    %v2322 = vld [vmem:[#allocation11 + $0x34] sm:$0xf]
    %v2323 = vld [vmem:[#allocation11 + $0x38] sm:$0xf]
    %v2324 = vld [vmem:[#allocation11 + $0x3c] sm:$0xf]
    %v2325 = vld [vmem:[#allocation11 + $0x40] sm:$0xf]
    %v2326 = vld [vmem:[#allocation11 + $0x44] sm:$0xf]
    %v2327 = vld [vmem:[#allocation11 + $0x48] sm:$0xf]
    %v2328 = vld [vmem:[#allocation11 + $0x4c] sm:$0xf]
    %v2329 = vld [vmem:[#allocation11 + $0x50] sm:$0xf]
    %v2330 = vld [vmem:[#allocation11 + $0x54] sm:$0xf]
    %v2331 = vld [vmem:[#allocation11 + $0x58] sm:$0xf]
    %v2332 = vld [vmem:[#allocation11 + $0x5c] sm:$0xf]
    %v2333 = vld [vmem:[#allocation11 + $0x60] sm:$0xf]
    %v2334 = vld [vmem:[#allocation11 + $0x64] sm:$0xf]
    %v2335 = vld [vmem:[#allocation11 + $0x68] sm:$0xf]
    %v2336 = vld [vmem:[#allocation11 + $0x6c] sm:$0xf]
    %v2337 = vld [vmem:[#allocation11 + $0x70] sm:$0xf]
    %v2338 = vld [vmem:[#allocation11 + $0x74] sm:$0xf]
    %v2339 = vld [vmem:[#allocation11 + $0x78] sm:$0xf]
    %v2340 = vld [vmem:[#allocation11 + $0x7c] sm:$0xf]
    %v2341 = vld [vmem:[#allocation12] sm:$0x1]
    %v2343 = vlaneseq
    %v2344 = vshrl.u32 %v2343, 7
    %v2345 = vsub.s32 0, %v2344
    %v2346 = vrot.slane %v2341, %v2345
    %v2380 = vunpack.c.l.b16 %v2309
    %v2381 = vunpack.c.l.b16 %v2310
    %v2382 = vunpack.c.l.b16 %v2311
    %v2383 = vunpack.c.l.b16 %v2312
    %v2384 = vunpack.c.l.b16 %v2313
    %v2385 = vunpack.c.l.b16 %v2314
    %v2386 = vunpack.c.l.b16 %v2315
    %v2387 = vunpack.c.l.b16 %v2316
    %v2388 = vunpack.c.l.b16 %v2317
    %v2389 = vunpack.c.l.b16 %v2318
    %v2390 = vunpack.c.l.b16 %v2319
    %v2391 = vunpack.c.l.b16 %v2320
    %v2392 = vunpack.c.l.b16 %v2321
    %v2393 = vunpack.c.l.b16 %v2322
    %v2394 = vunpack.c.l.b16 %v2323
    %v2395 = vunpack.c.l.b16 %v2324
    %v2396 = vunpack.c.l.b16 %v2325
    %v2397 = vunpack.c.l.b16 %v2326
    %v2398 = vunpack.c.l.b16 %v2327
    %v2399 = vunpack.c.l.b16 %v2328
    %v2400 = vunpack.c.l.b16 %v2329
    %v2401 = vunpack.c.l.b16 %v2330
    %v2402 = vunpack.c.l.b16 %v2331
    %v2403 = vunpack.c.l.b16 %v2332
    %v2404 = vunpack.c.l.b16 %v2333
    %v2405 = vunpack.c.l.b16 %v2334
    %v2406 = vunpack.c.l.b16 %v2335
    %v2407 = vunpack.c.l.b16 %v2336
    %v2408 = vunpack.c.l.b16 %v2337
    %v2409 = vunpack.c.l.b16 %v2338
    %v2410 = vunpack.c.l.b16 %v2339
    %v2411 = vunpack.c.l.b16 %v2340
    %v2412 = vpack.c.b16 %v2381, %v2380
    %v2413 = vpack.c.b16 %v2383, %v2382
    %v2414 = vpack.c.b16 %v2385, %v2384
    %v2415 = vpack.c.b16 %v2387, %v2386
    %v2416 = vpack.c.b16 %v2389, %v2388
    %v2417 = vpack.c.b16 %v2391, %v2390
    %v2418 = vpack.c.b16 %v2393, %v2392
    %v2419 = vpack.c.b16 %v2395, %v2394
    %v2420 = vpack.c.b16 %v2397, %v2396
    %v2421 = vpack.c.b16 %v2399, %v2398
    %v2422 = vpack.c.b16 %v2401, %v2400
    %v2423 = vpack.c.b16 %v2403, %v2402
    %v2424 = vpack.c.b16 %v2405, %v2404
    %v2425 = vpack.c.b16 %v2407, %v2406
    %v2426 = vpack.c.b16 %v2409, %v2408
    %v2427 = vpack.c.b16 %v2411, %v2410
    %2444 = vmatprep.subr.bf16.mxu0 0
    %2445 = vmatpush1.bf16.msra.mxu0 %v2412
    %2446 = vmatprep.subr.bf16.mxu0 0
    %2447 = vmatpush1.bf16.msra.mxu0 %v2413
    %2448 = vmatprep.subr.bf16.mxu0 0
    %2449 = vmatpush1.bf16.msra.mxu0 %v2414
    %2450 = vmatprep.subr.bf16.mxu0 0
    %2451 = vmatpush1.bf16.msra.mxu0 %v2415
    %2452 = vmatprep.subr.bf16.mxu0 0
    %2453 = vmatpush1.bf16.msra.mxu0 %v2416
    %2454 = vmatprep.subr.bf16.mxu0 0
    %2455 = vmatpush1.bf16.msra.mxu0 %v2417
    %2456 = vmatprep.subr.bf16.mxu0 0
    %2457 = vmatpush1.bf16.msra.mxu0 %v2418
    %2458 = vmatprep.subr.bf16.mxu0 0
    %2459 = vmatpush1.bf16.msra.mxu0 %v2419
    %2460 = vmatprep.subr.bf16.mxu0 0
    %2461 = vmatpush1.bf16.msra.mxu0 %v2420
    %2462 = vmatprep.subr.bf16.mxu0 0
    %2463 = vmatpush1.bf16.msra.mxu0 %v2421
    %2464 = vmatprep.subr.bf16.mxu0 0
    %2465 = vmatpush1.bf16.msra.mxu0 %v2422
    %2466 = vmatprep.subr.bf16.mxu0 0
    %2467 = vmatpush1.bf16.msra.mxu0 %v2423
    %2468 = vmatprep.subr.bf16.mxu0 0
    %2469 = vmatpush1.bf16.msra.mxu0 %v2424
    %2470 = vmatprep.subr.bf16.mxu0 0
    %2471 = vmatpush1.bf16.msra.mxu0 %v2425
    %2472 = vmatprep.subr.bf16.mxu0 0
    %2473 = vmatpush1.bf16.msra.mxu0 %v2426
    %2474 = vmatprep.subr.bf16.mxu0 0
    %2475 = vmatpush1.bf16.msra.mxu0 %v2427
    %2476 = vmatprep.mubr.bf16.mxu0 %v2306
    %2477 = vmatmul.mubr.bf16.gmra.mrb[0].mxu0 %v2305
    %v2478 = vpop.f32.mrb[0].mxu0
    %v2479 = vadd.f32 %v2346, %v2478
    %v2480 = vpop.f32.mrb[0].mxu0
    %v2481 = vpop.f32.mrb[0].mxu0
    %v2482 = vadd.f32 %v2346, %v2481
    %v2483 = vpop.f32.mrb[0].mxu0
    %2484 = vmatprep.mubr.bf16.mxu0 %v2308
    %2485 = vmatmul.mubr.bf16.gmra.mrb[0].mxu0 %v2307
    %v2486 = vpop.f32.mrb[0].mxu0
    %v2487 = vadd.f32 %v2346, %v2486
    %v2488 = vpop.f32.mrb[0].mxu0
    %v2489 = vpop.f32.mrb[0].mxu0
    %v2490 = vadd.f32 %v2346, %v2489
    %v2491 = vpop.f32.mrb[0].mxu0
    %2492 = vdwg.mxu0
    %v2493 = vmax.f32 %v2479, 0.0
    %v2494 = vmax.f32 %v2482, 0.0
    %v2495 = vmax.f32 %v2487, 0.0
    %v2496 = vmax.f32 %v2490, 0.0
    %v2497 = vand.u32 %v240, 15
    %v2498 = vand.u32 %v241, 15
    %v2499 = vand.u32 %v242, 15
    %v2500 = vand.u32 %v243, 15
    %vm2501 = vcmp.ne.s32.totalorder %v2497, 0
    %vm2502 = vcmp.ne.s32.totalorder %v2498, 0
    %vm2503 = vcmp.ne.s32.totalorder %v2499, 0
    %vm2504 = vcmp.ne.s32.totalorder %v2500, 0
    %v2506 = vrot.slane %v2496, 7
    %v2511 = vrot.slane %v2493, 7
    %v2512 = vrot.slane %v2494, 7
    %v2513 = vsel %vm306, %v2511, %v2512
    %v2514 = vrot.slane %v2495, 7
    %v2515 = vsel %vm306, %v2512, %v2514
    %v2516 = vsel %vm306, %v2514, %v2506
    %v2521 = vsel %vm306, %v2506, %v2511
    %v2522 = vsel %vm2501, 1, 0
    %v2523 = vsel %vm2502, 1, 0
    %v2524 = vsel %vm2503, 1, 0
    %v2525 = vsel %vm2504, 1, 0
    %vm2526 = vcmp.eq.s32.totalorder %v2522, 1
    %vm2527 = vcmp.eq.s32.totalorder %v2523, 1
    %vm2528 = vcmp.eq.s32.totalorder %v2524, 1
    %vm2529 = vcmp.eq.s32.totalorder %v2525, 1
    %v2530 = vsel %vm2526, %v2521, 0.0
    %v2531 = vsel %vm2527, %v2513, 0.0
    %v2532 = vsel %vm2528, %v2515, 0.0
    %v2533 = vsel %vm2529, %v2516, 0.0
    %vm2534 = vcmp.ne.s32.totalorder %v2497, 15
    %vm2535 = vcmp.ne.s32.totalorder %v2498, 15
    %vm2536 = vcmp.ne.s32.totalorder %v2499, 15
    %vm2537 = vcmp.ne.s32.totalorder %v2500, 15
    %v2538 = vrot.slane %v2493, 1
    %v2539 = vrot.slane %v2494, 1
    %v2540 = vsel %vm418, %v2538, %v2539
    %v2541 = vrot.slane %v2495, 1
    %v2542 = vsel %vm418, %v2539, %v2541
    %v2543 = vrot.slane %v2496, 1
    %v2544 = vsel %vm418, %v2541, %v2543
    %v2550 = vsel %vm418, %v2543, %v2538
    %v2551 = vsel %vm2534, 1, 0
    %v2552 = vsel %vm2535, 1, 0
    %v2553 = vsel %vm2536, 1, 0
    %v2554 = vsel %vm2537, 1, 0
    %vm2555 = vcmp.eq.s32.totalorder %v2551, 1
    %vm2556 = vcmp.eq.s32.totalorder %v2552, 1
    %vm2557 = vcmp.eq.s32.totalorder %v2553, 1
    %vm2558 = vcmp.eq.s32.totalorder %v2554, 1
    %v2559 = vsel %vm2555, %v2540, 0.0
    %v2560 = vsel %vm2556, %v2542, 0.0
    %v2561 = vsel %vm2557, %v2544, 0.0
    %v2562 = vsel %vm2558, %v2550, 0.0
    %v2563 = vpack.c.bf16 %v2531, %v2530
    %v2564 = vpack.c.bf16 %v2494, %v2493
    %v2565 = vpack.c.bf16 %v2560, %v2559
    %v2566 = vpack.c.bf16 %v2533, %v2532
    %v2567 = vpack.c.bf16 %v2496, %v2495
    %v2568 = vpack.c.bf16 %v2562, %v2561
    %v2569 = vld [vmem:[%s9] sm:$0xff]
    %v2570 = vld [vmem:[%s9 + $0x8] sm:$0xff]
    %v2571 = vld [vmem:[%s9 + $0x10] sm:$0xff]
    %v2572 = vld [vmem:[%s9 + $0x18] sm:$0xff]
    %v2573 = vld [vmem:[%s9 + $0x20] sm:$0xff]
    %v2574 = vld [vmem:[%s9 + $0x28] sm:$0xff]
    %v2575 = vld [vmem:[%s9 + $0x30] sm:$0xff]
    %v2576 = vld [vmem:[%s9 + $0x38] sm:$0xff]
    %v2577 = vld [vmem:[%s9 + $0x40] sm:$0xff]
    %v2578 = vld [vmem:[%s9 + $0x48] sm:$0xff]
    %v2579 = vld [vmem:[%s9 + $0x50] sm:$0xff]
    %v2580 = vld [vmem:[%s9 + $0x58] sm:$0xff]
    %v2581 = vld [vmem:[%s9 + $0x60] sm:$0xff]
    %v2582 = vld [vmem:[%s9 + $0x68] sm:$0xff]
    %v2583 = vld [vmem:[%s9 + $0x70] sm:$0xff]
    %v2584 = vld [vmem:[%s9 + $0x78] sm:$0xff]
    %v2585 = vld [vmem:[%s9 + $0x80] sm:$0xff]
    %v2586 = vld [vmem:[%s9 + $0x88] sm:$0xff]
    %v2587 = vld [vmem:[%s9 + $0x90] sm:$0xff]
    %v2588 = vld [vmem:[%s9 + $0x98] sm:$0xff]
    %v2589 = vld [vmem:[%s9 + $0xa0] sm:$0xff]
    %v2590 = vld [vmem:[%s9 + $0xa8] sm:$0xff]
    %v2591 = vld [vmem:[%s9 + $0xb0] sm:$0xff]
    %v2592 = vld [vmem:[%s9 + $0xb8] sm:$0xff]
    %v2593 = vld [vmem:[%s9 + $0xc0] sm:$0xff]
    %v2594 = vld [vmem:[%s9 + $0xc8] sm:$0xff]
    %v2595 = vld [vmem:[%s9 + $0xd0] sm:$0xff]
    %v2596 = vld [vmem:[%s9 + $0xd8] sm:$0xff]
    %v2597 = vld [vmem:[%s9 + $0xe0] sm:$0xff]
    %v2598 = vld [vmem:[%s9 + $0xe8] sm:$0xff]
    %v2599 = vld [vmem:[%s9 + $0xf0] sm:$0xff]
    %v2600 = vld [vmem:[%s9 + $0xf8] sm:$0xff]
    %v2601 = vld [vmem:[%s9 + $0x100] sm:$0xff]
    %v2602 = vld [vmem:[%s9 + $0x108] sm:$0xff]
    %v2603 = vld [vmem:[%s9 + $0x110] sm:$0xff]
    %v2604 = vld [vmem:[%s9 + $0x118] sm:$0xff]
    %v2605 = vld [vmem:[%s9 + $0x120] sm:$0xff]
    %v2606 = vld [vmem:[%s9 + $0x128] sm:$0xff]
    %v2607 = vld [vmem:[%s9 + $0x130] sm:$0xff]
    %v2608 = vld [vmem:[%s9 + $0x138] sm:$0xff]
    %v2609 = vld [vmem:[%s9 + $0x140] sm:$0xff]
    %v2610 = vld [vmem:[%s9 + $0x148] sm:$0xff]
    %v2611 = vld [vmem:[%s9 + $0x150] sm:$0xff]
    %v2612 = vld [vmem:[%s9 + $0x158] sm:$0xff]
    %v2613 = vld [vmem:[%s9 + $0x160] sm:$0xff]
    %v2614 = vld [vmem:[%s9 + $0x168] sm:$0xff]
    %v2615 = vld [vmem:[%s9 + $0x170] sm:$0xff]
    %v2616 = vld [vmem:[%s9 + $0x178] sm:$0xff]
    %v2665 = vunpack.c.l.b16 %v2569
    %v2666 = vunpack.c.h.b16 %v2569
    %v2667 = vunpack.c.l.b16 %v2570
    %v2668 = vunpack.c.h.b16 %v2570
    %v2669 = vunpack.c.l.b16 %v2571
    %v2670 = vunpack.c.h.b16 %v2571
    %v2671 = vunpack.c.l.b16 %v2572
    %v2672 = vunpack.c.h.b16 %v2572
    %v2673 = vunpack.c.l.b16 %v2573
    %v2674 = vunpack.c.h.b16 %v2573
    %v2675 = vunpack.c.l.b16 %v2574
    %v2676 = vunpack.c.h.b16 %v2574
    %v2677 = vunpack.c.l.b16 %v2575
    %v2678 = vunpack.c.h.b16 %v2575
    %v2679 = vunpack.c.l.b16 %v2576
    %v2680 = vunpack.c.h.b16 %v2576
    %v2681 = vunpack.c.l.b16 %v2577
    %v2682 = vunpack.c.h.b16 %v2577
    %v2683 = vunpack.c.l.b16 %v2578
    %v2684 = vunpack.c.h.b16 %v2578
    %v2685 = vunpack.c.l.b16 %v2579
    %v2686 = vunpack.c.h.b16 %v2579
    %v2687 = vunpack.c.l.b16 %v2580
    %v2688 = vunpack.c.h.b16 %v2580
    %v2689 = vunpack.c.l.b16 %v2581
    %v2690 = vunpack.c.h.b16 %v2581
    %v2691 = vunpack.c.l.b16 %v2582
    %v2692 = vunpack.c.h.b16 %v2582
    %v2693 = vunpack.c.l.b16 %v2583
    %v2694 = vunpack.c.h.b16 %v2583
    %v2695 = vunpack.c.l.b16 %v2584
    %v2696 = vunpack.c.h.b16 %v2584
    %v2697 = vunpack.c.l.b16 %v2585
    %v2698 = vunpack.c.h.b16 %v2585
    %v2699 = vunpack.c.l.b16 %v2586
    %v2700 = vunpack.c.h.b16 %v2586
    %v2701 = vunpack.c.l.b16 %v2587
    %v2702 = vunpack.c.h.b16 %v2587
    %v2703 = vunpack.c.l.b16 %v2588
    %v2704 = vunpack.c.h.b16 %v2588
    %v2705 = vunpack.c.l.b16 %v2589
    %v2706 = vunpack.c.h.b16 %v2589
    %v2707 = vunpack.c.l.b16 %v2590
    %v2708 = vunpack.c.h.b16 %v2590
    %v2709 = vunpack.c.l.b16 %v2591
    %v2710 = vunpack.c.h.b16 %v2591
    %v2711 = vunpack.c.l.b16 %v2592
    %v2712 = vunpack.c.h.b16 %v2592
    %v2713 = vunpack.c.l.b16 %v2593
    %v2714 = vunpack.c.h.b16 %v2593
    %v2715 = vunpack.c.l.b16 %v2594
    %v2716 = vunpack.c.h.b16 %v2594
    %v2717 = vunpack.c.l.b16 %v2595
    %v2718 = vunpack.c.h.b16 %v2595
    %v2719 = vunpack.c.l.b16 %v2596
    %v2720 = vunpack.c.h.b16 %v2596
    %v2721 = vunpack.c.l.b16 %v2597
    %v2722 = vunpack.c.h.b16 %v2597
    %v2723 = vunpack.c.l.b16 %v2598
    %v2724 = vunpack.c.h.b16 %v2598
    %v2725 = vunpack.c.l.b16 %v2599
    %v2726 = vunpack.c.h.b16 %v2599
    %v2727 = vunpack.c.l.b16 %v2600
    %v2728 = vunpack.c.h.b16 %v2600
    %v2729 = vunpack.c.l.b16 %v2601
    %v2730 = vunpack.c.h.b16 %v2601
    %v2731 = vunpack.c.l.b16 %v2602
    %v2732 = vunpack.c.h.b16 %v2602
    %v2733 = vunpack.c.l.b16 %v2603
    %v2734 = vunpack.c.h.b16 %v2603
    %v2735 = vunpack.c.l.b16 %v2604
    %v2736 = vunpack.c.h.b16 %v2604
    %v2737 = vunpack.c.l.b16 %v2605
    %v2738 = vunpack.c.h.b16 %v2605
    %v2739 = vunpack.c.l.b16 %v2606
    %v2740 = vunpack.c.h.b16 %v2606
    %v2741 = vunpack.c.l.b16 %v2607
    %v2742 = vunpack.c.h.b16 %v2607
    %v2743 = vunpack.c.l.b16 %v2608
    %v2744 = vunpack.c.h.b16 %v2608
    %v2745 = vunpack.c.l.b16 %v2609
    %v2746 = vunpack.c.h.b16 %v2609
    %v2747 = vunpack.c.l.b16 %v2610
    %v2748 = vunpack.c.h.b16 %v2610
    %v2749 = vunpack.c.l.b16 %v2611
    %v2750 = vunpack.c.h.b16 %v2611
    %v2751 = vunpack.c.l.b16 %v2612
    %v2752 = vunpack.c.h.b16 %v2612
    %v2753 = vunpack.c.l.b16 %v2613
    %v2754 = vunpack.c.h.b16 %v2613
    %v2755 = vunpack.c.l.b16 %v2614
    %v2756 = vunpack.c.h.b16 %v2614
    %v2757 = vunpack.c.l.b16 %v2615
    %v2758 = vunpack.c.h.b16 %v2615
    %v2759 = vunpack.c.l.b16 %v2616
    %v2760 = vunpack.c.h.b16 %v2616
    %v2761 = vpack.c.b16 %v2667, %v2665
    %v2762 = vpack.c.b16 %v2668, %v2666
    %v2763 = vpack.c.b16 %v2671, %v2669
    %v2764 = vpack.c.b16 %v2672, %v2670
    %v2765 = vpack.c.b16 %v2675, %v2673
    %v2766 = vpack.c.b16 %v2676, %v2674
    %v2767 = vpack.c.b16 %v2679, %v2677
    %v2768 = vpack.c.b16 %v2680, %v2678
    %v2769 = vpack.c.b16 %v2683, %v2681
    %v2770 = vpack.c.b16 %v2684, %v2682
    %v2771 = vpack.c.b16 %v2687, %v2685
    %v2772 = vpack.c.b16 %v2688, %v2686
    %v2773 = vpack.c.b16 %v2691, %v2689
    %v2774 = vpack.c.b16 %v2692, %v2690
    %v2775 = vpack.c.b16 %v2695, %v2693
    %v2776 = vpack.c.b16 %v2696, %v2694
    %v2777 = vpack.c.b16 %v2699, %v2697
    %v2778 = vpack.c.b16 %v2700, %v2698
    %v2779 = vpack.c.b16 %v2703, %v2701
    %v2780 = vpack.c.b16 %v2704, %v2702
    %v2781 = vpack.c.b16 %v2707, %v2705
    %v2782 = vpack.c.b16 %v2708, %v2706
    %v2783 = vpack.c.b16 %v2711, %v2709
    %v2784 = vpack.c.b16 %v2712, %v2710
    %v2785 = vpack.c.b16 %v2715, %v2713
    %v2786 = vpack.c.b16 %v2716, %v2714
    %v2787 = vpack.c.b16 %v2719, %v2717
    %v2788 = vpack.c.b16 %v2720, %v2718
    %v2789 = vpack.c.b16 %v2723, %v2721
    %v2790 = vpack.c.b16 %v2724, %v2722
    %v2791 = vpack.c.b16 %v2727, %v2725
    %v2792 = vpack.c.b16 %v2728, %v2726
    %v2793 = vpack.c.b16 %v2731, %v2729
    %v2794 = vpack.c.b16 %v2732, %v2730
    %v2795 = vpack.c.b16 %v2735, %v2733
    %v2796 = vpack.c.b16 %v2736, %v2734
    %v2797 = vpack.c.b16 %v2739, %v2737
    %v2798 = vpack.c.b16 %v2740, %v2738
    %v2799 = vpack.c.b16 %v2743, %v2741
    %v2800 = vpack.c.b16 %v2744, %v2742
    %v2801 = vpack.c.b16 %v2747, %v2745
    %v2802 = vpack.c.b16 %v2748, %v2746
    %v2803 = vpack.c.b16 %v2751, %v2749
    %v2804 = vpack.c.b16 %v2752, %v2750
    %v2805 = vpack.c.b16 %v2755, %v2753
    %v2806 = vpack.c.b16 %v2756, %v2754
    %v2807 = vpack.c.b16 %v2759, %v2757
    %v2808 = vpack.c.b16 %v2760, %v2758
    %2857 = vmatprep.subr.bf16.mxu0 %v2762
    %2858 = vmatpush1.bf16.msra.mxu0 %v2761
    %2859 = vmatprep.subr.bf16.mxu0 %v2764
    %2860 = vmatpush1.bf16.msra.mxu0 %v2763
    %2861 = vmatprep.subr.bf16.mxu0 %v2766
    %2862 = vmatpush1.bf16.msra.mxu0 %v2765
    %2863 = vmatprep.subr.bf16.mxu0 %v2768
    %2864 = vmatpush1.bf16.msra.mxu0 %v2767
    %2865 = vmatprep.subr.bf16.mxu0 %v2770
    %2866 = vmatpush1.bf16.msra.mxu0 %v2769
    %2867 = vmatprep.subr.bf16.mxu0 %v2772
    %2868 = vmatpush1.bf16.msra.mxu0 %v2771
    %2869 = vmatprep.subr.bf16.mxu0 %v2774
    %2870 = vmatpush1.bf16.msra.mxu0 %v2773
    %2871 = vmatprep.subr.bf16.mxu0 %v2776
    %2872 = vmatpush1.bf16.msra.mxu0 %v2775
    %2873 = vmatprep.subr.bf16.mxu0 %v2778
    %2874 = vmatpush1.bf16.msra.mxu0 %v2777
    %2875 = vmatprep.subr.bf16.mxu0 %v2780
    %2876 = vmatpush1.bf16.msra.mxu0 %v2779
    %2877 = vmatprep.subr.bf16.mxu0 %v2782
    %2878 = vmatpush1.bf16.msra.mxu0 %v2781
    %2879 = vmatprep.subr.bf16.mxu0 %v2784
    %2880 = vmatpush1.bf16.msra.mxu0 %v2783
    %2881 = vmatprep.subr.bf16.mxu0 %v2786
    %2882 = vmatpush1.bf16.msra.mxu0 %v2785
    %2883 = vmatprep.subr.bf16.mxu0 %v2788
    %2884 = vmatpush1.bf16.msra.mxu0 %v2787
    %2885 = vmatprep.subr.bf16.mxu0 %v2790
    %2886 = vmatpush1.bf16.msra.mxu0 %v2789
    %2887 = vmatprep.subr.bf16.mxu0 %v2792
    %2888 = vmatpush1.bf16.msra.mxu0 %v2791
    %2889 = vmatprep.mubr.bf16.mxu0 %v2564
    %2890 = vmatmul.mubr.bf16.gmra.mrb[0].mxu0 %v2563
    %v2891 = vpop.f32.mrb[0].mxu0
    %v2892 = vadd.f32 0.0, %v2891
    %v2893 = vpop.f32.mrb[0].mxu0
    %v2894 = vadd.f32 0.0, %v2893
    %v2895 = vpop.f32.mrb[0].mxu0
    %v2896 = vadd.f32 0.0, %v2895
    %v2897 = vpop.f32.mrb[0].mxu0
    %v2898 = vadd.f32 0.0, %v2897
    %2899 = vmatprep.mubr.bf16.mxu0 %v2567
    %2900 = vmatmul.mubr.bf16.gmra.mrb[0].mxu0 %v2566
    %v2901 = vpop.f32.mrb[0].mxu0
    %v2902 = vadd.f32 0.0, %v2901
    %v2903 = vpop.f32.mrb[0].mxu0
    %v2904 = vadd.f32 0.0, %v2903
    %v2905 = vpop.f32.mrb[0].mxu0
    %v2906 = vadd.f32 0.0, %v2905
    %v2907 = vpop.f32.mrb[0].mxu0
    %v2908 = vadd.f32 0.0, %v2907
    %2909 = vdwg.mxu0
    %2910 = vmatprep.subr.bf16.mxu0 %v2794
    %2911 = vmatpush1.bf16.msra.mxu0 %v2793
    %2912 = vmatprep.subr.bf16.mxu0 %v2796
    %2913 = vmatpush1.bf16.msra.mxu0 %v2795
    %2914 = vmatprep.subr.bf16.mxu0 %v2798
    %2915 = vmatpush1.bf16.msra.mxu0 %v2797
    %2916 = vmatprep.subr.bf16.mxu0 %v2800
    %2917 = vmatpush1.bf16.msra.mxu0 %v2799
    %2918 = vmatprep.subr.bf16.mxu0 %v2802
    %2919 = vmatpush1.bf16.msra.mxu0 %v2801
    %2920 = vmatprep.subr.bf16.mxu0 %v2804
    %2921 = vmatpush1.bf16.msra.mxu0 %v2803
    %2922 = vmatprep.subr.bf16.mxu0 %v2806
    %2923 = vmatpush1.bf16.msra.mxu0 %v2805
    %2924 = vmatprep.subr.bf16.mxu0 %v2808
    %2925 = vmatpush1.bf16.msra.mxu0 %v2807
    %2926 = vmatprep.subr.bf16.mxu0 0
    %2927 = vmatpush1.bf16.msra.mxu0 0
    %2928 = vmatprep.subr.bf16.mxu0 0
    %2929 = vmatpush1.bf16.msra.mxu0 0
    %2930 = vmatprep.subr.bf16.mxu0 0
    %2931 = vmatpush1.bf16.msra.mxu0 0
    %2932 = vmatprep.subr.bf16.mxu0 0
    %2933 = vmatpush1.bf16.msra.mxu0 0
    %2934 = vmatprep.subr.bf16.mxu0 0
    %2935 = vmatpush1.bf16.msra.mxu0 0
    %2936 = vmatprep.subr.bf16.mxu0 0
    %2937 = vmatpush1.bf16.msra.mxu0 0
    %2938 = vmatprep.subr.bf16.mxu0 0
    %2939 = vmatpush1.bf16.msra.mxu0 0
    %2940 = vmatprep.subr.bf16.mxu0 0
    %2941 = vmatpush1.bf16.msra.mxu0 0
    %2942 = vmatprep.mubr.bf16.mxu0 0
    %2943 = vmatmul.mubr.bf16.gmra.mrb[0].mxu0 %v2565
    %v2944 = vpop.f32.mrb[0].mxu0
    %v2945 = vadd.f32 %v2892, %v2944
    %v2946 = vpop.f32.mrb[0].mxu0
    %v2947 = vadd.f32 %v2894, %v2946
    %v2948 = vpop.f32.mrb[0].mxu0
    %v2949 = vadd.f32 %v2896, %v2948
    %v2950 = vpop.f32.mrb[0].mxu0
    %v2951 = vadd.f32 %v2898, %v2950
    %2952 = vmatprep.mubr.bf16.mxu0 0
    %2953 = vmatmul.mubr.bf16.gmra.mrb[0].mxu0 %v2568
    %v2954 = vpop.f32.mrb[0].mxu0
    %v2955 = vadd.f32 %v2902, %v2954
    %v2956 = vpop.f32.mrb[0].mxu0
    %v2957 = vadd.f32 %v2904, %v2956
    %v2958 = vpop.f32.mrb[0].mxu0
    %v2959 = vadd.f32 %v2906, %v2958
    %v2960 = vpop.f32.mrb[0].mxu0
    %v2961 = vadd.f32 %v2908, %v2960
    %2962 = vdwg.mxu0
    %v2963 = vld [vmem:[%s12] sm:$0xff]
    %v2964 = vld [vmem:[%s12 + $0x8] sm:$0xff]
    %vm2965 = vcmask 130048
    %v2967 = vsel %vm2965, %v2963, 0
    %v2970 = vsel %vm2965, %v2964, 0
    %2972 = vmatprep.subr.mxu0 %v2947
    %2973 = vmatpush1.msra.mxu0 %v2945
    %2974 = vmatprep.subr.mxu0 %v2951
    %2975 = vmatpush1.msra.mxu0 %v2949
    %2976 = vmatprep.subr.mxu0 0.0
    %2977 = vmatpush1.msra.mxu0 0.0
    %2978 = vmatprep.subr.mxu0 0.0
    %2979 = vmatpush1.msra.mxu0 0.0
    %2980 = vmatprep.subr.mxu0 0.0
    %2981 = vmatpush1.msra.mxu0 0.0
    %2982 = vmatprep.subr.mxu0 0.0
    %2983 = vmatpush1.msra.mxu0 0.0
    %2984 = vmatprep.subr.mxu0 0.0
    %2985 = vmatpush1.msra.mxu0 0.0
    %2986 = vmatprep.subr.mxu0 0.0
    %2987 = vmatpush1.msra.mxu0 0.0
    %2988 = vmatprep.subr.mxu0 0.0
    %2989 = vmatpush1.msra.mxu0 0.0
    %2990 = vmatprep.subr.mxu0 0.0
    %2991 = vmatpush1.msra.mxu0 0.0
    %2992 = vmatprep.subr.mxu0 0.0
    %2993 = vmatpush1.msra.mxu0 0.0
    %2994 = vmatprep.subr.mxu0 0.0
    %2995 = vmatpush1.msra.mxu0 0.0
    %2996 = vmatprep.subr.mxu0 0.0
    %2997 = vmatpush1.msra.mxu0 0.0
    %2998 = vmatprep.subr.mxu0 0.0
    %2999 = vmatpush1.msra.mxu0 0.0
    %3000 = vmatprep.subr.mxu0 0.0
    %3001 = vmatpush1.msra.mxu0 0.0
    %3002 = vmatprep.subr.mxu0 0.0
    %3003 = vmatpush1.msra.mxu0 0.0
    %3004 = vmatprep.subr.mxu0 0.0
    %3005 = vmatpush1.msra.mxu0 0.0
    %3006 = vmatprep.subr.mxu0 0.0
    %3007 = vmatpush1.msra.mxu0 0.0
    %3008 = vmatprep.subr.mxu0 0.0
    %3009 = vmatpush1.msra.mxu0 0.0
    %3010 = vmatprep.subr.mxu0 0.0
    %3011 = vmatpush1.msra.mxu0 0.0
    %3012 = vmatprep.subr.mxu0 0.0
    %3013 = vmatpush1.msra.mxu0 0.0
    %3014 = vmatprep.subr.mxu0 0.0
    %3015 = vmatpush1.msra.mxu0 0.0
    %3016 = vmatprep.subr.mxu0 0.0
    %3017 = vmatpush1.msra.mxu0 0.0
    %3018 = vmatprep.subr.mxu0 0.0
    %3019 = vmatpush1.msra.mxu0 0.0
    %3020 = vmatprep.subr.mxu0 0.0
    %3021 = vmatpush1.msra.mxu0 0.0
    %3022 = vmatprep.subr.mxu0 0.0
    %3023 = vmatpush1.msra.mxu0 0.0
    %3024 = vmatprep.subr.mxu0 0.0
    %3025 = vmatpush1.msra.mxu0 0.0
    %3026 = vmatprep.subr.mxu0 0.0
    %3027 = vmatpush1.msra.mxu0 0.0
    %3028 = vmatprep.subr.mxu0 0.0
    %3029 = vmatpush1.msra.mxu0 0.0
    %3030 = vmatprep.subr.mxu0 0.0
    %3031 = vmatpush1.msra.mxu0 0.0
    %3032 = vmatprep.subr.mxu0 0.0
    %3033 = vmatpush1.msra.mxu0 0.0
    %3034 = vmatprep.subr.mxu0 0.0
    %3035 = vmatpush1.msra.mxu0 0.0
    %3036 = vmatprep.mubr.f32.mxu0 0.0
    %3037 = vmatmul.mubr.f32.gmra.mrb[0].mxu0 %v2967
    %v3038 = vpop.f32.mrb[0].mxu0
    %v3039 = vadd.f32 0.0, %v3038
    %v3040 = vpop.f32.mrb[0].mxu0
    %v3041 = vadd.f32 0.0, %v3040
    %3042 = vmatprep.mubr.f32.mxu0 0.0
    %3043 = vmatmul.mubr.f32.gmra.mrb[0].mxu0 %v2970
    %v3044 = vpop.f32.mrb[0].mxu0
    %v3045 = vadd.f32 0.0, %v3044
    %v3046 = vpop.f32.mrb[0].mxu0
    %v3047 = vadd.f32 0.0, %v3046
    %3048 = vdwg.mxu0
    %3049 = vmatprep.subr.mxu0 %v2957
    %3050 = vmatpush1.msra.mxu0 %v2955
    %3051 = vmatprep.subr.mxu0 %v2961
    %3052 = vmatpush1.msra.mxu0 %v2959
    %3053 = vmatprep.subr.mxu0 0.0
    %3054 = vmatpush1.msra.mxu0 0.0
    %3055 = vmatprep.subr.mxu0 0.0
    %3056 = vmatpush1.msra.mxu0 0.0
    %3057 = vmatprep.subr.mxu0 0.0
    %3058 = vmatpush1.msra.mxu0 0.0
    %3059 = vmatprep.subr.mxu0 0.0
    %3060 = vmatpush1.msra.mxu0 0.0
    %3061 = vmatprep.subr.mxu0 0.0
    %3062 = vmatpush1.msra.mxu0 0.0
    %3063 = vmatprep.subr.mxu0 0.0
    %3064 = vmatpush1.msra.mxu0 0.0
    %3065 = vmatprep.subr.mxu0 0.0
    %3066 = vmatpush1.msra.mxu0 0.0
    %3067 = vmatprep.subr.mxu0 0.0
    %3068 = vmatpush1.msra.mxu0 0.0
    %3069 = vmatprep.subr.mxu0 0.0
    %3070 = vmatpush1.msra.mxu0 0.0
    %3071 = vmatprep.subr.mxu0 0.0
    %3072 = vmatpush1.msra.mxu0 0.0
    %3073 = vmatprep.subr.mxu0 0.0
    %3074 = vmatpush1.msra.mxu0 0.0
    %3075 = vmatprep.subr.mxu0 0.0
    %3076 = vmatpush1.msra.mxu0 0.0
    %3077 = vmatprep.subr.mxu0 0.0
    %3078 = vmatpush1.msra.mxu0 0.0
    %3079 = vmatprep.subr.mxu0 0.0
    %3080 = vmatpush1.msra.mxu0 0.0
    %3081 = vmatprep.subr.mxu0 0.0
    %3082 = vmatpush1.msra.mxu0 0.0
    %3083 = vmatprep.subr.mxu0 0.0
    %3084 = vmatpush1.msra.mxu0 0.0
    %3085 = vmatprep.subr.mxu0 0.0
    %3086 = vmatpush1.msra.mxu0 0.0
    %3087 = vmatprep.subr.mxu0 0.0
    %3088 = vmatpush1.msra.mxu0 0.0
    %3089 = vmatprep.subr.mxu0 0.0
    %3090 = vmatpush1.msra.mxu0 0.0
    %3091 = vmatprep.subr.mxu0 0.0
    %3092 = vmatpush1.msra.mxu0 0.0
    %3093 = vmatprep.subr.mxu0 0.0
    %3094 = vmatpush1.msra.mxu0 0.0
    %3095 = vmatprep.subr.mxu0 0.0
    %3096 = vmatpush1.msra.mxu0 0.0
    %3097 = vmatprep.subr.mxu0 0.0
    %3098 = vmatpush1.msra.mxu0 0.0
    %3099 = vmatprep.subr.mxu0 0.0
    %3100 = vmatpush1.msra.mxu0 0.0
    %3101 = vmatprep.subr.mxu0 0.0
    %3102 = vmatpush1.msra.mxu0 0.0
    %3103 = vmatprep.subr.mxu0 0.0
    %3104 = vmatpush1.msra.mxu0 0.0
    %3105 = vmatprep.subr.mxu0 0.0
    %3106 = vmatpush1.msra.mxu0 0.0
    %3107 = vmatprep.subr.mxu0 0.0
    %3108 = vmatpush1.msra.mxu0 0.0
    %3109 = vmatprep.subr.mxu0 0.0
    %3110 = vmatpush1.msra.mxu0 0.0
    %3111 = vmatprep.subr.mxu0 0.0
    %3112 = vmatpush1.msra.mxu0 0.0
    %3113 = vmatprep.mubr.f32.mxu0 0.0
    %3114 = vmatmul.mubr.f32.gmra.mrb[0].mxu0 %v2967
    %v3115 = vpop.f32.mrb[0].mxu0
    %v3116 = vadd.f32 0.0, %v3115
    %v3117 = vpop.f32.mrb[0].mxu0
    %v3118 = vadd.f32 0.0, %v3117
    %3119 = vmatprep.mubr.f32.mxu0 0.0
    %3120 = vmatmul.mubr.f32.gmra.mrb[0].mxu0 %v2970
    %v3121 = vpop.f32.mrb[0].mxu0
    %v3122 = vadd.f32 0.0, %v3121
    %v3123 = vpop.f32.mrb[0].mxu0
    %v3124 = vadd.f32 0.0, %v3123
    %3125 = vdwg.mxu0
    %v3126 = vmax.f32 %v3039, %v3045
    %v3127 = vmax.f32 %v3041, %v3047
    %v3128 = vmax.f32 %v3116, %v3122
    %v3129 = vmax.f32 %v3118, %v3124
    %3134 = vrot.lane.b32.xlu0 %v3126, 112
    %v3135 = vpop.permute.xlu0 %3134
    %3136 = vrot.lane.b32.xlu0 %v3127, 112
    %v3137 = vpop.permute.xlu0 %3136
    %3138 = vrot.lane.b32.xlu0 %v3128, 112
    %v3139 = vpop.permute.xlu0 %3138
    %3140 = vrot.lane.b32.xlu0 %v3129, 112
    %v3141 = vpop.permute.xlu0 %3140
    %vm3142 = vcmask 916480
    %v3143 = vsel %vm3142, %v3135, %v3137
    %v3144 = vsel %vm3142, %v3139, %v3141
    %v3151 = vsel %vm3142, %v3137, %v3135
    %v3152 = vsel %vm3142, %v3141, %v3139
    %v3153 = vmax.f32 %v3126, %v3143
    %v3154 = vmax.f32 %v3127, %v3151
    %v3155 = vmax.f32 %v3128, %v3144
    %v3156 = vmax.f32 %v3129, %v3152
    %v3157 = vpack.c.bf16 %v3155, %v3153
    %v3158 = vpack.c.bf16 %v3156, %v3154
    %v3159 = vld [vmem:[#allocation14] sm:$0xf]
    %v3160 = vld [vmem:[#allocation14 + $0x4] sm:$0xf]
    %v3161 = vld [vmem:[#allocation14 + $0x8] sm:$0xf]
    %v3162 = vld [vmem:[#allocation14 + $0xc] sm:$0xf]
    %v3163 = vld [vmem:[#allocation14 + $0x10] sm:$0xf]
    %v3164 = vld [vmem:[#allocation14 + $0x14] sm:$0xf]
    %v3165 = vld [vmem:[#allocation14 + $0x18] sm:$0xf]
    %v3166 = vld [vmem:[#allocation14 + $0x1c] sm:$0xf]
    %v3167 = vld [vmem:[#allocation14 + $0x20] sm:$0xf]
    %v3168 = vld [vmem:[#allocation14 + $0x24] sm:$0xf]
    %v3169 = vld [vmem:[#allocation14 + $0x28] sm:$0xf]
    %v3170 = vld [vmem:[#allocation14 + $0x2c] sm:$0xf]
    %v3171 = vld [vmem:[#allocation14 + $0x30] sm:$0xf]
    %v3172 = vld [vmem:[#allocation14 + $0x34] sm:$0xf]
    %v3173 = vld [vmem:[#allocation14 + $0x38] sm:$0xf]
    %v3174 = vld [vmem:[#allocation14 + $0x3c] sm:$0xf]
    %v3175 = vld [vmem:[#allocation14 + $0x40] sm:$0xf]
    %v3176 = vld [vmem:[#allocation14 + $0x44] sm:$0xf]
    %v3177 = vld [vmem:[#allocation14 + $0x48] sm:$0xf]
    %v3178 = vld [vmem:[#allocation14 + $0x4c] sm:$0xf]
    %v3179 = vld [vmem:[#allocation14 + $0x50] sm:$0xf]
    %v3180 = vld [vmem:[#allocation14 + $0x54] sm:$0xf]
    %v3181 = vld [vmem:[#allocation14 + $0x58] sm:$0xf]
    %v3182 = vld [vmem:[#allocation14 + $0x5c] sm:$0xf]
    %v3183 = vld [vmem:[#allocation14 + $0x60] sm:$0xf]
    %v3184 = vld [vmem:[#allocation14 + $0x64] sm:$0xf]
    %v3185 = vld [vmem:[#allocation14 + $0x68] sm:$0xf]
    %v3186 = vld [vmem:[#allocation14 + $0x6c] sm:$0xf]
    %v3187 = vld [vmem:[#allocation14 + $0x70] sm:$0xf]
    %v3188 = vld [vmem:[#allocation14 + $0x74] sm:$0xf]
    %v3189 = vld [vmem:[#allocation14 + $0x78] sm:$0xf]
    %v3190 = vld [vmem:[#allocation14 + $0x7c] sm:$0xf]
    %v3191 = vld [vmem:[#allocation15] sm:$0x1]
    %v3193 = vlaneseq
    %v3194 = vshrl.u32 %v3193, 7
    %v3195 = vsub.s32 0, %v3194
    %v3196 = vrot.slane %v3191, %v3195
    %v3230 = vunpack.c.l.b16 %v3159
    %v3231 = vunpack.c.l.b16 %v3160
    %v3232 = vunpack.c.l.b16 %v3161
    %v3233 = vunpack.c.l.b16 %v3162
    %v3234 = vunpack.c.l.b16 %v3163
    %v3235 = vunpack.c.l.b16 %v3164
    %v3236 = vunpack.c.l.b16 %v3165
    %v3237 = vunpack.c.l.b16 %v3166
    %v3238 = vunpack.c.l.b16 %v3167
    %v3239 = vunpack.c.l.b16 %v3168
    %v3240 = vunpack.c.l.b16 %v3169
    %v3241 = vunpack.c.l.b16 %v3170
    %v3242 = vunpack.c.l.b16 %v3171
    %v3243 = vunpack.c.l.b16 %v3172
    %v3244 = vunpack.c.l.b16 %v3173
    %v3245 = vunpack.c.l.b16 %v3174
    %v3246 = vunpack.c.l.b16 %v3175
    %v3247 = vunpack.c.l.b16 %v3176
    %v3248 = vunpack.c.l.b16 %v3177
    %v3249 = vunpack.c.l.b16 %v3178
    %v3250 = vunpack.c.l.b16 %v3179
    %v3251 = vunpack.c.l.b16 %v3180
    %v3252 = vunpack.c.l.b16 %v3181
    %v3253 = vunpack.c.l.b16 %v3182
    %v3254 = vunpack.c.l.b16 %v3183
    %v3255 = vunpack.c.l.b16 %v3184
    %v3256 = vunpack.c.l.b16 %v3185
    %v3257 = vunpack.c.l.b16 %v3186
    %v3258 = vunpack.c.l.b16 %v3187
    %v3259 = vunpack.c.l.b16 %v3188
    %v3260 = vunpack.c.l.b16 %v3189
    %v3261 = vunpack.c.l.b16 %v3190
    %v3262 = vpack.c.b16 %v3231, %v3230
    %v3263 = vpack.c.b16 %v3233, %v3232
    %v3264 = vpack.c.b16 %v3235, %v3234
    %v3265 = vpack.c.b16 %v3237, %v3236
    %v3266 = vpack.c.b16 %v3239, %v3238
    %v3267 = vpack.c.b16 %v3241, %v3240
    %v3268 = vpack.c.b16 %v3243, %v3242
    %v3269 = vpack.c.b16 %v3245, %v3244
    %v3270 = vpack.c.b16 %v3247, %v3246
    %v3271 = vpack.c.b16 %v3249, %v3248
    %v3272 = vpack.c.b16 %v3251, %v3250
    %v3273 = vpack.c.b16 %v3253, %v3252
    %v3274 = vpack.c.b16 %v3255, %v3254
    %v3275 = vpack.c.b16 %v3257, %v3256
    %v3276 = vpack.c.b16 %v3259, %v3258
    %v3277 = vpack.c.b16 %v3261, %v3260
    %3294 = vmatprep.subr.bf16.mxu0 0
    %3295 = vmatpush1.bf16.msra.mxu0 %v3262
    %3296 = vmatprep.subr.bf16.mxu0 0
    %3297 = vmatpush1.bf16.msra.mxu0 %v3263
    %3298 = vmatprep.subr.bf16.mxu0 0
    %3299 = vmatpush1.bf16.msra.mxu0 %v3264
    %3300 = vmatprep.subr.bf16.mxu0 0
    %3301 = vmatpush1.bf16.msra.mxu0 %v3265
    %3302 = vmatprep.subr.bf16.mxu0 0
    %3303 = vmatpush1.bf16.msra.mxu0 %v3266
    %3304 = vmatprep.subr.bf16.mxu0 0
    %3305 = vmatpush1.bf16.msra.mxu0 %v3267
    %3306 = vmatprep.subr.bf16.mxu0 0
    %3307 = vmatpush1.bf16.msra.mxu0 %v3268
    %3308 = vmatprep.subr.bf16.mxu0 0
    %3309 = vmatpush1.bf16.msra.mxu0 %v3269
    %3310 = vmatprep.subr.bf16.mxu0 0
    %3311 = vmatpush1.bf16.msra.mxu0 %v3270
    %3312 = vmatprep.subr.bf16.mxu0 0
    %3313 = vmatpush1.bf16.msra.mxu0 %v3271
    %3314 = vmatprep.subr.bf16.mxu0 0
    %3315 = vmatpush1.bf16.msra.mxu0 %v3272
    %3316 = vmatprep.subr.bf16.mxu0 0
    %3317 = vmatpush1.bf16.msra.mxu0 %v3273
    %3318 = vmatprep.subr.bf16.mxu0 0
    %3319 = vmatpush1.bf16.msra.mxu0 %v3274
    %3320 = vmatprep.subr.bf16.mxu0 0
    %3321 = vmatpush1.bf16.msra.mxu0 %v3275
    %3322 = vmatprep.subr.bf16.mxu0 0
    %3323 = vmatpush1.bf16.msra.mxu0 %v3276
    %3324 = vmatprep.subr.bf16.mxu0 0
    %3325 = vmatpush1.bf16.msra.mxu0 %v3277
    %3326 = vmatprep.mubr.bf16.mxu0 %v3158
    %3327 = vmatmul.mubr.bf16.gmra.mrb[0].mxu0 %v3157
    %v3328 = vpop.f32.mrb[0].mxu0
    %v3329 = vadd.f32 %v3196, %v3328
    %v3330 = vpop.f32.mrb[0].mxu0
    %v3331 = vpop.f32.mrb[0].mxu0
    %v3332 = vadd.f32 %v3196, %v3331
    %v3333 = vpop.f32.mrb[0].mxu0
    %3334 = vdwg.mxu0
    %v3335 = vmax.f32 %v3329, 0.0
    %v3336 = vmax.f32 %v3332, 0.0
    %v3337 = vand.u32 %v240, 7
    %v3338 = vand.u32 %v241, 7
    %vm3339 = vcmp.ne.s32.totalorder %v3337, 0
    %vm3340 = vcmp.ne.s32.totalorder %v3338, 0
    %v3342 = vrot.slane %v3336, 7
    %v3345 = vrot.slane %v3335, 7
    %v3346 = vsel %vm306, %v3345, %v3342
    %v3349 = vsel %vm306, %v3342, %v3345
    %v3350 = vsel %vm3339, 1, 0
    %v3351 = vsel %vm3340, 1, 0
    %vm3352 = vcmp.eq.s32.totalorder %v3350, 1
    %vm3353 = vcmp.eq.s32.totalorder %v3351, 1
    %v3354 = vsel %vm3352, %v3349, 0.0
    %v3355 = vsel %vm3353, %v3346, 0.0
    %vm3356 = vcmp.ne.s32.totalorder %v3337, 7
    %vm3357 = vcmp.ne.s32.totalorder %v3338, 7
    %v3358 = vrot.slane %v3335, 1
    %v3359 = vrot.slane %v3336, 1
    %v3360 = vsel %vm418, %v3358, %v3359
    %v3364 = vsel %vm418, %v3359, %v3358
    %v3365 = vsel %vm3356, 1, 0
    %v3366 = vsel %vm3357, 1, 0
    %vm3367 = vcmp.eq.s32.totalorder %v3365, 1
    %vm3368 = vcmp.eq.s32.totalorder %v3366, 1
    %v3369 = vsel %vm3367, %v3360, 0.0
    %v3370 = vsel %vm3368, %v3364, 0.0
    %v3371 = vpack.c.bf16 %v3355, %v3354
    %v3372 = vpack.c.bf16 %v3336, %v3335
    %v3373 = vpack.c.bf16 %v3370, %v3369
    %v3374 = vld [vmem:[#allocation17] sm:$0xff]
    %v3375 = vld [vmem:[#allocation17 + $0x8] sm:$0xff]
    %v3376 = vld [vmem:[#allocation17 + $0x10] sm:$0xff]
    %v3377 = vld [vmem:[#allocation17 + $0x18] sm:$0xff]
    %v3378 = vld [vmem:[#allocation17 + $0x20] sm:$0xff]
    %v3379 = vld [vmem:[#allocation17 + $0x28] sm:$0xff]
    %v3380 = vld [vmem:[#allocation17 + $0x30] sm:$0xff]
    %v3381 = vld [vmem:[#allocation17 + $0x38] sm:$0xff]
    %v3382 = vld [vmem:[#allocation17 + $0x40] sm:$0xff]
    %v3383 = vld [vmem:[#allocation17 + $0x48] sm:$0xff]
    %v3384 = vld [vmem:[#allocation17 + $0x50] sm:$0xff]
    %v3385 = vld [vmem:[#allocation17 + $0x58] sm:$0xff]
    %v3386 = vld [vmem:[#allocation17 + $0x60] sm:$0xff]
    %v3387 = vld [vmem:[#allocation17 + $0x68] sm:$0xff]
    %v3388 = vld [vmem:[#allocation17 + $0x70] sm:$0xff]
    %v3389 = vld [vmem:[#allocation17 + $0x78] sm:$0xff]
    %v3390 = vld [vmem:[#allocation17 + $0x80] sm:$0xff]
    %v3391 = vld [vmem:[#allocation17 + $0x88] sm:$0xff]
    %v3392 = vld [vmem:[#allocation17 + $0x90] sm:$0xff]
    %v3393 = vld [vmem:[#allocation17 + $0x98] sm:$0xff]
    %v3394 = vld [vmem:[#allocation17 + $0xa0] sm:$0xff]
    %v3395 = vld [vmem:[#allocation17 + $0xa8] sm:$0xff]
    %v3396 = vld [vmem:[#allocation17 + $0xb0] sm:$0xff]
    %v3397 = vld [vmem:[#allocation17 + $0xb8] sm:$0xff]
    %v3398 = vld [vmem:[#allocation17 + $0xc0] sm:$0xff]
    %v3399 = vld [vmem:[#allocation17 + $0xc8] sm:$0xff]
    %v3400 = vld [vmem:[#allocation17 + $0xd0] sm:$0xff]
    %v3401 = vld [vmem:[#allocation17 + $0xd8] sm:$0xff]
    %v3402 = vld [vmem:[#allocation17 + $0xe0] sm:$0xff]
    %v3403 = vld [vmem:[#allocation17 + $0xe8] sm:$0xff]
    %v3404 = vld [vmem:[#allocation17 + $0xf0] sm:$0xff]
    %v3405 = vld [vmem:[#allocation17 + $0xf8] sm:$0xff]
    %v3406 = vld [vmem:[#allocation17 + $0x100] sm:$0xff]
    %v3407 = vld [vmem:[#allocation17 + $0x108] sm:$0xff]
    %v3408 = vld [vmem:[#allocation17 + $0x110] sm:$0xff]
    %v3409 = vld [vmem:[#allocation17 + $0x118] sm:$0xff]
    %v3410 = vld [vmem:[#allocation17 + $0x120] sm:$0xff]
    %v3411 = vld [vmem:[#allocation17 + $0x128] sm:$0xff]
    %v3412 = vld [vmem:[#allocation17 + $0x130] sm:$0xff]
    %v3413 = vld [vmem:[#allocation17 + $0x138] sm:$0xff]
    %v3414 = vld [vmem:[#allocation17 + $0x140] sm:$0xff]
    %v3415 = vld [vmem:[#allocation17 + $0x148] sm:$0xff]
    %v3416 = vld [vmem:[#allocation17 + $0x150] sm:$0xff]
    %v3417 = vld [vmem:[#allocation17 + $0x158] sm:$0xff]
    %v3418 = vld [vmem:[#allocation17 + $0x160] sm:$0xff]
    %v3419 = vld [vmem:[#allocation17 + $0x168] sm:$0xff]
    %v3420 = vld [vmem:[#allocation17 + $0x170] sm:$0xff]
    %v3421 = vld [vmem:[#allocation17 + $0x178] sm:$0xff]
    %v3470 = vunpack.c.l.b16 %v3374
    %v3471 = vunpack.c.h.b16 %v3374
    %v3472 = vunpack.c.l.b16 %v3375
    %v3473 = vunpack.c.h.b16 %v3375
    %v3474 = vunpack.c.l.b16 %v3376
    %v3475 = vunpack.c.h.b16 %v3376
    %v3476 = vunpack.c.l.b16 %v3377
    %v3477 = vunpack.c.h.b16 %v3377
    %v3478 = vunpack.c.l.b16 %v3378
    %v3479 = vunpack.c.h.b16 %v3378
    %v3480 = vunpack.c.l.b16 %v3379
    %v3481 = vunpack.c.h.b16 %v3379
    %v3482 = vunpack.c.l.b16 %v3380
    %v3483 = vunpack.c.h.b16 %v3380
    %v3484 = vunpack.c.l.b16 %v3381
    %v3485 = vunpack.c.h.b16 %v3381
    %v3486 = vunpack.c.l.b16 %v3382
    %v3487 = vunpack.c.h.b16 %v3382
    %v3488 = vunpack.c.l.b16 %v3383
    %v3489 = vunpack.c.h.b16 %v3383
    %v3490 = vunpack.c.l.b16 %v3384
    %v3491 = vunpack.c.h.b16 %v3384
    %v3492 = vunpack.c.l.b16 %v3385
    %v3493 = vunpack.c.h.b16 %v3385
    %v3494 = vunpack.c.l.b16 %v3386
    %v3495 = vunpack.c.h.b16 %v3386
    %v3496 = vunpack.c.l.b16 %v3387
    %v3497 = vunpack.c.h.b16 %v3387
    %v3498 = vunpack.c.l.b16 %v3388
    %v3499 = vunpack.c.h.b16 %v3388
    %v3500 = vunpack.c.l.b16 %v3389
    %v3501 = vunpack.c.h.b16 %v3389
    %v3502 = vunpack.c.l.b16 %v3390
    %v3503 = vunpack.c.h.b16 %v3390
    %v3504 = vunpack.c.l.b16 %v3391
    %v3505 = vunpack.c.h.b16 %v3391
    %v3506 = vunpack.c.l.b16 %v3392
    %v3507 = vunpack.c.h.b16 %v3392
    %v3508 = vunpack.c.l.b16 %v3393
    %v3509 = vunpack.c.h.b16 %v3393
    %v3510 = vunpack.c.l.b16 %v3394
    %v3511 = vunpack.c.h.b16 %v3394
    %v3512 = vunpack.c.l.b16 %v3395
    %v3513 = vunpack.c.h.b16 %v3395
    %v3514 = vunpack.c.l.b16 %v3396
    %v3515 = vunpack.c.h.b16 %v3396
    %v3516 = vunpack.c.l.b16 %v3397
    %v3517 = vunpack.c.h.b16 %v3397
    %v3518 = vunpack.c.l.b16 %v3398
    %v3519 = vunpack.c.h.b16 %v3398
    %v3520 = vunpack.c.l.b16 %v3399
    %v3521 = vunpack.c.h.b16 %v3399
    %v3522 = vunpack.c.l.b16 %v3400
    %v3523 = vunpack.c.h.b16 %v3400
    %v3524 = vunpack.c.l.b16 %v3401
    %v3525 = vunpack.c.h.b16 %v3401
    %v3526 = vunpack.c.l.b16 %v3402
    %v3527 = vunpack.c.h.b16 %v3402
    %v3528 = vunpack.c.l.b16 %v3403
    %v3529 = vunpack.c.h.b16 %v3403
    %v3530 = vunpack.c.l.b16 %v3404
    %v3531 = vunpack.c.h.b16 %v3404
    %v3532 = vunpack.c.l.b16 %v3405
    %v3533 = vunpack.c.h.b16 %v3405
    %v3534 = vunpack.c.l.b16 %v3406
    %v3535 = vunpack.c.h.b16 %v3406
    %v3536 = vunpack.c.l.b16 %v3407
    %v3537 = vunpack.c.h.b16 %v3407
    %v3538 = vunpack.c.l.b16 %v3408
    %v3539 = vunpack.c.h.b16 %v3408
    %v3540 = vunpack.c.l.b16 %v3409
    %v3541 = vunpack.c.h.b16 %v3409
    %v3542 = vunpack.c.l.b16 %v3410
    %v3543 = vunpack.c.h.b16 %v3410
    %v3544 = vunpack.c.l.b16 %v3411
    %v3545 = vunpack.c.h.b16 %v3411
    %v3546 = vunpack.c.l.b16 %v3412
    %v3547 = vunpack.c.h.b16 %v3412
    %v3548 = vunpack.c.l.b16 %v3413
    %v3549 = vunpack.c.h.b16 %v3413
    %v3550 = vunpack.c.l.b16 %v3414
    %v3551 = vunpack.c.h.b16 %v3414
    %v3552 = vunpack.c.l.b16 %v3415
    %v3553 = vunpack.c.h.b16 %v3415
    %v3554 = vunpack.c.l.b16 %v3416
    %v3555 = vunpack.c.h.b16 %v3416
    %v3556 = vunpack.c.l.b16 %v3417
    %v3557 = vunpack.c.h.b16 %v3417
    %v3558 = vunpack.c.l.b16 %v3418
    %v3559 = vunpack.c.h.b16 %v3418
    %v3560 = vunpack.c.l.b16 %v3419
    %v3561 = vunpack.c.h.b16 %v3419
    %v3562 = vunpack.c.l.b16 %v3420
    %v3563 = vunpack.c.h.b16 %v3420
    %v3564 = vunpack.c.l.b16 %v3421
    %v3565 = vunpack.c.h.b16 %v3421
    %v3566 = vpack.c.b16 %v3472, %v3470
    %v3567 = vpack.c.b16 %v3473, %v3471
    %v3568 = vpack.c.b16 %v3476, %v3474
    %v3569 = vpack.c.b16 %v3477, %v3475
    %v3570 = vpack.c.b16 %v3480, %v3478
    %v3571 = vpack.c.b16 %v3481, %v3479
    %v3572 = vpack.c.b16 %v3484, %v3482
    %v3573 = vpack.c.b16 %v3485, %v3483
    %v3574 = vpack.c.b16 %v3488, %v3486
    %v3575 = vpack.c.b16 %v3489, %v3487
    %v3576 = vpack.c.b16 %v3492, %v3490
    %v3577 = vpack.c.b16 %v3493, %v3491
    %v3578 = vpack.c.b16 %v3496, %v3494
    %v3579 = vpack.c.b16 %v3497, %v3495
    %v3580 = vpack.c.b16 %v3500, %v3498
    %v3581 = vpack.c.b16 %v3501, %v3499
    %v3582 = vpack.c.b16 %v3504, %v3502
    %v3583 = vpack.c.b16 %v3505, %v3503
    %v3584 = vpack.c.b16 %v3508, %v3506
    %v3585 = vpack.c.b16 %v3509, %v3507
    %v3586 = vpack.c.b16 %v3512, %v3510
    %v3587 = vpack.c.b16 %v3513, %v3511
    %v3588 = vpack.c.b16 %v3516, %v3514
    %v3589 = vpack.c.b16 %v3517, %v3515
    %v3590 = vpack.c.b16 %v3520, %v3518
    %v3591 = vpack.c.b16 %v3521, %v3519
    %v3592 = vpack.c.b16 %v3524, %v3522
    %v3593 = vpack.c.b16 %v3525, %v3523
    %v3594 = vpack.c.b16 %v3528, %v3526
    %v3595 = vpack.c.b16 %v3529, %v3527
    %v3596 = vpack.c.b16 %v3532, %v3530
    %v3597 = vpack.c.b16 %v3533, %v3531
    %v3598 = vpack.c.b16 %v3536, %v3534
    %v3599 = vpack.c.b16 %v3537, %v3535
    %v3600 = vpack.c.b16 %v3540, %v3538
    %v3601 = vpack.c.b16 %v3541, %v3539
    %v3602 = vpack.c.b16 %v3544, %v3542
    %v3603 = vpack.c.b16 %v3545, %v3543
    %v3604 = vpack.c.b16 %v3548, %v3546
    %v3605 = vpack.c.b16 %v3549, %v3547
    %v3606 = vpack.c.b16 %v3552, %v3550
    %v3607 = vpack.c.b16 %v3553, %v3551
    %v3608 = vpack.c.b16 %v3556, %v3554
    %v3609 = vpack.c.b16 %v3557, %v3555
    %v3610 = vpack.c.b16 %v3560, %v3558
    %v3611 = vpack.c.b16 %v3561, %v3559
    %v3612 = vpack.c.b16 %v3564, %v3562
    %v3613 = vpack.c.b16 %v3565, %v3563
    %3662 = vmatprep.subr.bf16.mxu0 %v3567
    %3663 = vmatpush1.bf16.msra.mxu0 %v3566
    %3664 = vmatprep.subr.bf16.mxu0 %v3569
    %3665 = vmatpush1.bf16.msra.mxu0 %v3568
    %3666 = vmatprep.subr.bf16.mxu0 %v3571
    %3667 = vmatpush1.bf16.msra.mxu0 %v3570
    %3668 = vmatprep.subr.bf16.mxu0 %v3573
    %3669 = vmatpush1.bf16.msra.mxu0 %v3572
    %3670 = vmatprep.subr.bf16.mxu0 %v3575
    %3671 = vmatpush1.bf16.msra.mxu0 %v3574
    %3672 = vmatprep.subr.bf16.mxu0 %v3577
    %3673 = vmatpush1.bf16.msra.mxu0 %v3576
    %3674 = vmatprep.subr.bf16.mxu0 %v3579
    %3675 = vmatpush1.bf16.msra.mxu0 %v3578
    %3676 = vmatprep.subr.bf16.mxu0 %v3581
    %3677 = vmatpush1.bf16.msra.mxu0 %v3580
    %3678 = vmatprep.subr.bf16.mxu0 %v3583
    %3679 = vmatpush1.bf16.msra.mxu0 %v3582
    %3680 = vmatprep.subr.bf16.mxu0 %v3585
    %3681 = vmatpush1.bf16.msra.mxu0 %v3584
    %3682 = vmatprep.subr.bf16.mxu0 %v3587
    %3683 = vmatpush1.bf16.msra.mxu0 %v3586
    %3684 = vmatprep.subr.bf16.mxu0 %v3589
    %3685 = vmatpush1.bf16.msra.mxu0 %v3588
    %3686 = vmatprep.subr.bf16.mxu0 %v3591
    %3687 = vmatpush1.bf16.msra.mxu0 %v3590
    %3688 = vmatprep.subr.bf16.mxu0 %v3593
    %3689 = vmatpush1.bf16.msra.mxu0 %v3592
    %3690 = vmatprep.subr.bf16.mxu0 %v3595
    %3691 = vmatpush1.bf16.msra.mxu0 %v3594
    %3692 = vmatprep.subr.bf16.mxu0 %v3597
    %3693 = vmatpush1.bf16.msra.mxu0 %v3596
    %3694 = vmatprep.mubr.bf16.mxu0 %v3372
    %3695 = vmatmul.mubr.bf16.gmra.mrb[0].mxu0 %v3371
    %v3696 = vpop.f32.mrb[0].mxu0
    %v3697 = vadd.f32 0.0, %v3696
    %v3698 = vpop.f32.mrb[0].mxu0
    %v3699 = vadd.f32 0.0, %v3698
    %v3700 = vpop.f32.mrb[0].mxu0
    %v3701 = vadd.f32 0.0, %v3700
    %v3702 = vpop.f32.mrb[0].mxu0
    %v3703 = vadd.f32 0.0, %v3702
    %3704 = vdwg.mxu0
    %3705 = vmatprep.subr.bf16.mxu0 %v3599
    %3706 = vmatpush1.bf16.msra.mxu0 %v3598
    %3707 = vmatprep.subr.bf16.mxu0 %v3601
    %3708 = vmatpush1.bf16.msra.mxu0 %v3600
    %3709 = vmatprep.subr.bf16.mxu0 %v3603
    %3710 = vmatpush1.bf16.msra.mxu0 %v3602
    %3711 = vmatprep.subr.bf16.mxu0 %v3605
    %3712 = vmatpush1.bf16.msra.mxu0 %v3604
    %3713 = vmatprep.subr.bf16.mxu0 %v3607
    %3714 = vmatpush1.bf16.msra.mxu0 %v3606
    %3715 = vmatprep.subr.bf16.mxu0 %v3609
    %3716 = vmatpush1.bf16.msra.mxu0 %v3608
    %3717 = vmatprep.subr.bf16.mxu0 %v3611
    %3718 = vmatpush1.bf16.msra.mxu0 %v3610
    %3719 = vmatprep.subr.bf16.mxu0 %v3613
    %3720 = vmatpush1.bf16.msra.mxu0 %v3612
    %3721 = vmatprep.subr.bf16.mxu0 0
    %3722 = vmatpush1.bf16.msra.mxu0 0
    %3723 = vmatprep.subr.bf16.mxu0 0
    %3724 = vmatpush1.bf16.msra.mxu0 0
    %3725 = vmatprep.subr.bf16.mxu0 0
    %3726 = vmatpush1.bf16.msra.mxu0 0
    %3727 = vmatprep.subr.bf16.mxu0 0
    %3728 = vmatpush1.bf16.msra.mxu0 0
    %3729 = vmatprep.subr.bf16.mxu0 0
    %3730 = vmatpush1.bf16.msra.mxu0 0
    %3731 = vmatprep.subr.bf16.mxu0 0
    %3732 = vmatpush1.bf16.msra.mxu0 0
    %3733 = vmatprep.subr.bf16.mxu0 0
    %3734 = vmatpush1.bf16.msra.mxu0 0
    %3735 = vmatprep.subr.bf16.mxu0 0
    %3736 = vmatpush1.bf16.msra.mxu0 0
    %3737 = vmatprep.mubr.bf16.mxu0 0
    %3738 = vmatmul.mubr.bf16.gmra.mrb[0].mxu0 %v3373
    %v3739 = vpop.f32.mrb[0].mxu0
    %v3740 = vadd.f32 %v3697, %v3739
    %v3741 = vpop.f32.mrb[0].mxu0
    %v3742 = vadd.f32 %v3699, %v3741
    %v3743 = vpop.f32.mrb[0].mxu0
    %v3744 = vadd.f32 %v3701, %v3743
    %v3745 = vpop.f32.mrb[0].mxu0
    %v3746 = vadd.f32 %v3703, %v3745
    %3747 = vdwg.mxu0
    %v3748 = vld [vmem:[#allocation21] sm:$0xff]
    %vm3749 = vcmask 64512
    %v3751 = vsel %vm3749, %v3748, 0
    %3753 = vmatprep.subr.mxu0 %v3742
    %3754 = vmatpush1.msra.mxu0 %v3740
    %3755 = vmatprep.subr.mxu0 0.0
    %3756 = vmatpush1.msra.mxu0 0.0
    %3757 = vmatprep.subr.mxu0 0.0
    %3758 = vmatpush1.msra.mxu0 0.0
    %3759 = vmatprep.subr.mxu0 0.0
    %3760 = vmatpush1.msra.mxu0 0.0
    %3761 = vmatprep.subr.mxu0 0.0
    %3762 = vmatpush1.msra.mxu0 0.0
    %3763 = vmatprep.subr.mxu0 0.0
    %3764 = vmatpush1.msra.mxu0 0.0
    %3765 = vmatprep.subr.mxu0 0.0
    %3766 = vmatpush1.msra.mxu0 0.0
    %3767 = vmatprep.subr.mxu0 0.0
    %3768 = vmatpush1.msra.mxu0 0.0
    %3769 = vmatprep.subr.mxu0 0.0
    %3770 = vmatpush1.msra.mxu0 0.0
    %3771 = vmatprep.subr.mxu0 0.0
    %3772 = vmatpush1.msra.mxu0 0.0
    %3773 = vmatprep.subr.mxu0 0.0
    %3774 = vmatpush1.msra.mxu0 0.0
    %3775 = vmatprep.subr.mxu0 0.0
    %3776 = vmatpush1.msra.mxu0 0.0
    %3777 = vmatprep.subr.mxu0 0.0
    %3778 = vmatpush1.msra.mxu0 0.0
    %3779 = vmatprep.subr.mxu0 0.0
    %3780 = vmatpush1.msra.mxu0 0.0
    %3781 = vmatprep.subr.mxu0 0.0
    %3782 = vmatpush1.msra.mxu0 0.0
    %3783 = vmatprep.subr.mxu0 0.0
    %3784 = vmatpush1.msra.mxu0 0.0
    %3785 = vmatprep.subr.mxu0 0.0
    %3786 = vmatpush1.msra.mxu0 0.0
    %3787 = vmatprep.subr.mxu0 0.0
    %3788 = vmatpush1.msra.mxu0 0.0
    %3789 = vmatprep.subr.mxu0 0.0
    %3790 = vmatpush1.msra.mxu0 0.0
    %3791 = vmatprep.subr.mxu0 0.0
    %3792 = vmatpush1.msra.mxu0 0.0
    %3793 = vmatprep.subr.mxu0 0.0
    %3794 = vmatpush1.msra.mxu0 0.0
    %3795 = vmatprep.subr.mxu0 0.0
    %3796 = vmatpush1.msra.mxu0 0.0
    %3797 = vmatprep.subr.mxu0 0.0
    %3798 = vmatpush1.msra.mxu0 0.0
    %3799 = vmatprep.subr.mxu0 0.0
    %3800 = vmatpush1.msra.mxu0 0.0
    %3801 = vmatprep.subr.mxu0 0.0
    %3802 = vmatpush1.msra.mxu0 0.0
    %3803 = vmatprep.subr.mxu0 0.0
    %3804 = vmatpush1.msra.mxu0 0.0
    %3805 = vmatprep.subr.mxu0 0.0
    %3806 = vmatpush1.msra.mxu0 0.0
    %3807 = vmatprep.subr.mxu0 0.0
    %3808 = vmatpush1.msra.mxu0 0.0
    %3809 = vmatprep.subr.mxu0 0.0
    %3810 = vmatpush1.msra.mxu0 0.0
    %3811 = vmatprep.subr.mxu0 0.0
    %3812 = vmatpush1.msra.mxu0 0.0
    %3813 = vmatprep.subr.mxu0 0.0
    %3814 = vmatpush1.msra.mxu0 0.0
    %3815 = vmatprep.subr.mxu0 0.0
    %3816 = vmatpush1.msra.mxu0 0.0
    %3817 = vmatprep.mubr.f32.mxu0 0.0
    %3818 = vmatmul.mubr.f32.gmra.mrb[0].mxu0 %v3751
    %v3819 = vpop.f32.mrb[0].mxu0
    %v3820 = vadd.f32 0.0, %v3819
    %v3821 = vpop.f32.mrb[0].mxu0
    %v3822 = vadd.f32 0.0, %v3821
    %3823 = vdwg.mxu0
    %3824 = vmatprep.subr.mxu0 %v3746
    %3825 = vmatpush1.msra.mxu0 %v3744
    %3826 = vmatprep.subr.mxu0 0.0
    %3827 = vmatpush1.msra.mxu0 0.0
    %3828 = vmatprep.subr.mxu0 0.0
    %3829 = vmatpush1.msra.mxu0 0.0
    %3830 = vmatprep.subr.mxu0 0.0
    %3831 = vmatpush1.msra.mxu0 0.0
    %3832 = vmatprep.subr.mxu0 0.0
    %3833 = vmatpush1.msra.mxu0 0.0
    %3834 = vmatprep.subr.mxu0 0.0
    %3835 = vmatpush1.msra.mxu0 0.0
    %3836 = vmatprep.subr.mxu0 0.0
    %3837 = vmatpush1.msra.mxu0 0.0
    %3838 = vmatprep.subr.mxu0 0.0
    %3839 = vmatpush1.msra.mxu0 0.0
    %3840 = vmatprep.subr.mxu0 0.0
    %3841 = vmatpush1.msra.mxu0 0.0
    %3842 = vmatprep.subr.mxu0 0.0
    %3843 = vmatpush1.msra.mxu0 0.0
    %3844 = vmatprep.subr.mxu0 0.0
    %3845 = vmatpush1.msra.mxu0 0.0
    %3846 = vmatprep.subr.mxu0 0.0
    %3847 = vmatpush1.msra.mxu0 0.0
    %3848 = vmatprep.subr.mxu0 0.0
    %3849 = vmatpush1.msra.mxu0 0.0
    %3850 = vmatprep.subr.mxu0 0.0
    %3851 = vmatpush1.msra.mxu0 0.0
    %3852 = vmatprep.subr.mxu0 0.0
    %3853 = vmatpush1.msra.mxu0 0.0
    %3854 = vmatprep.subr.mxu0 0.0
    %3855 = vmatpush1.msra.mxu0 0.0
    %3856 = vmatprep.subr.mxu0 0.0
    %3857 = vmatpush1.msra.mxu0 0.0
    %3858 = vmatprep.subr.mxu0 0.0
    %3859 = vmatpush1.msra.mxu0 0.0
    %3860 = vmatprep.subr.mxu0 0.0
    %3861 = vmatpush1.msra.mxu0 0.0
    %3862 = vmatprep.subr.mxu0 0.0
    %3863 = vmatpush1.msra.mxu0 0.0
    %3864 = vmatprep.subr.mxu0 0.0
    %3865 = vmatpush1.msra.mxu0 0.0
    %3866 = vmatprep.subr.mxu0 0.0
    %3867 = vmatpush1.msra.mxu0 0.0
    %3868 = vmatprep.subr.mxu0 0.0
    %3869 = vmatpush1.msra.mxu0 0.0
    %3870 = vmatprep.subr.mxu0 0.0
    %3871 = vmatpush1.msra.mxu0 0.0
    %3872 = vmatprep.subr.mxu0 0.0
    %3873 = vmatpush1.msra.mxu0 0.0
    %3874 = vmatprep.subr.mxu0 0.0
    %3875 = vmatpush1.msra.mxu0 0.0
    %3876 = vmatprep.subr.mxu0 0.0
    %3877 = vmatpush1.msra.mxu0 0.0
    %3878 = vmatprep.subr.mxu0 0.0
    %3879 = vmatpush1.msra.mxu0 0.0
    %3880 = vmatprep.subr.mxu0 0.0
    %3881 = vmatpush1.msra.mxu0 0.0
    %3882 = vmatprep.subr.mxu0 0.0
    %3883 = vmatpush1.msra.mxu0 0.0
    %3884 = vmatprep.subr.mxu0 0.0
    %3885 = vmatpush1.msra.mxu0 0.0
    %3886 = vmatprep.subr.mxu0 0.0
    %3887 = vmatpush1.msra.mxu0 0.0
    %3888 = vmatprep.mubr.f32.mxu0 0.0
    %3889 = vmatmul.mubr.f32.gmra.mrb[0].mxu0 %v3751
    %v3890 = vpop.f32.mrb[0].mxu0
    %v3891 = vadd.f32 0.0, %v3890
    %v3892 = vpop.f32.mrb[0].mxu0
    %v3893 = vadd.f32 0.0, %v3892
    %3894 = vdwg.mxu0
    %v3897 = vrot.slane %v3891, 4
    %v3898 = vrot.slane %v3893, 4
    %vm3901 = vcmask 1043456
    %v3902 = vsel %vm3901, %v3820, %v3897
    %v3903 = vsel %vm3901, %v3822, %v3898
    %v3906 = vrot.slane %v3820, 4
    %v3907 = vrot.slane %v3822, 4
    %v3910 = vsel %vm3901, %v3906, %v3891
    %v3911 = vsel %vm3901, %v3907, %v3893
    %v3912 = vmax.f32 %v3902, %v3910
    %v3913 = vmax.f32 %v3903, %v3911
    %3916 = vrot.lane.b32.xlu0 %v3912, 96
    %v3917 = vpop.permute.xlu0 %3916
    %3918 = vrot.lane.b32.xlu0 %v3913, 96
    %v3919 = vpop.permute.xlu0 %3918
    %vm3920 = vcmask 785408
    %v3921 = vsel %vm3920, %v3917, %v3919
    %v3925 = vsel %vm3920, %v3919, %v3917
    %v3926 = vmax.f32 %v3912, %v3921
    %v3927 = vmax.f32 %v3913, %v3925
    %v3928 = vpack.c.bf16 %v3926, %v3926
    %v3929 = vpack.c.bf16 %v3927, %v3927
    %v3930 = vld [vmem:[#allocation18] sm:$0xf]
    %v3931 = vld [vmem:[#allocation18 + $0x4] sm:$0xf]
    %v3932 = vld [vmem:[#allocation18 + $0x8] sm:$0xf]
    %v3933 = vld [vmem:[#allocation18 + $0xc] sm:$0xf]
    %v3934 = vld [vmem:[#allocation18 + $0x10] sm:$0xf]
    %v3935 = vld [vmem:[#allocation18 + $0x14] sm:$0xf]
    %v3936 = vld [vmem:[#allocation18 + $0x18] sm:$0xf]
    %v3937 = vld [vmem:[#allocation18 + $0x1c] sm:$0xf]
    %v3938 = vld [vmem:[#allocation18 + $0x20] sm:$0xf]
    %v3939 = vld [vmem:[#allocation18 + $0x24] sm:$0xf]
    %v3940 = vld [vmem:[#allocation18 + $0x28] sm:$0xf]
    %v3941 = vld [vmem:[#allocation18 + $0x2c] sm:$0xf]
    %v3942 = vld [vmem:[#allocation18 + $0x30] sm:$0xf]
    %v3943 = vld [vmem:[#allocation18 + $0x34] sm:$0xf]
    %v3944 = vld [vmem:[#allocation18 + $0x38] sm:$0xf]
    %v3945 = vld [vmem:[#allocation18 + $0x3c] sm:$0xf]
    %v3946 = vld [vmem:[#allocation18 + $0x40] sm:$0xf]
    %v3947 = vld [vmem:[#allocation18 + $0x44] sm:$0xf]
    %v3948 = vld [vmem:[#allocation18 + $0x48] sm:$0xf]
    %v3949 = vld [vmem:[#allocation18 + $0x4c] sm:$0xf]
    %v3950 = vld [vmem:[#allocation18 + $0x50] sm:$0xf]
    %v3951 = vld [vmem:[#allocation18 + $0x54] sm:$0xf]
    %v3952 = vld [vmem:[#allocation18 + $0x58] sm:$0xf]
    %v3953 = vld [vmem:[#allocation18 + $0x5c] sm:$0xf]
    %v3954 = vld [vmem:[#allocation18 + $0x60] sm:$0xf]
    %v3955 = vld [vmem:[#allocation18 + $0x64] sm:$0xf]
    %v3956 = vld [vmem:[#allocation18 + $0x68] sm:$0xf]
    %v3957 = vld [vmem:[#allocation18 + $0x6c] sm:$0xf]
    %v3958 = vld [vmem:[#allocation18 + $0x70] sm:$0xf]
    %v3959 = vld [vmem:[#allocation18 + $0x74] sm:$0xf]
    %v3960 = vld [vmem:[#allocation18 + $0x78] sm:$0xf]
    %v3961 = vld [vmem:[#allocation18 + $0x7c] sm:$0xf]
    %v3962 = vld [vmem:[#allocation20] sm:$0x1]
    %v3964 = vlaneseq
    %v3965 = vshrl.u32 %v3964, 7
    %v3966 = vsub.s32 0, %v3965
    %v3967 = vrot.slane %v3962, %v3966
    %v4001 = vunpack.c.l.b16 %v3930
    %v4002 = vunpack.c.l.b16 %v3931
    %v4003 = vunpack.c.l.b16 %v3932
    %v4004 = vunpack.c.l.b16 %v3933
    %v4005 = vunpack.c.l.b16 %v3934
    %v4006 = vunpack.c.l.b16 %v3935
    %v4007 = vunpack.c.l.b16 %v3936
    %v4008 = vunpack.c.l.b16 %v3937
    %v4009 = vunpack.c.l.b16 %v3938
    %v4010 = vunpack.c.l.b16 %v3939
    %v4011 = vunpack.c.l.b16 %v3940
    %v4012 = vunpack.c.l.b16 %v3941
    %v4013 = vunpack.c.l.b16 %v3942
    %v4014 = vunpack.c.l.b16 %v3943
    %v4015 = vunpack.c.l.b16 %v3944
    %v4016 = vunpack.c.l.b16 %v3945
    %v4017 = vunpack.c.l.b16 %v3946
    %v4018 = vunpack.c.l.b16 %v3947
    %v4019 = vunpack.c.l.b16 %v3948
    %v4020 = vunpack.c.l.b16 %v3949
    %v4021 = vunpack.c.l.b16 %v3950
    %v4022 = vunpack.c.l.b16 %v3951
    %v4023 = vunpack.c.l.b16 %v3952
    %v4024 = vunpack.c.l.b16 %v3953
    %v4025 = vunpack.c.l.b16 %v3954
    %v4026 = vunpack.c.l.b16 %v3955
    %v4027 = vunpack.c.l.b16 %v3956
    %v4028 = vunpack.c.l.b16 %v3957
    %v4029 = vunpack.c.l.b16 %v3958
    %v4030 = vunpack.c.l.b16 %v3959
    %v4031 = vunpack.c.l.b16 %v3960
    %v4032 = vunpack.c.l.b16 %v3961
    %v4033 = vpack.c.b16 %v4002, %v4001
    %v4034 = vpack.c.b16 %v4004, %v4003
    %v4035 = vpack.c.b16 %v4006, %v4005
    %v4036 = vpack.c.b16 %v4008, %v4007
    %v4037 = vpack.c.b16 %v4010, %v4009
    %v4038 = vpack.c.b16 %v4012, %v4011
    %v4039 = vpack.c.b16 %v4014, %v4013
    %v4040 = vpack.c.b16 %v4016, %v4015
    %v4041 = vpack.c.b16 %v4018, %v4017
    %v4042 = vpack.c.b16 %v4020, %v4019
    %v4043 = vpack.c.b16 %v4022, %v4021
    %v4044 = vpack.c.b16 %v4024, %v4023
    %v4045 = vpack.c.b16 %v4026, %v4025
    %v4046 = vpack.c.b16 %v4028, %v4027
    %v4047 = vpack.c.b16 %v4030, %v4029
    %v4048 = vpack.c.b16 %v4032, %v4031
    %4065 = vmatprep.subr.bf16.mxu0 0
    %4066 = vmatpush1.bf16.msra.mxu0 %v4033
    %4067 = vmatprep.subr.bf16.mxu0 0
    %4068 = vmatpush1.bf16.msra.mxu0 %v4034
    %4069 = vmatprep.subr.bf16.mxu0 0
    %4070 = vmatpush1.bf16.msra.mxu0 %v4035
    %4071 = vmatprep.subr.bf16.mxu0 0
    %4072 = vmatpush1.bf16.msra.mxu0 %v4036
    %4073 = vmatprep.subr.bf16.mxu0 0
    %4074 = vmatpush1.bf16.msra.mxu0 %v4037
    %4075 = vmatprep.subr.bf16.mxu0 0
    %4076 = vmatpush1.bf16.msra.mxu0 %v4038
    %4077 = vmatprep.subr.bf16.mxu0 0
    %4078 = vmatpush1.bf16.msra.mxu0 %v4039
    %4079 = vmatprep.subr.bf16.mxu0 0
    %4080 = vmatpush1.bf16.msra.mxu0 %v4040
    %4081 = vmatprep.subr.bf16.mxu0 0
    %4082 = vmatpush1.bf16.msra.mxu0 %v4041
    %4083 = vmatprep.subr.bf16.mxu0 0
    %4084 = vmatpush1.bf16.msra.mxu0 %v4042
    %4085 = vmatprep.subr.bf16.mxu0 0
    %4086 = vmatpush1.bf16.msra.mxu0 %v4043
    %4087 = vmatprep.subr.bf16.mxu0 0
    %4088 = vmatpush1.bf16.msra.mxu0 %v4044
    %4089 = vmatprep.subr.bf16.mxu0 0
    %4090 = vmatpush1.bf16.msra.mxu0 %v4045
    %4091 = vmatprep.subr.bf16.mxu0 0
    %4092 = vmatpush1.bf16.msra.mxu0 %v4046
    %4093 = vmatprep.subr.bf16.mxu0 0
    %4094 = vmatpush1.bf16.msra.mxu0 %v4047
    %4095 = vmatprep.subr.bf16.mxu0 0
    %4096 = vmatpush1.bf16.msra.mxu0 %v4048
    %4097 = vmatprep.mubr.bf16.mxu0 %v3929
    %4098 = vmatmul.mubr.bf16.gmra.mrb[0].mxu0 %v3928
    %v4099 = vpop.f32.mrb[0].mxu0
    %v4100 = vadd.f32 %v3967, %v4099
    %v4101 = vpop.f32.mrb[0].mxu0
    %v4102 = vpop.f32.mrb[0].mxu0
    %v4103 = vpop.f32.mrb[0].mxu0
    %4104 = vdwg.mxu0
    %v4105 = vmax.f32 %v4100, 0.0
    %v4106 = vlaneseq
    %v4107 = vand.u32 %v4106, 127
    %v4108 = vmul.u32 %v240, 4
    %vm4109 = vcmp.eq.s32.totalorder %v4107, %v4108
    %v4110 = vsel %vm4109, 1, 0
    %v4111 = vcvt.s32.f32 %v4110
    %v4113 = vsel %vm3749, %v4111, 0
    %4115 = vmatprep.subr.mxu0 0.0
    %4116 = vmatpush1.msra.mxu0 %v4105
    %4117 = vmatprep.subr.mxu0 0.0
    %4118 = vmatpush1.msra.mxu0 0.0
    %4119 = vmatprep.subr.mxu0 0.0
    %4120 = vmatpush1.msra.mxu0 0.0
    %4121 = vmatprep.subr.mxu0 0.0
    %4122 = vmatpush1.msra.mxu0 0.0
    %4123 = vmatprep.subr.mxu0 0.0
    %4124 = vmatpush1.msra.mxu0 0.0
    %4125 = vmatprep.subr.mxu0 0.0
    %4126 = vmatpush1.msra.mxu0 0.0
    %4127 = vmatprep.subr.mxu0 0.0
    %4128 = vmatpush1.msra.mxu0 0.0
    %4129 = vmatprep.subr.mxu0 0.0
    %4130 = vmatpush1.msra.mxu0 0.0
    %4131 = vmatprep.subr.mxu0 0.0
    %4132 = vmatpush1.msra.mxu0 0.0
    %4133 = vmatprep.subr.mxu0 0.0
    %4134 = vmatpush1.msra.mxu0 0.0
    %4135 = vmatprep.subr.mxu0 0.0
    %4136 = vmatpush1.msra.mxu0 0.0
    %4137 = vmatprep.subr.mxu0 0.0
    %4138 = vmatpush1.msra.mxu0 0.0
    %4139 = vmatprep.subr.mxu0 0.0
    %4140 = vmatpush1.msra.mxu0 0.0
    %4141 = vmatprep.subr.mxu0 0.0
    %4142 = vmatpush1.msra.mxu0 0.0
    %4143 = vmatprep.subr.mxu0 0.0
    %4144 = vmatpush1.msra.mxu0 0.0
    %4145 = vmatprep.subr.mxu0 0.0
    %4146 = vmatpush1.msra.mxu0 0.0
    %4147 = vmatprep.subr.mxu0 0.0
    %4148 = vmatpush1.msra.mxu0 0.0
    %4149 = vmatprep.subr.mxu0 0.0
    %4150 = vmatpush1.msra.mxu0 0.0
    %4151 = vmatprep.subr.mxu0 0.0
    %4152 = vmatpush1.msra.mxu0 0.0
    %4153 = vmatprep.subr.mxu0 0.0
    %4154 = vmatpush1.msra.mxu0 0.0
    %4155 = vmatprep.subr.mxu0 0.0
    %4156 = vmatpush1.msra.mxu0 0.0
    %4157 = vmatprep.subr.mxu0 0.0
    %4158 = vmatpush1.msra.mxu0 0.0
    %4159 = vmatprep.subr.mxu0 0.0
    %4160 = vmatpush1.msra.mxu0 0.0
    %4161 = vmatprep.subr.mxu0 0.0
    %4162 = vmatpush1.msra.mxu0 0.0
    %4163 = vmatprep.subr.mxu0 0.0
    %4164 = vmatpush1.msra.mxu0 0.0
    %4165 = vmatprep.subr.mxu0 0.0
    %4166 = vmatpush1.msra.mxu0 0.0
    %4167 = vmatprep.subr.mxu0 0.0
    %4168 = vmatpush1.msra.mxu0 0.0
    %4169 = vmatprep.subr.mxu0 0.0
    %4170 = vmatpush1.msra.mxu0 0.0
    %4171 = vmatprep.subr.mxu0 0.0
    %4172 = vmatpush1.msra.mxu0 0.0
    %4173 = vmatprep.subr.mxu0 0.0
    %4174 = vmatpush1.msra.mxu0 0.0
    %4175 = vmatprep.subr.mxu0 0.0
    %4176 = vmatpush1.msra.mxu0 0.0
    %4177 = vmatprep.subr.mxu0 0.0
    %4178 = vmatpush1.msra.mxu0 0.0
    %4179 = vmatprep.mubr.f32.mxu0 0.0
    %4180 = vmatmul.mubr.f32.gmra.mrb[0].mxu0 %v4113
    %v4181 = vpop.f32.mrb[0].mxu0
    %v4182 = vadd.f32 0.0, %v4181
    %v4183 = vpop.f32.mrb[0].mxu0
    %4184 = vdwg.mxu0
    %v4185 = vadd.s32 %v4108, 1
    %vm4186 = vcmp.eq.s32.totalorder %v4107, %v4185
    %v4187 = vsel %vm4186, 1, 0
    %v4188 = vcvt.s32.f32 %v4187
    %v4190 = vsel %vm3749, %v4188, 0
    %4192 = vmatprep.subr.mxu0 0.0
    %4193 = vmatpush1.msra.mxu0 %v4105
    %4194 = vmatprep.subr.mxu0 0.0
    %4195 = vmatpush1.msra.mxu0 0.0
    %4196 = vmatprep.subr.mxu0 0.0
    %4197 = vmatpush1.msra.mxu0 0.0
    %4198 = vmatprep.subr.mxu0 0.0
    %4199 = vmatpush1.msra.mxu0 0.0
    %4200 = vmatprep.subr.mxu0 0.0
    %4201 = vmatpush1.msra.mxu0 0.0
    %4202 = vmatprep.subr.mxu0 0.0
    %4203 = vmatpush1.msra.mxu0 0.0
    %4204 = vmatprep.subr.mxu0 0.0
    %4205 = vmatpush1.msra.mxu0 0.0
    %4206 = vmatprep.subr.mxu0 0.0
    %4207 = vmatpush1.msra.mxu0 0.0
    %4208 = vmatprep.subr.mxu0 0.0
    %4209 = vmatpush1.msra.mxu0 0.0
    %4210 = vmatprep.subr.mxu0 0.0
    %4211 = vmatpush1.msra.mxu0 0.0
    %4212 = vmatprep.subr.mxu0 0.0
    %4213 = vmatpush1.msra.mxu0 0.0
    %4214 = vmatprep.subr.mxu0 0.0
    %4215 = vmatpush1.msra.mxu0 0.0
    %4216 = vmatprep.subr.mxu0 0.0
    %4217 = vmatpush1.msra.mxu0 0.0
    %4218 = vmatprep.subr.mxu0 0.0
    %4219 = vmatpush1.msra.mxu0 0.0
    %4220 = vmatprep.subr.mxu0 0.0
    %4221 = vmatpush1.msra.mxu0 0.0
    %4222 = vmatprep.subr.mxu0 0.0
    %4223 = vmatpush1.msra.mxu0 0.0
    %4224 = vmatprep.subr.mxu0 0.0
    %4225 = vmatpush1.msra.mxu0 0.0
    %4226 = vmatprep.subr.mxu0 0.0
    %4227 = vmatpush1.msra.mxu0 0.0
    %4228 = vmatprep.subr.mxu0 0.0
    %4229 = vmatpush1.msra.mxu0 0.0
    %4230 = vmatprep.subr.mxu0 0.0
    %4231 = vmatpush1.msra.mxu0 0.0
    %4232 = vmatprep.subr.mxu0 0.0
    %4233 = vmatpush1.msra.mxu0 0.0
    %4234 = vmatprep.subr.mxu0 0.0
    %4235 = vmatpush1.msra.mxu0 0.0
    %4236 = vmatprep.subr.mxu0 0.0
    %4237 = vmatpush1.msra.mxu0 0.0
    %4238 = vmatprep.subr.mxu0 0.0
    %4239 = vmatpush1.msra.mxu0 0.0
    %4240 = vmatprep.subr.mxu0 0.0
    %4241 = vmatpush1.msra.mxu0 0.0
    %4242 = vmatprep.subr.mxu0 0.0
    %4243 = vmatpush1.msra.mxu0 0.0
    %4244 = vmatprep.subr.mxu0 0.0
    %4245 = vmatpush1.msra.mxu0 0.0
    %4246 = vmatprep.subr.mxu0 0.0
    %4247 = vmatpush1.msra.mxu0 0.0
    %4248 = vmatprep.subr.mxu0 0.0
    %4249 = vmatpush1.msra.mxu0 0.0
    %4250 = vmatprep.subr.mxu0 0.0
    %4251 = vmatpush1.msra.mxu0 0.0
    %4252 = vmatprep.subr.mxu0 0.0
    %4253 = vmatpush1.msra.mxu0 0.0
    %4254 = vmatprep.subr.mxu0 0.0
    %4255 = vmatpush1.msra.mxu0 0.0
    %4256 = vmatprep.mubr.f32.mxu0 0.0
    %4257 = vmatmul.mubr.f32.gmra.mrb[0].mxu0 %v4190
    %v4258 = vpop.f32.mrb[0].mxu0
    %v4259 = vadd.f32 0.0, %v4258
    %v4260 = vpop.f32.mrb[0].mxu0
    %4261 = vdwg.mxu0
    %v4262 = vadd.s32 %v4108, 2
    %vm4263 = vcmp.eq.s32.totalorder %v4107, %v4262
    %v4264 = vsel %vm4263, 1, 0
    %v4265 = vcvt.s32.f32 %v4264
    %v4267 = vsel %vm3749, %v4265, 0
    %4269 = vmatprep.subr.mxu0 0.0
    %4270 = vmatpush1.msra.mxu0 %v4105
    %4271 = vmatprep.subr.mxu0 0.0
    %4272 = vmatpush1.msra.mxu0 0.0
    %4273 = vmatprep.subr.mxu0 0.0
    %4274 = vmatpush1.msra.mxu0 0.0
    %4275 = vmatprep.subr.mxu0 0.0
    %4276 = vmatpush1.msra.mxu0 0.0
    %4277 = vmatprep.subr.mxu0 0.0
    %4278 = vmatpush1.msra.mxu0 0.0
    %4279 = vmatprep.subr.mxu0 0.0
    %4280 = vmatpush1.msra.mxu0 0.0
    %4281 = vmatprep.subr.mxu0 0.0
    %4282 = vmatpush1.msra.mxu0 0.0
    %4283 = vmatprep.subr.mxu0 0.0
    %4284 = vmatpush1.msra.mxu0 0.0
    %4285 = vmatprep.subr.mxu0 0.0
    %4286 = vmatpush1.msra.mxu0 0.0
    %4287 = vmatprep.subr.mxu0 0.0
    %4288 = vmatpush1.msra.mxu0 0.0
    %4289 = vmatprep.subr.mxu0 0.0
    %4290 = vmatpush1.msra.mxu0 0.0
    %4291 = vmatprep.subr.mxu0 0.0
    %4292 = vmatpush1.msra.mxu0 0.0
    %4293 = vmatprep.subr.mxu0 0.0
    %4294 = vmatpush1.msra.mxu0 0.0
    %4295 = vmatprep.subr.mxu0 0.0
    %4296 = vmatpush1.msra.mxu0 0.0
    %4297 = vmatprep.subr.mxu0 0.0
    %4298 = vmatpush1.msra.mxu0 0.0
    %4299 = vmatprep.subr.mxu0 0.0
    %4300 = vmatpush1.msra.mxu0 0.0
    %4301 = vmatprep.subr.mxu0 0.0
    %4302 = vmatpush1.msra.mxu0 0.0
    %4303 = vmatprep.subr.mxu0 0.0
    %4304 = vmatpush1.msra.mxu0 0.0
    %4305 = vmatprep.subr.mxu0 0.0
    %4306 = vmatpush1.msra.mxu0 0.0
    %4307 = vmatprep.subr.mxu0 0.0
    %4308 = vmatpush1.msra.mxu0 0.0
    %4309 = vmatprep.subr.mxu0 0.0
    %4310 = vmatpush1.msra.mxu0 0.0
    %4311 = vmatprep.subr.mxu0 0.0
    %4312 = vmatpush1.msra.mxu0 0.0
    %4313 = vmatprep.subr.mxu0 0.0
    %4314 = vmatpush1.msra.mxu0 0.0
    %4315 = vmatprep.subr.mxu0 0.0
    %4316 = vmatpush1.msra.mxu0 0.0
    %4317 = vmatprep.subr.mxu0 0.0
    %4318 = vmatpush1.msra.mxu0 0.0
    %4319 = vmatprep.subr.mxu0 0.0
    %4320 = vmatpush1.msra.mxu0 0.0
    %4321 = vmatprep.subr.mxu0 0.0
    %4322 = vmatpush1.msra.mxu0 0.0
    %4323 = vmatprep.subr.mxu0 0.0
    %4324 = vmatpush1.msra.mxu0 0.0
    %4325 = vmatprep.subr.mxu0 0.0
    %4326 = vmatpush1.msra.mxu0 0.0
    %4327 = vmatprep.subr.mxu0 0.0
    %4328 = vmatpush1.msra.mxu0 0.0
    %4329 = vmatprep.subr.mxu0 0.0
    %4330 = vmatpush1.msra.mxu0 0.0
    %4331 = vmatprep.subr.mxu0 0.0
    %4332 = vmatpush1.msra.mxu0 0.0
    %4333 = vmatprep.mubr.f32.mxu0 0.0
    %4334 = vmatmul.mubr.f32.gmra.mrb[0].mxu0 %v4267
    %v4335 = vpop.f32.mrb[0].mxu0
    %v4336 = vadd.f32 0.0, %v4335
    %v4337 = vpop.f32.mrb[0].mxu0
    %4338 = vdwg.mxu0
    %v4339 = vadd.s32 %v4108, 3
    %vm4340 = vcmp.eq.s32.totalorder %v4107, %v4339
    %v4341 = vsel %vm4340, 1, 0
    %v4342 = vcvt.s32.f32 %v4341
    %v4344 = vsel %vm3749, %v4342, 0
    %4346 = vmatprep.subr.mxu0 0.0
    %4347 = vmatpush1.msra.mxu0 %v4105
    %4348 = vmatprep.subr.mxu0 0.0
    %4349 = vmatpush1.msra.mxu0 0.0
    %4350 = vmatprep.subr.mxu0 0.0
    %4351 = vmatpush1.msra.mxu0 0.0
    %4352 = vmatprep.subr.mxu0 0.0
    %4353 = vmatpush1.msra.mxu0 0.0
    %4354 = vmatprep.subr.mxu0 0.0
    %4355 = vmatpush1.msra.mxu0 0.0
    %4356 = vmatprep.subr.mxu0 0.0
    %4357 = vmatpush1.msra.mxu0 0.0
    %4358 = vmatprep.subr.mxu0 0.0
    %4359 = vmatpush1.msra.mxu0 0.0
    %4360 = vmatprep.subr.mxu0 0.0
    %4361 = vmatpush1.msra.mxu0 0.0
    %4362 = vmatprep.subr.mxu0 0.0
    %4363 = vmatpush1.msra.mxu0 0.0
    %4364 = vmatprep.subr.mxu0 0.0
    %4365 = vmatpush1.msra.mxu0 0.0
    %4366 = vmatprep.subr.mxu0 0.0
    %4367 = vmatpush1.msra.mxu0 0.0
    %4368 = vmatprep.subr.mxu0 0.0
    %4369 = vmatpush1.msra.mxu0 0.0
    %4370 = vmatprep.subr.mxu0 0.0
    %4371 = vmatpush1.msra.mxu0 0.0
    %4372 = vmatprep.subr.mxu0 0.0
    %4373 = vmatpush1.msra.mxu0 0.0
    %4374 = vmatprep.subr.mxu0 0.0
    %4375 = vmatpush1.msra.mxu0 0.0
    %4376 = vmatprep.subr.mxu0 0.0
    %4377 = vmatpush1.msra.mxu0 0.0
    %4378 = vmatprep.subr.mxu0 0.0
    %4379 = vmatpush1.msra.mxu0 0.0
    %4380 = vmatprep.subr.mxu0 0.0
    %4381 = vmatpush1.msra.mxu0 0.0
    %4382 = vmatprep.subr.mxu0 0.0
    %4383 = vmatpush1.msra.mxu0 0.0
    %4384 = vmatprep.subr.mxu0 0.0
    %4385 = vmatpush1.msra.mxu0 0.0
    %4386 = vmatprep.subr.mxu0 0.0
    %4387 = vmatpush1.msra.mxu0 0.0
    %4388 = vmatprep.subr.mxu0 0.0
    %4389 = vmatpush1.msra.mxu0 0.0
    %4390 = vmatprep.subr.mxu0 0.0
    %4391 = vmatpush1.msra.mxu0 0.0
    %4392 = vmatprep.subr.mxu0 0.0
    %4393 = vmatpush1.msra.mxu0 0.0
    %4394 = vmatprep.subr.mxu0 0.0
    %4395 = vmatpush1.msra.mxu0 0.0
    %4396 = vmatprep.subr.mxu0 0.0
    %4397 = vmatpush1.msra.mxu0 0.0
    %4398 = vmatprep.subr.mxu0 0.0
    %4399 = vmatpush1.msra.mxu0 0.0
    %4400 = vmatprep.subr.mxu0 0.0
    %4401 = vmatpush1.msra.mxu0 0.0
    %4402 = vmatprep.subr.mxu0 0.0
    %4403 = vmatpush1.msra.mxu0 0.0
    %4404 = vmatprep.subr.mxu0 0.0
    %4405 = vmatpush1.msra.mxu0 0.0
    %4406 = vmatprep.subr.mxu0 0.0
    %4407 = vmatpush1.msra.mxu0 0.0
    %4408 = vmatprep.subr.mxu0 0.0
    %4409 = vmatpush1.msra.mxu0 0.0
    %4410 = vmatprep.mubr.f32.mxu0 0.0
    %4411 = vmatmul.mubr.f32.gmra.mrb[0].mxu0 %v4344
    %v4412 = vpop.f32.mrb[0].mxu0
    %v4413 = vadd.f32 0.0, %v4412
    %v4414 = vpop.f32.mrb[0].mxu0
    %4415 = vdwg.mxu0
    %v4416 = vld [vmem:[%s17] sm:$0xff]
    %v4417 = vld [vmem:[%s17 + $0x8] sm:$0xff]
    %v4418 = vld [vmem:[%s17 + $0x10] sm:$0xff]
    %v4419 = vld [vmem:[%s17 + $0x18] sm:$0xff]
    %v4420 = vld [vmem:[%s17 + $0x20] sm:$0xff]
    %v4421 = vld [vmem:[%s17 + $0x28] sm:$0xff]
    %v4422 = vld [vmem:[%s17 + $0x30] sm:$0xff]
    %v4423 = vld [vmem:[%s17 + $0x38] sm:$0xff]
    %v4424 = vld [vmem:[%s17 + $0x40] sm:$0xff]
    %v4425 = vld [vmem:[%s17 + $0x48] sm:$0xff]
    %v4426 = vld [vmem:[%s17 + $0x50] sm:$0xff]
    %v4427 = vld [vmem:[%s17 + $0x58] sm:$0xff]
    %v4428 = vld [vmem:[%s17 + $0x60] sm:$0xff]
    %v4429 = vld [vmem:[%s17 + $0x68] sm:$0xff]
    %v4430 = vld [vmem:[%s17 + $0x70] sm:$0xff]
    %v4431 = vld [vmem:[%s17 + $0x78] sm:$0xff]
    %v4432 = vld [vmem:[%s17 + $0x80] sm:$0xff]
    %v4433 = vld [vmem:[%s17 + $0x88] sm:$0xff]
    %v4434 = vld [vmem:[%s17 + $0x90] sm:$0xff]
    %v4435 = vld [vmem:[%s17 + $0x98] sm:$0xff]
    %v4436 = vld [vmem:[%s17 + $0xa0] sm:$0xff]
    %v4437 = vld [vmem:[%s17 + $0xa8] sm:$0xff]
    %v4438 = vld [vmem:[%s17 + $0xb0] sm:$0xff]
    %v4439 = vld [vmem:[%s17 + $0xb8] sm:$0xff]
    %v4440 = vld [vmem:[%s17 + $0xc0] sm:$0xff]
    %v4441 = vld [vmem:[%s17 + $0xc8] sm:$0xff]
    %v4442 = vld [vmem:[%s17 + $0xd0] sm:$0xff]
    %v4443 = vld [vmem:[%s17 + $0xd8] sm:$0xff]
    %v4444 = vld [vmem:[%s17 + $0xe0] sm:$0xff]
    %v4445 = vld [vmem:[%s17 + $0xe8] sm:$0xff]
    %v4446 = vld [vmem:[%s17 + $0xf0] sm:$0xff]
    %v4447 = vld [vmem:[%s17 + $0xf8] sm:$0xff]
    %v4448 = vld [vmem:[%s17 + $0x100] sm:$0xff]
    %v4449 = vld [vmem:[%s17 + $0x108] sm:$0xff]
    %v4450 = vld [vmem:[%s17 + $0x110] sm:$0xff]
    %v4451 = vld [vmem:[%s17 + $0x118] sm:$0xff]
    %v4452 = vld [vmem:[%s17 + $0x120] sm:$0xff]
    %v4453 = vld [vmem:[%s17 + $0x128] sm:$0xff]
    %v4454 = vld [vmem:[%s17 + $0x130] sm:$0xff]
    %v4455 = vld [vmem:[%s17 + $0x138] sm:$0xff]
    %v4456 = vld [vmem:[%s17 + $0x140] sm:$0xff]
    %v4457 = vld [vmem:[%s17 + $0x148] sm:$0xff]
    %v4458 = vld [vmem:[%s17 + $0x150] sm:$0xff]
    %v4459 = vld [vmem:[%s17 + $0x158] sm:$0xff]
    %v4460 = vld [vmem:[%s17 + $0x160] sm:$0xff]
    %v4461 = vld [vmem:[%s17 + $0x168] sm:$0xff]
    %v4462 = vld [vmem:[%s17 + $0x170] sm:$0xff]
    %v4463 = vld [vmem:[%s17 + $0x178] sm:$0xff]
    %v4464 = vld [vmem:[%s17 + $0x180] sm:$0xff]
    %v4465 = vld [vmem:[%s17 + $0x188] sm:$0xff]
    %v4466 = vld [vmem:[%s17 + $0x190] sm:$0xff]
    %v4467 = vld [vmem:[%s17 + $0x198] sm:$0xff]
    %v4468 = vld [vmem:[%s17 + $0x1a0] sm:$0xff]
    %v4469 = vld [vmem:[%s17 + $0x1a8] sm:$0xff]
    %v4470 = vld [vmem:[%s17 + $0x1b0] sm:$0xff]
    %v4471 = vld [vmem:[%s17 + $0x1b8] sm:$0xff]
    %v4472 = vld [vmem:[%s17 + $0x1c0] sm:$0xff]
    %v4473 = vld [vmem:[%s17 + $0x1c8] sm:$0xff]
    %v4474 = vld [vmem:[%s17 + $0x1d0] sm:$0xff]
    %v4475 = vld [vmem:[%s17 + $0x1d8] sm:$0xff]
    %v4476 = vld [vmem:[%s17 + $0x1e0] sm:$0xff]
    %v4477 = vld [vmem:[%s17 + $0x1e8] sm:$0xff]
    %v4478 = vld [vmem:[%s17 + $0x1f0] sm:$0xff]
    %v4479 = vld [vmem:[%s17 + $0x1f8] sm:$0xff]
    %v4480 = vld [vmem:[%s18] sm:$0x1]
    %v4482 = vlaneseq
    %v4483 = vshrl.u32 %v4482, 7
    %v4484 = vsub.s32 0, %v4483
    %v4485 = vrot.slane %v4480, %v4484
    %4487 = vmatprep.subr.mxu0 0.0
    %4488 = vmatpush1.msra.mxu0 %v4416
    %4489 = vmatprep.subr.mxu0 0.0
    %4490 = vmatpush1.msra.mxu0 %v4417
    %4491 = vmatprep.subr.mxu0 0.0
    %4492 = vmatpush1.msra.mxu0 %v4418
    %4493 = vmatprep.subr.mxu0 0.0
    %4494 = vmatpush1.msra.mxu0 %v4419
    %4495 = vmatprep.subr.mxu0 0.0
    %4496 = vmatpush1.msra.mxu0 %v4420
    %4497 = vmatprep.subr.mxu0 0.0
    %4498 = vmatpush1.msra.mxu0 %v4421
    %4499 = vmatprep.subr.mxu0 0.0
    %4500 = vmatpush1.msra.mxu0 %v4422
    %4501 = vmatprep.subr.mxu0 0.0
    %4502 = vmatpush1.msra.mxu0 %v4423
    %4503 = vmatprep.subr.mxu0 0.0
    %4504 = vmatpush1.msra.mxu0 %v4424
    %4505 = vmatprep.subr.mxu0 0.0
    %4506 = vmatpush1.msra.mxu0 %v4425
    %4507 = vmatprep.subr.mxu0 0.0
    %4508 = vmatpush1.msra.mxu0 %v4426
    %4509 = vmatprep.subr.mxu0 0.0
    %4510 = vmatpush1.msra.mxu0 %v4427
    %4511 = vmatprep.subr.mxu0 0.0
    %4512 = vmatpush1.msra.mxu0 %v4428
    %4513 = vmatprep.subr.mxu0 0.0
    %4514 = vmatpush1.msra.mxu0 %v4429
    %4515 = vmatprep.subr.mxu0 0.0
    %4516 = vmatpush1.msra.mxu0 %v4430
    %4517 = vmatprep.subr.mxu0 0.0
    %4518 = vmatpush1.msra.mxu0 %v4431
    %4519 = vmatprep.subr.mxu0 0.0
    %4520 = vmatpush1.msra.mxu0 %v4432
    %4521 = vmatprep.subr.mxu0 0.0
    %4522 = vmatpush1.msra.mxu0 %v4433
    %4523 = vmatprep.subr.mxu0 0.0
    %4524 = vmatpush1.msra.mxu0 %v4434
    %4525 = vmatprep.subr.mxu0 0.0
    %4526 = vmatpush1.msra.mxu0 %v4435
    %4527 = vmatprep.subr.mxu0 0.0
    %4528 = vmatpush1.msra.mxu0 %v4436
    %4529 = vmatprep.subr.mxu0 0.0
    %4530 = vmatpush1.msra.mxu0 %v4437
    %4531 = vmatprep.subr.mxu0 0.0
    %4532 = vmatpush1.msra.mxu0 %v4438
    %4533 = vmatprep.subr.mxu0 0.0
    %4534 = vmatpush1.msra.mxu0 %v4439
    %4535 = vmatprep.subr.mxu0 0.0
    %4536 = vmatpush1.msra.mxu0 %v4440
    %4537 = vmatprep.subr.mxu0 0.0
    %4538 = vmatpush1.msra.mxu0 %v4441
    %4539 = vmatprep.subr.mxu0 0.0
    %4540 = vmatpush1.msra.mxu0 %v4442
    %4541 = vmatprep.subr.mxu0 0.0
    %4542 = vmatpush1.msra.mxu0 %v4443
    %4543 = vmatprep.subr.mxu0 0.0
    %4544 = vmatpush1.msra.mxu0 %v4444
    %4545 = vmatprep.subr.mxu0 0.0
    %4546 = vmatpush1.msra.mxu0 %v4445
    %4547 = vmatprep.subr.mxu0 0.0
    %4548 = vmatpush1.msra.mxu0 %v4446
    %4549 = vmatprep.subr.mxu0 0.0
    %4550 = vmatpush1.msra.mxu0 %v4447
    %4551 = vmatprep.mubr.f32.mxu0 %v4259
    %4552 = vmatmul.mubr.f32.gmra.mrb[0].mxu0 %v4182
    %v4553 = vpop.f32.mrb[0].mxu0
    %v4554 = vadd.f32 %v4485, %v4553
    %v4555 = vpop.f32.mrb[0].mxu0
    %4556 = vdwg.mxu0
    %4557 = vmatprep.subr.mxu0 0.0
    %4558 = vmatpush1.msra.mxu0 %v4448
    %4559 = vmatprep.subr.mxu0 0.0
    %4560 = vmatpush1.msra.mxu0 %v4449
    %4561 = vmatprep.subr.mxu0 0.0
    %4562 = vmatpush1.msra.mxu0 %v4450
    %4563 = vmatprep.subr.mxu0 0.0
    %4564 = vmatpush1.msra.mxu0 %v4451
    %4565 = vmatprep.subr.mxu0 0.0
    %4566 = vmatpush1.msra.mxu0 %v4452
    %4567 = vmatprep.subr.mxu0 0.0
    %4568 = vmatpush1.msra.mxu0 %v4453
    %4569 = vmatprep.subr.mxu0 0.0
    %4570 = vmatpush1.msra.mxu0 %v4454
    %4571 = vmatprep.subr.mxu0 0.0
    %4572 = vmatpush1.msra.mxu0 %v4455
    %4573 = vmatprep.subr.mxu0 0.0
    %4574 = vmatpush1.msra.mxu0 %v4456
    %4575 = vmatprep.subr.mxu0 0.0
    %4576 = vmatpush1.msra.mxu0 %v4457
    %4577 = vmatprep.subr.mxu0 0.0
    %4578 = vmatpush1.msra.mxu0 %v4458
    %4579 = vmatprep.subr.mxu0 0.0
    %4580 = vmatpush1.msra.mxu0 %v4459
    %4581 = vmatprep.subr.mxu0 0.0
    %4582 = vmatpush1.msra.mxu0 %v4460
    %4583 = vmatprep.subr.mxu0 0.0
    %4584 = vmatpush1.msra.mxu0 %v4461
    %4585 = vmatprep.subr.mxu0 0.0
    %4586 = vmatpush1.msra.mxu0 %v4462
    %4587 = vmatprep.subr.mxu0 0.0
    %4588 = vmatpush1.msra.mxu0 %v4463
    %4589 = vmatprep.subr.mxu0 0.0
    %4590 = vmatpush1.msra.mxu0 %v4464
    %4591 = vmatprep.subr.mxu0 0.0
    %4592 = vmatpush1.msra.mxu0 %v4465
    %4593 = vmatprep.subr.mxu0 0.0
    %4594 = vmatpush1.msra.mxu0 %v4466
    %4595 = vmatprep.subr.mxu0 0.0
    %4596 = vmatpush1.msra.mxu0 %v4467
    %4597 = vmatprep.subr.mxu0 0.0
    %4598 = vmatpush1.msra.mxu0 %v4468
    %4599 = vmatprep.subr.mxu0 0.0
    %4600 = vmatpush1.msra.mxu0 %v4469
    %4601 = vmatprep.subr.mxu0 0.0
    %4602 = vmatpush1.msra.mxu0 %v4470
    %4603 = vmatprep.subr.mxu0 0.0
    %4604 = vmatpush1.msra.mxu0 %v4471
    %4605 = vmatprep.subr.mxu0 0.0
    %4606 = vmatpush1.msra.mxu0 %v4472
    %4607 = vmatprep.subr.mxu0 0.0
    %4608 = vmatpush1.msra.mxu0 %v4473
    %4609 = vmatprep.subr.mxu0 0.0
    %4610 = vmatpush1.msra.mxu0 %v4474
    %4611 = vmatprep.subr.mxu0 0.0
    %4612 = vmatpush1.msra.mxu0 %v4475
    %4613 = vmatprep.subr.mxu0 0.0
    %4614 = vmatpush1.msra.mxu0 %v4476
    %4615 = vmatprep.subr.mxu0 0.0
    %4616 = vmatpush1.msra.mxu0 %v4477
    %4617 = vmatprep.subr.mxu0 0.0
    %4618 = vmatpush1.msra.mxu0 %v4478
    %4619 = vmatprep.subr.mxu0 0.0
    %4620 = vmatpush1.msra.mxu0 %v4479
    %4621 = vmatprep.mubr.f32.mxu0 %v4413
    %4622 = vmatmul.mubr.f32.gmra.mrb[0].mxu0 %v4336
    %v4623 = vpop.f32.mrb[0].mxu0
    %v4624 = vadd.f32 %v4554, %v4623
    %v4625 = vpop.f32.mrb[0].mxu0
    %4626 = vdwg.mxu0
    %v4627 = vld [vmem:[%s19] sm:$0xff]
    %v4628 = vld [vmem:[%s19 + $0x8] sm:$0xff]
    %v4629 = vld [vmem:[%s19 + $0x10] sm:$0xff]
    %v4630 = vld [vmem:[%s19 + $0x18] sm:$0xff]
    %v4631 = vld [vmem:[%s19 + $0x20] sm:$0xff]
    %v4632 = vld [vmem:[%s20] sm:$0x1]
    %v4634 = vlaneseq
    %v4635 = vshrl.u32 %v4634, 7
    %v4636 = vsub.s32 0, %v4635
    %v4637 = vrot.slane %v4632, %v4636
    %vm4639 = vcmask 326656
    %v4641 = vsel %vm4639, %v4624, 0
    %4643 = vmatprep.subr.mxu0 0.0
    %4644 = vmatpush1.msra.mxu0 %v4627
    %4645 = vmatprep.subr.mxu0 0.0
    %4646 = vmatpush1.msra.mxu0 %v4628
    %4647 = vmatprep.subr.mxu0 0.0
    %4648 = vmatpush1.msra.mxu0 %v4629
    %4649 = vmatprep.subr.mxu0 0.0
    %4650 = vmatpush1.msra.mxu0 %v4630
    %4651 = vmatprep.subr.mxu0 0.0
    %4652 = vmatpush1.msra.mxu0 %v4631
    %4653 = vmatprep.subr.mxu0 0.0
    %4654 = vmatpush1.msra.mxu0 0.0
    %4655 = vmatprep.subr.mxu0 0.0
    %4656 = vmatpush1.msra.mxu0 0.0
    %4657 = vmatprep.subr.mxu0 0.0
    %4658 = vmatpush1.msra.mxu0 0.0
    %4659 = vmatprep.subr.mxu0 0.0
    %4660 = vmatpush1.msra.mxu0 0.0
    %4661 = vmatprep.subr.mxu0 0.0
    %4662 = vmatpush1.msra.mxu0 0.0
    %4663 = vmatprep.subr.mxu0 0.0
    %4664 = vmatpush1.msra.mxu0 0.0
    %4665 = vmatprep.subr.mxu0 0.0
    %4666 = vmatpush1.msra.mxu0 0.0
    %4667 = vmatprep.subr.mxu0 0.0
    %4668 = vmatpush1.msra.mxu0 0.0
    %4669 = vmatprep.subr.mxu0 0.0
    %4670 = vmatpush1.msra.mxu0 0.0
    %4671 = vmatprep.subr.mxu0 0.0
    %4672 = vmatpush1.msra.mxu0 0.0
    %4673 = vmatprep.subr.mxu0 0.0
    %4674 = vmatpush1.msra.mxu0 0.0
    %4675 = vmatprep.subr.mxu0 0.0
    %4676 = vmatpush1.msra.mxu0 0.0
    %4677 = vmatprep.subr.mxu0 0.0
    %4678 = vmatpush1.msra.mxu0 0.0
    %4679 = vmatprep.subr.mxu0 0.0
    %4680 = vmatpush1.msra.mxu0 0.0
    %4681 = vmatprep.subr.mxu0 0.0
    %4682 = vmatpush1.msra.mxu0 0.0
    %4683 = vmatprep.subr.mxu0 0.0
    %4684 = vmatpush1.msra.mxu0 0.0
    %4685 = vmatprep.subr.mxu0 0.0
    %4686 = vmatpush1.msra.mxu0 0.0
    %4687 = vmatprep.subr.mxu0 0.0
    %4688 = vmatpush1.msra.mxu0 0.0
    %4689 = vmatprep.subr.mxu0 0.0
    %4690 = vmatpush1.msra.mxu0 0.0
    %4691 = vmatprep.subr.mxu0 0.0
    %4692 = vmatpush1.msra.mxu0 0.0
    %4693 = vmatprep.subr.mxu0 0.0
    %4694 = vmatpush1.msra.mxu0 0.0
    %4695 = vmatprep.subr.mxu0 0.0
    %4696 = vmatpush1.msra.mxu0 0.0
    %4697 = vmatprep.subr.mxu0 0.0
    %4698 = vmatpush1.msra.mxu0 0.0
    %4699 = vmatprep.subr.mxu0 0.0
    %4700 = vmatpush1.msra.mxu0 0.0
    %4701 = vmatprep.subr.mxu0 0.0
    %4702 = vmatpush1.msra.mxu0 0.0
    %4703 = vmatprep.subr.mxu0 0.0
    %4704 = vmatpush1.msra.mxu0 0.0
    %4705 = vmatprep.subr.mxu0 0.0
    %4706 = vmatpush1.msra.mxu0 0.0
    %4707 = vmatprep.mubr.f32.mxu0 0.0
    %4708 = vmatmul.mubr.f32.gmra.mrb[0].mxu0 %v4641
    %v4709 = vpop.f32.mrb[0].mxu0
    %v4710 = vadd.f32 %v4637, %v4709
    %v4711 = vpop.f32.mrb[0].mxu0
    %4712 = vdwg.mxu0
    %vm4713 = vcmask 58368
    %v4714 = vsel %vm4713, %v4710, -inf
    %4715 = vmax.xlane.f32.xlu0 %v4714
    %v4716 = vpop.xlane.xlu0 %4715
    %v4717 = vsub.f32 %v4710, %v4716
    %v4718 = vmul.f32 %v4717, 1.442695
    %v4719 = vpow.pop %v4718
    %v4720 = vsel %vm4713, %v4719, 0.0
    %4721 = vadd.xlane.f32.xlu0 %v4720
    %v4722 = vpop.xlane.xlu0 %4721
    %v4723 = vlog2.pop %v4722
    %v4724 = vmul.f32 %v4723, 0.6931472
    %v4725 = vsub.f32 %v4717, %v4724
    %4726 = vst.msk [vmem:[#allocation23] sm:$0x3] %vm4713, %v4725
    // Predicated region
    $region134: #{tpu_custom_call.1} parent=1 // pred_check
      _
    $region135: #{tpu_custom_call.1} parent=1 // pred_check_branch
      %4728 = sbr.rel (0) target = $region137
    $region136: #{tpu_custom_call.1} parent=1 // pred_region
      %s4730 = ssub.s32 32, 32
      %4731 = vsyncadd [#allocation5], %s4730
      %s4733 = sshll.u32 [#allocation23], 4
      %s4734 = int_to_ptr.vmem [resolvable:$true] %s4733
      %4736 = dma.vmem_to_hbm [thread:$0]  %s4734, 32, %s21, [#allocation5]
    $region137: #{tpu_custom_call.1} parent=1 // pred_fallthru
      _
    // Predicated region
    $region138: #{tpu_custom_call.1} parent=1 // pred_check
      _
    $region139: #{tpu_custom_call.1} parent=1 // pred_check_branch
      %4738 = sbr.rel (0) target = $region141
    $region140: #{tpu_custom_call.1} parent=1 // pred_region
      %4739 = dma.done [#allocation5], 32
    $region141: #{tpu_custom_call.1} parent=1 // pred_fallthru
      _
    %4740 = vsyncpa [#allocation4], 1
    %4741 = vsyncpa [#allocation7], 1
    %4742 = vsyncpa [#allocation10], 1
    %4743 = vsyncpa [#allocation13], 1
    %4744 = vsyncpa [#allocation16], 1
    %4745 = vsyncpa [#allocation19], 1
    %4746 = vsyncpa [#allocation22], 1
    %4747 = vsyncpa [#allocation5], 1

</llo_original>
